<compile_context>
chip_gen: v7x
topology: tpu7x:2x2x1
jax: 0.10.0
libtpu: 0.0.40
codegen_flags: <defaults>
</compile_context>

<pallas_src>
import jax
import jax.numpy as jnp
from jax.experimental import pallas as pl
from jax.experimental.pallas import tpu as pltpu


def _backbone_kernel(p00_ref, p01_ref, p10_ref, p11_ref,
                     w1_ref, b1_ref, w2_ref, b2_ref,
                     o_ref, h_ref):
    # p**_ref : (N, Hp, Wp, Cin) f32   parity-split, zero-padded input (layer 1)
    # w1_ref  : (9, Cin, C)      bf16  layer-1 weights, BN scale folded in
    # b1_ref  : (1, C)           f32   folded conv-bias + BN bias
    # w2_ref  : (9, C, C)        bf16  layer-2 weights, BN scale folded in
    # b2_ref  : (1, C)           f32
    # o_ref   : (N, Ho, Wo, C)   f32   output (NHWC)
    # h_ref   : (N, Ho+2, Wo+2, C) f32 VMEM scratch: zero-padded intermediate
    N, Ho, Wo, C = o_ref.shape
    Cin = w1_ref.shape[1]
    M = N * Ho * Wo
    planes = (p00_ref, p01_ref, p10_ref, p11_ref)

    # ---- block 0: 3x3 stride-2 conv as 9 per-tap MXU matmuls (f32 accumulation) ----
    acc = jnp.zeros((M, C), jnp.float32)
    for ky in range(3):
        for kx in range(3):
            plane = planes[(ky % 2) * 2 + (kx % 2)]
            r0, c0 = ky // 2, kx // 2
            tap = plane[:, r0:r0 + Ho, c0:c0 + Wo, :]            # (N, Ho, Wo, Cin)
            xm = tap.reshape(M, Cin).astype(jnp.bfloat16)        # bf16 MXU operand
            acc = acc + jnp.dot(xm, w1_ref[ky * 3 + kx],
                                preferred_element_type=jnp.float32)
    y1 = jnp.maximum(acc + b1_ref[...], 0.0)                     # folded-BN bias + ReLU

    # ---- stage zero-padded intermediate in VMEM (never round-trips to HBM) ----
    h_ref[...] = jnp.zeros_like(h_ref)
    h_ref[:, 1:1 + Ho, 1:1 + Wo, :] = y1.reshape(N, Ho, Wo, C)

    # ---- block 1: 3x3 stride-1 conv as 9 per-tap MXU matmuls ----
    acc2 = jnp.zeros((M, C), jnp.float32)
    for ky in range(3):
        for kx in range(3):
            tap = h_ref[:, ky:ky + Ho, kx:kx + Wo, :]            # (N, Ho, Wo, C)
            xm = tap.reshape(M, C).astype(jnp.bfloat16)
            acc2 = acc2 + jnp.dot(xm, w2_ref[ky * 3 + kx],
                                  preferred_element_type=jnp.float32)
    y2 = jnp.maximum(acc2 + b2_ref[...], 0.0)
    o_ref[...] = y2.reshape(N, Ho, Wo, C).astype(o_ref.dtype)


@jax.jit
def backbone_forward(params, x_nchw, eps=1e-5):
    x = jnp.transpose(x_nchw, (0, 2, 3, 1)).astype(jnp.float32)   # NCHW -> NHWC
    N, H, W, Cin = x.shape
    C = params["w1"].shape[-1]
    assert H % 2 == 0 and W % 2 == 0, (H, W)   # parity split assumes even spatial dims
    Ho = (H + 2 - 3) // 2 + 1
    Wo = (W + 2 - 3) // 2 + 1

    # --- glue only: pad + parity split (no data amplification, no im2col) ---
    xp = jnp.pad(x, ((0, 0), (1, 1), (1, 1), (0, 0)))
    planes = [xp[:, pr::2, pc::2, :] for pr in (0, 1) for pc in (0, 1)]
    Hp, Wp = planes[0].shape[1], planes[0].shape[2]

    # --- fold conv bias + inference BN into per-channel weight scale / bias ---
    def fold(w, b, g, be, m, v):
        s = g / jnp.sqrt(v + eps)
        wf = (w.astype(jnp.float32) * s).reshape(9, w.shape[2], w.shape[3])
        bf = be + (b - m) * s
        return wf.astype(jnp.bfloat16), bf.reshape(1, -1).astype(jnp.float32)

    w1f, b1f = fold(params["w1"], params["b1"], params["g1"],
                    params["be1"], params["m1"], params["v1"])
    w2f, b2f = fold(params["w2"], params["b2"], params["g2"],
                    params["be2"], params["m2"], params["v2"])

    out = pl.pallas_call(
        _backbone_kernel,
        out_shape=jax.ShapeDtypeStruct((N, Ho, Wo, C), jnp.float32),
        grid_spec=pltpu.PrefetchScalarGridSpec(
            num_scalar_prefetch=0,
            grid=(1,),
            in_specs=[
                pl.BlockSpec((N, Hp, Wp, Cin), lambda i: (0, 0, 0, 0)),
                pl.BlockSpec((N, Hp, Wp, Cin), lambda i: (0, 0, 0, 0)),
                pl.BlockSpec((N, Hp, Wp, Cin), lambda i: (0, 0, 0, 0)),
                pl.BlockSpec((N, Hp, Wp, Cin), lambda i: (0, 0, 0, 0)),
                pl.BlockSpec((9, Cin, C), lambda i: (0, 0, 0)),
                pl.BlockSpec((1, C), lambda i: (0, 0)),
                pl.BlockSpec((9, C, C), lambda i: (0, 0, 0)),
                pl.BlockSpec((1, C), lambda i: (0, 0)),
            ],
            out_specs=pl.BlockSpec((N, Ho, Wo, C), lambda i: (0, 0, 0, 0)),
            scratch_shapes=[pltpu.VMEM((N, Ho + 2, Wo + 2, C), jnp.float32)],
        ),
        compiler_params=pltpu.CompilerParams(
            dimension_semantics=("arbitrary",)),
    )(planes[0], planes[1], planes[2], planes[3], w1f, b1f, w2f, b2f)

    return jnp.transpose(out, (0, 3, 1, 2))                       # NHWC -> NCHW


def init_params(key, in_channels=64):
    ks = jax.random.split(key, 12)
    f32 = jnp.float32

    def conv_w(k, cin, cout):
        fan_in = 9 * cin
        return jax.random.normal(k, (3, 3, cin, cout), f32) / jnp.sqrt(fan_in)

    return {
        # block 0: Conv2d(in_channels, 128, 3, stride=2, padding=1) + BN(128)
        "w1": conv_w(ks[0], in_channels, 128),
        "b1": 0.01 * jax.random.normal(ks[1], (128,), f32),
        "g1": 1.0 + 0.1 * jax.random.normal(ks[2], (128,), f32),
        "be1": 0.1 * jax.random.normal(ks[3], (128,), f32),
        "m1": 0.05 * jax.random.normal(ks[4], (128,), f32),
        "v1": 1.0 + jnp.abs(0.1 * jax.random.normal(ks[5], (128,), f32)),
        # block 1: Conv2d(128, 128, 3, stride=1, padding=1) + BN(128)
        "w2": conv_w(ks[6], 128, 128),
        "b2": 0.01 * jax.random.normal(ks[7], (128,), f32),
        "g2": 1.0 + 0.1 * jax.random.normal(ks[8], (128,), f32),
        "be2": 0.1 * jax.random.normal(ks[9], (128,), f32),
        "m2": 0.05 * jax.random.normal(ks[10], (128,), f32),
        "v2": 1.0 + jnp.abs(0.1 * jax.random.normal(ks[11], (128,), f32)),
    }


def reference_forward(params, x_nchw, eps=1e-5):
    """Pure-JAX reference (lax conv) mirroring the kernel's bf16-MXU / f32-acc precision."""
    x = jnp.transpose(x_nchw, (0, 2, 3, 1))

    def block(x, w, b, g, be, m, v, stride):
        s = g / jnp.sqrt(v + eps)
        wf = (w * s).astype(jnp.bfloat16)
        bf = be + (b - m) * s
        y = jax.lax.conv_general_dilated(
            x.astype(jnp.bfloat16), wf, (stride, stride), ((1, 1), (1, 1)),
            dimension_numbers=("NHWC", "HWIO", "NHWC"),
            preferred_element_type=jnp.float32)
        return jnp.maximum(y + bf, 0.0)

    y = block(x, params["w1"], params["b1"], params["g1"], params["be1"],
              params["m1"], params["v1"], 2)
    y = block(y, params["w2"], params["b2"], params["g2"], params["be2"],
              params["m2"], params["v2"], 1)
    return jnp.transpose(y, (0, 3, 1, 2))


if __name__ == "__main__":
    key = jax.random.PRNGKey(0)
    k_params, k_x = jax.random.split(key)

    in_channels = 64
    x = jax.random.normal(k_x, (2, in_channels, 16, 16), jnp.float32)   # NCHW
    params = init_params(k_params, in_channels=in_channels)

    out = jax.block_until_ready(backbone_forward(params, x))
    assert out.shape == (2, 128, 8, 8), out.shape

    ref = jax.block_until_ready(reference_forward(params, x))
    max_err = float(jnp.max(jnp.abs(out - ref)))
    assert jnp.allclose(out, ref, rtol=1e-2, atol=1e-2), max_err

    print("KERNEL_OK")
</pallas_src>

<mosaic_0001>
module attributes {stable_mosaic.version = 11 : i64} {
  func.func @_backbone_kernel(%arg0: i32, %arg1: memref<2x9x9x64xf32, #tpu.memory_space<vmem>>, %arg2: memref<2x9x9x64xf32, #tpu.memory_space<vmem>>, %arg3: memref<2x9x9x64xf32, #tpu.memory_space<vmem>>, %arg4: memref<2x9x9x64xf32, #tpu.memory_space<vmem>>, %arg5: memref<9x64x128xbf16, #tpu.memory_space<vmem>>, %arg6: memref<1x128xf32, #tpu.memory_space<vmem>>, %arg7: memref<9x128x128xbf16, #tpu.memory_space<vmem>>, %arg8: memref<1x128xf32, #tpu.memory_space<vmem>>, %arg9: memref<2x8x8x128xf32, #tpu.memory_space<vmem>>, %arg10: memref<2x10x10x128xf32, #tpu.memory_space<vmem>>) attributes {dimension_semantics = [#tpu.dimension_semantics<arbitrary>], iteration_bounds = array<i64: 1>, scalar_prefetch = 0 : i64, scratch_operands = 1 : i64, tpu.core_type = #tpu.core_type<tc>, window_params = [{pipeline_mode = #tpu.pipeline_mode<synchronous>, transform_indices = @transform_0, window_bounds = array<i64: 2, 9, 9, 64>}, {pipeline_mode = #tpu.pipeline_mode<synchronous>, transform_indices = @transform_1, window_bounds = array<i64: 2, 9, 9, 64>}, {pipeline_mode = #tpu.pipeline_mode<synchronous>, transform_indices = @transform_2, window_bounds = array<i64: 2, 9, 9, 64>}, {pipeline_mode = #tpu.pipeline_mode<synchronous>, transform_indices = @transform_3, window_bounds = array<i64: 2, 9, 9, 64>}, {pipeline_mode = #tpu.pipeline_mode<synchronous>, transform_indices = @transform_4, window_bounds = array<i64: 9, 64, 128>}, {pipeline_mode = #tpu.pipeline_mode<synchronous>, transform_indices = @transform_5, window_bounds = array<i64: 1, 128>}, {pipeline_mode = #tpu.pipeline_mode<synchronous>, transform_indices = @transform_6, window_bounds = array<i64: 9, 128, 128>}, {pipeline_mode = #tpu.pipeline_mode<synchronous>, transform_indices = @transform_7, window_bounds = array<i64: 1, 128>}, {pipeline_mode = #tpu.pipeline_mode<synchronous>, transform_indices = @transform_8, window_bounds = array<i64: 2, 8, 8, 128>}]} {
    %cst = arith.constant 0.000000e+00 : f32
    %0 = vector.broadcast %cst : f32 to vector<128x128xf32>
    %c0 = arith.constant 0 : index
    %c0_0 = arith.constant 0 : index
    %c0_1 = arith.constant 0 : index
    %c0_2 = arith.constant 0 : index
    %1 = vector.load %arg1[%c0, %c0_0, %c0_1, %c0_2] : memref<2x9x9x64xf32, #tpu.memory_space<vmem>>, vector<2x8x8x64xf32>
    %2 = vector.shape_cast %1 : vector<2x8x8x64xf32> to vector<128x64xf32>
    %3 = arith.truncf %2 : vector<128x64xf32> to vector<128x64xbf16>
    %c0_3 = arith.constant 0 : index
    %c0_4 = arith.constant 0 : index
    %c0_5 = arith.constant 0 : index
    %4 = vector.load %arg5[%c0_3, %c0_4, %c0_5] : memref<9x64x128xbf16, #tpu.memory_space<vmem>>, vector<1x64x128xbf16>
    %5 = vector.shape_cast %4 : vector<1x64x128xbf16> to vector<64x128xbf16>
    %cst_6 = arith.constant dense<0.000000e+00> : vector<128x128xf32>
    %6 = tpu.matmul %3, %5, %cst_6 {dimension_numbers = #tpu.dot_dimension_numbers<[1], [0], [0], [1], [0, 0, 1, 1], [], []>} : vector<128x64xbf16>, vector<64x128xbf16>, vector<128x128xf32> -> vector<128x128xf32>
    %7 = arith.addf %0, %6 : vector<128x128xf32>
    %c0_7 = arith.constant 0 : index
    %c0_8 = arith.constant 0 : index
    %c0_9 = arith.constant 0 : index
    %c0_10 = arith.constant 0 : index
    %8 = vector.load %arg2[%c0_7, %c0_8, %c0_9, %c0_10] : memref<2x9x9x64xf32, #tpu.memory_space<vmem>>, vector<2x8x8x64xf32>
    %9 = vector.shape_cast %8 : vector<2x8x8x64xf32> to vector<128x64xf32>
    %10 = arith.truncf %9 : vector<128x64xf32> to vector<128x64xbf16>
    %c1 = arith.constant 1 : index
    %c0_11 = arith.constant 0 : index
    %c0_12 = arith.constant 0 : index
    %11 = vector.load %arg5[%c1, %c0_11, %c0_12] : memref<9x64x128xbf16, #tpu.memory_space<vmem>>, vector<1x64x128xbf16>
    %12 = vector.shape_cast %11 : vector<1x64x128xbf16> to vector<64x128xbf16>
    %cst_13 = arith.constant dense<0.000000e+00> : vector<128x128xf32>
    %13 = tpu.matmul %10, %12, %cst_13 {dimension_numbers = #tpu.dot_dimension_numbers<[1], [0], [0], [1], [0, 0, 1, 1], [], []>} : vector<128x64xbf16>, vector<64x128xbf16>, vector<128x128xf32> -> vector<128x128xf32>
    %14 = arith.addf %7, %13 : vector<128x128xf32>
    %c0_14 = arith.constant 0 : index
    %c0_15 = arith.constant 0 : index
    %c1_16 = arith.constant 1 : index
    %c0_17 = arith.constant 0 : index
    %15 = vector.load %arg1[%c0_14, %c0_15, %c1_16, %c0_17] : memref<2x9x9x64xf32, #tpu.memory_space<vmem>>, vector<2x8x8x64xf32>
    %16 = vector.shape_cast %15 : vector<2x8x8x64xf32> to vector<128x64xf32>
    %17 = arith.truncf %16 : vector<128x64xf32> to vector<128x64xbf16>
    %c2 = arith.constant 2 : index
    %c0_18 = arith.constant 0 : index
    %c0_19 = arith.constant 0 : index
    %18 = vector.load %arg5[%c2, %c0_18, %c0_19] : memref<9x64x128xbf16, #tpu.memory_space<vmem>>, vector<1x64x128xbf16>
    %19 = vector.shape_cast %18 : vector<1x64x128xbf16> to vector<64x128xbf16>
    %cst_20 = arith.constant dense<0.000000e+00> : vector<128x128xf32>
    %20 = tpu.matmul %17, %19, %cst_20 {dimension_numbers = #tpu.dot_dimension_numbers<[1], [0], [0], [1], [0, 0, 1, 1], [], []>} : vector<128x64xbf16>, vector<64x128xbf16>, vector<128x128xf32> -> vector<128x128xf32>
    %21 = arith.addf %14, %20 : vector<128x128xf32>
    %c0_21 = arith.constant 0 : index
    %c0_22 = arith.constant 0 : index
    %c0_23 = arith.constant 0 : index
    %c0_24 = arith.constant 0 : index
    %22 = vector.load %arg3[%c0_21, %c0_22, %c0_23, %c0_24] : memref<2x9x9x64xf32, #tpu.memory_space<vmem>>, vector<2x8x8x64xf32>
    %23 = vector.shape_cast %22 : vector<2x8x8x64xf32> to vector<128x64xf32>
    %24 = arith.truncf %23 : vector<128x64xf32> to vector<128x64xbf16>
    %c3 = arith.constant 3 : index
    %c0_25 = arith.constant 0 : index
    %c0_26 = arith.constant 0 : index
    %25 = vector.load %arg5[%c3, %c0_25, %c0_26] : memref<9x64x128xbf16, #tpu.memory_space<vmem>>, vector<1x64x128xbf16>
    %26 = vector.shape_cast %25 : vector<1x64x128xbf16> to vector<64x128xbf16>
    %cst_27 = arith.constant dense<0.000000e+00> : vector<128x128xf32>
    %27 = tpu.matmul %24, %26, %cst_27 {dimension_numbers = #tpu.dot_dimension_numbers<[1], [0], [0], [1], [0, 0, 1, 1], [], []>} : vector<128x64xbf16>, vector<64x128xbf16>, vector<128x128xf32> -> vector<128x128xf32>
    %28 = arith.addf %21, %27 : vector<128x128xf32>
    %c0_28 = arith.constant 0 : index
    %c0_29 = arith.constant 0 : index
    %c0_30 = arith.constant 0 : index
    %c0_31 = arith.constant 0 : index
    %29 = vector.load %arg4[%c0_28, %c0_29, %c0_30, %c0_31] : memref<2x9x9x64xf32, #tpu.memory_space<vmem>>, vector<2x8x8x64xf32>
    %30 = vector.shape_cast %29 : vector<2x8x8x64xf32> to vector<128x64xf32>
    %31 = arith.truncf %30 : vector<128x64xf32> to vector<128x64xbf16>
    %c4 = arith.constant 4 : index
    %c0_32 = arith.constant 0 : index
    %c0_33 = arith.constant 0 : index
    %32 = vector.load %arg5[%c4, %c0_32, %c0_33] : memref<9x64x128xbf16, #tpu.memory_space<vmem>>, vector<1x64x128xbf16>
    %33 = vector.shape_cast %32 : vector<1x64x128xbf16> to vector<64x128xbf16>
    %cst_34 = arith.constant dense<0.000000e+00> : vector<128x128xf32>
    %34 = tpu.matmul %31, %33, %cst_34 {dimension_numbers = #tpu.dot_dimension_numbers<[1], [0], [0], [1], [0, 0, 1, 1], [], []>} : vector<128x64xbf16>, vector<64x128xbf16>, vector<128x128xf32> -> vector<128x128xf32>
    %35 = arith.addf %28, %34 : vector<128x128xf32>
    %c0_35 = arith.constant 0 : index
    %c0_36 = arith.constant 0 : index
    %c1_37 = arith.constant 1 : index
    %c0_38 = arith.constant 0 : index
    %36 = vector.load %arg3[%c0_35, %c0_36, %c1_37, %c0_38] : memref<2x9x9x64xf32, #tpu.memory_space<vmem>>, vector<2x8x8x64xf32>
    %37 = vector.shape_cast %36 : vector<2x8x8x64xf32> to vector<128x64xf32>
    %38 = arith.truncf %37 : vector<128x64xf32> to vector<128x64xbf16>
    %c5 = arith.constant 5 : index
    %c0_39 = arith.constant 0 : index
    %c0_40 = arith.constant 0 : index
    %39 = vector.load %arg5[%c5, %c0_39, %c0_40] : memref<9x64x128xbf16, #tpu.memory_space<vmem>>, vector<1x64x128xbf16>
    %40 = vector.shape_cast %39 : vector<1x64x128xbf16> to vector<64x128xbf16>
    %cst_41 = arith.constant dense<0.000000e+00> : vector<128x128xf32>
    %41 = tpu.matmul %38, %40, %cst_41 {dimension_numbers = #tpu.dot_dimension_numbers<[1], [0], [0], [1], [0, 0, 1, 1], [], []>} : vector<128x64xbf16>, vector<64x128xbf16>, vector<128x128xf32> -> vector<128x128xf32>
    %42 = arith.addf %35, %41 : vector<128x128xf32>
    %c0_42 = arith.constant 0 : index
    %c1_43 = arith.constant 1 : index
    %c0_44 = arith.constant 0 : index
    %c0_45 = arith.constant 0 : index
    %43 = vector.load %arg1[%c0_42, %c1_43, %c0_44, %c0_45] : memref<2x9x9x64xf32, #tpu.memory_space<vmem>>, vector<2x8x8x64xf32>
    %44 = vector.shape_cast %43 : vector<2x8x8x64xf32> to vector<128x64xf32>
    %45 = arith.truncf %44 : vector<128x64xf32> to vector<128x64xbf16>
    %c6 = arith.constant 6 : index
    %c0_46 = arith.constant 0 : index
    %c0_47 = arith.constant 0 : index
    %46 = vector.load %arg5[%c6, %c0_46, %c0_47] : memref<9x64x128xbf16, #tpu.memory_space<vmem>>, vector<1x64x128xbf16>
    %47 = vector.shape_cast %46 : vector<1x64x128xbf16> to vector<64x128xbf16>
    %cst_48 = arith.constant dense<0.000000e+00> : vector<128x128xf32>
    %48 = tpu.matmul %45, %47, %cst_48 {dimension_numbers = #tpu.dot_dimension_numbers<[1], [0], [0], [1], [0, 0, 1, 1], [], []>} : vector<128x64xbf16>, vector<64x128xbf16>, vector<128x128xf32> -> vector<128x128xf32>
    %49 = arith.addf %42, %48 : vector<128x128xf32>
    %c0_49 = arith.constant 0 : index
    %c1_50 = arith.constant 1 : index
    %c0_51 = arith.constant 0 : index
    %c0_52 = arith.constant 0 : index
    %50 = vector.load %arg2[%c0_49, %c1_50, %c0_51, %c0_52] : memref<2x9x9x64xf32, #tpu.memory_space<vmem>>, vector<2x8x8x64xf32>
    %51 = vector.shape_cast %50 : vector<2x8x8x64xf32> to vector<128x64xf32>
    %52 = arith.truncf %51 : vector<128x64xf32> to vector<128x64xbf16>
    %c7 = arith.constant 7 : index
    %c0_53 = arith.constant 0 : index
    %c0_54 = arith.constant 0 : index
    %53 = vector.load %arg5[%c7, %c0_53, %c0_54] : memref<9x64x128xbf16, #tpu.memory_space<vmem>>, vector<1x64x128xbf16>
    %54 = vector.shape_cast %53 : vector<1x64x128xbf16> to vector<64x128xbf16>
    %cst_55 = arith.constant dense<0.000000e+00> : vector<128x128xf32>
    %55 = tpu.matmul %52, %54, %cst_55 {dimension_numbers = #tpu.dot_dimension_numbers<[1], [0], [0], [1], [0, 0, 1, 1], [], []>} : vector<128x64xbf16>, vector<64x128xbf16>, vector<128x128xf32> -> vector<128x128xf32>
    %56 = arith.addf %49, %55 : vector<128x128xf32>
    %c0_56 = arith.constant 0 : index
    %c1_57 = arith.constant 1 : index
    %c1_58 = arith.constant 1 : index
    %c0_59 = arith.constant 0 : index
    %57 = vector.load %arg1[%c0_56, %c1_57, %c1_58, %c0_59] : memref<2x9x9x64xf32, #tpu.memory_space<vmem>>, vector<2x8x8x64xf32>
    %58 = vector.shape_cast %57 : vector<2x8x8x64xf32> to vector<128x64xf32>
    %59 = arith.truncf %58 : vector<128x64xf32> to vector<128x64xbf16>
    %c8 = arith.constant 8 : index
    %c0_60 = arith.constant 0 : index
    %c0_61 = arith.constant 0 : index
    %60 = vector.load %arg5[%c8, %c0_60, %c0_61] : memref<9x64x128xbf16, #tpu.memory_space<vmem>>, vector<1x64x128xbf16>
    %61 = vector.shape_cast %60 : vector<1x64x128xbf16> to vector<64x128xbf16>
    %cst_62 = arith.constant dense<0.000000e+00> : vector<128x128xf32>
    %62 = tpu.matmul %59, %61, %cst_62 {dimension_numbers = #tpu.dot_dimension_numbers<[1], [0], [0], [1], [0, 0, 1, 1], [], []>} : vector<128x64xbf16>, vector<64x128xbf16>, vector<128x128xf32> -> vector<128x128xf32>
    %63 = arith.addf %56, %62 : vector<128x128xf32>
    %c0_63 = arith.constant 0 : index
    %c0_64 = arith.constant 0 : index
    %64 = vector.load %arg6[%c0_63, %c0_64] : memref<1x128xf32, #tpu.memory_space<vmem>>, vector<1x128xf32>
    %65 = vector.broadcast %64 : vector<1x128xf32> to vector<128x128xf32>
    %66 = arith.addf %63, %65 : vector<128x128xf32>
    %cst_65 = arith.constant 0.000000e+00 : f32
    %67 = vector.broadcast %cst_65 : f32 to vector<128x128xf32>
    %68 = arith.maximumf %66, %67 : vector<128x128xf32>
    %cst_66 = arith.constant 0.000000e+00 : f32
    %69 = vector.broadcast %cst_66 : f32 to vector<2x10x10x128xf32>
    %c0_67 = arith.constant 0 : index
    %c0_68 = arith.constant 0 : index
    %c0_69 = arith.constant 0 : index
    %c0_70 = arith.constant 0 : index
    %70 = vector.load %arg10[%c0_67, %c0_68, %c0_69, %c0_70] : memref<2x10x10x128xf32, #tpu.memory_space<vmem>>, vector<2x10x10x128xf32>
    tpu.vector_store %arg10[%c0_67, %c0_68, %c0_69, %c0_70], %69 {strides = array<i32>} : memref<2x10x10x128xf32, #tpu.memory_space<vmem>>, vector<2x10x10x128xf32>,
    %71 = vector.shape_cast %68 : vector<128x128xf32> to vector<2x8x8x128xf32>
    %c0_71 = arith.constant 0 : index
    %c1_72 = arith.constant 1 : index
    %c1_73 = arith.constant 1 : index
    %c0_74 = arith.constant 0 : index
    %72 = vector.load %arg10[%c0_71, %c1_72, %c1_73, %c0_74] : memref<2x10x10x128xf32, #tpu.memory_space<vmem>>, vector<2x8x8x128xf32>
    tpu.vector_store %arg10[%c0_71, %c1_72, %c1_73, %c0_74], %71 {strides = array<i32>} : memref<2x10x10x128xf32, #tpu.memory_space<vmem>>, vector<2x8x8x128xf32>,
    %cst_75 = arith.constant 0.000000e+00 : f32
    %73 = vector.broadcast %cst_75 : f32 to vector<128x128xf32>
    %c0_76 = arith.constant 0 : index
    %c0_77 = arith.constant 0 : index
    %c0_78 = arith.constant 0 : index
    %c0_79 = arith.constant 0 : index
    %74 = vector.load %arg10[%c0_76, %c0_77, %c0_78, %c0_79] : memref<2x10x10x128xf32, #tpu.memory_space<vmem>>, vector<2x8x8x128xf32>
    %75 = vector.shape_cast %74 : vector<2x8x8x128xf32> to vector<128x128xf32>
    %76 = arith.truncf %75 : vector<128x128xf32> to vector<128x128xbf16>
    %c0_80 = arith.constant 0 : index
    %c0_81 = arith.constant 0 : index
    %c0_82 = arith.constant 0 : index
    %77 = vector.load %arg7[%c0_80, %c0_81, %c0_82] : memref<9x128x128xbf16, #tpu.memory_space<vmem>>, vector<1x128x128xbf16>
    %78 = vector.shape_cast %77 : vector<1x128x128xbf16> to vector<128x128xbf16>
    %cst_83 = arith.constant dense<0.000000e+00> : vector<128x128xf32>
    %79 = tpu.matmul %76, %78, %cst_83 {dimension_numbers = #tpu.dot_dimension_numbers<[1], [0], [0], [1], [0, 0, 1, 1], [], []>} : vector<128x128xbf16>, vector<128x128xbf16>, vector<128x128xf32> -> vector<128x128xf32>
    %80 = arith.addf %73, %79 : vector<128x128xf32>
    %c0_84 = arith.constant 0 : index
    %c0_85 = arith.constant 0 : index
    %c1_86 = arith.constant 1 : index
    %c0_87 = arith.constant 0 : index
    %81 = vector.load %arg10[%c0_84, %c0_85, %c1_86, %c0_87] : memref<2x10x10x128xf32, #tpu.memory_space<vmem>>, vector<2x8x8x128xf32>
    %82 = vector.shape_cast %81 : vector<2x8x8x128xf32> to vector<128x128xf32>
    %83 = arith.truncf %82 : vector<128x128xf32> to vector<128x128xbf16>
    %c1_88 = arith.constant 1 : index
    %c0_89 = arith.constant 0 : index
    %c0_90 = arith.constant 0 : index
    %84 = vector.load %arg7[%c1_88, %c0_89, %c0_90] : memref<9x128x128xbf16, #tpu.memory_space<vmem>>, vector<1x128x128xbf16>
    %85 = vector.shape_cast %84 : vector<1x128x128xbf16> to vector<128x128xbf16>
    %cst_91 = arith.constant dense<0.000000e+00> : vector<128x128xf32>
    %86 = tpu.matmul %83, %85, %cst_91 {dimension_numbers = #tpu.dot_dimension_numbers<[1], [0], [0], [1], [0, 0, 1, 1], [], []>} : vector<128x128xbf16>, vector<128x128xbf16>, vector<128x128xf32> -> vector<128x128xf32>
    %87 = arith.addf %80, %86 : vector<128x128xf32>
    %c0_92 = arith.constant 0 : index
    %c0_93 = arith.constant 0 : index
    %c2_94 = arith.constant 2 : index
    %c0_95 = arith.constant 0 : index
    %88 = vector.load %arg10[%c0_92, %c0_93, %c2_94, %c0_95] : memref<2x10x10x128xf32, #tpu.memory_space<vmem>>, vector<2x8x8x128xf32>
    %89 = vector.shape_cast %88 : vector<2x8x8x128xf32> to vector<128x128xf32>
    %90 = arith.truncf %89 : vector<128x128xf32> to vector<128x128xbf16>
    %c2_96 = arith.constant 2 : index
    %c0_97 = arith.constant 0 : index
    %c0_98 = arith.constant 0 : index
    %91 = vector.load %arg7[%c2_96, %c0_97, %c0_98] : memref<9x128x128xbf16, #tpu.memory_space<vmem>>, vector<1x128x128xbf16>
    %92 = vector.shape_cast %91 : vector<1x128x128xbf16> to vector<128x128xbf16>
    %cst_99 = arith.constant dense<0.000000e+00> : vector<128x128xf32>
    %93 = tpu.matmul %90, %92, %cst_99 {dimension_numbers = #tpu.dot_dimension_numbers<[1], [0], [0], [1], [0, 0, 1, 1], [], []>} : vector<128x128xbf16>, vector<128x128xbf16>, vector<128x128xf32> -> vector<128x128xf32>
    %94 = arith.addf %87, %93 : vector<128x128xf32>
    %c0_100 = arith.constant 0 : index
    %c1_101 = arith.constant 1 : index
    %c0_102 = arith.constant 0 : index
    %c0_103 = arith.constant 0 : index
    %95 = vector.load %arg10[%c0_100, %c1_101, %c0_102, %c0_103] : memref<2x10x10x128xf32, #tpu.memory_space<vmem>>, vector<2x8x8x128xf32>
    %96 = vector.shape_cast %95 : vector<2x8x8x128xf32> to vector<128x128xf32>
    %97 = arith.truncf %96 : vector<128x128xf32> to vector<128x128xbf16>
    %c3_104 = arith.constant 3 : index
    %c0_105 = arith.constant 0 : index
    %c0_106 = arith.constant 0 : index
    %98 = vector.load %arg7[%c3_104, %c0_105, %c0_106] : memref<9x128x128xbf16, #tpu.memory_space<vmem>>, vector<1x128x128xbf16>
    %99 = vector.shape_cast %98 : vector<1x128x128xbf16> to vector<128x128xbf16>
    %cst_107 = arith.constant dense<0.000000e+00> : vector<128x128xf32>
    %100 = tpu.matmul %97, %99, %cst_107 {dimension_numbers = #tpu.dot_dimension_numbers<[1], [0], [0], [1], [0, 0, 1, 1], [], []>} : vector<128x128xbf16>, vector<128x128xbf16>, vector<128x128xf32> -> vector<128x128xf32>
    %101 = arith.addf %94, %100 : vector<128x128xf32>
    %c0_108 = arith.constant 0 : index
    %c1_109 = arith.constant 1 : index
    %c1_110 = arith.constant 1 : index
    %c0_111 = arith.constant 0 : index
    %102 = vector.load %arg10[%c0_108, %c1_109, %c1_110, %c0_111] : memref<2x10x10x128xf32, #tpu.memory_space<vmem>>, vector<2x8x8x128xf32>
    %103 = vector.shape_cast %102 : vector<2x8x8x128xf32> to vector<128x128xf32>
    %104 = arith.truncf %103 : vector<128x128xf32> to vector<128x128xbf16>
    %c4_112 = arith.constant 4 : index
    %c0_113 = arith.constant 0 : index
    %c0_114 = arith.constant 0 : index
    %105 = vector.load %arg7[%c4_112, %c0_113, %c0_114] : memref<9x128x128xbf16, #tpu.memory_space<vmem>>, vector<1x128x128xbf16>
    %106 = vector.shape_cast %105 : vector<1x128x128xbf16> to vector<128x128xbf16>
    %cst_115 = arith.constant dense<0.000000e+00> : vector<128x128xf32>
    %107 = tpu.matmul %104, %106, %cst_115 {dimension_numbers = #tpu.dot_dimension_numbers<[1], [0], [0], [1], [0, 0, 1, 1], [], []>} : vector<128x128xbf16>, vector<128x128xbf16>, vector<128x128xf32> -> vector<128x128xf32>
    %108 = arith.addf %101, %107 : vector<128x128xf32>
    %c0_116 = arith.constant 0 : index
    %c1_117 = arith.constant 1 : index
    %c2_118 = arith.constant 2 : index
    %c0_119 = arith.constant 0 : index
    %109 = vector.load %arg10[%c0_116, %c1_117, %c2_118, %c0_119] : memref<2x10x10x128xf32, #tpu.memory_space<vmem>>, vector<2x8x8x128xf32>
    %110 = vector.shape_cast %109 : vector<2x8x8x128xf32> to vector<128x128xf32>
    %111 = arith.truncf %110 : vector<128x128xf32> to vector<128x128xbf16>
    %c5_120 = arith.constant 5 : index
    %c0_121 = arith.constant 0 : index
    %c0_122 = arith.constant 0 : index
    %112 = vector.load %arg7[%c5_120, %c0_121, %c0_122] : memref<9x128x128xbf16, #tpu.memory_space<vmem>>, vector<1x128x128xbf16>
    %113 = vector.shape_cast %112 : vector<1x128x128xbf16> to vector<128x128xbf16>
    %cst_123 = arith.constant dense<0.000000e+00> : vector<128x128xf32>
    %114 = tpu.matmul %111, %113, %cst_123 {dimension_numbers = #tpu.dot_dimension_numbers<[1], [0], [0], [1], [0, 0, 1, 1], [], []>} : vector<128x128xbf16>, vector<128x128xbf16>, vector<128x128xf32> -> vector<128x128xf32>
    %115 = arith.addf %108, %114 : vector<128x128xf32>
    %c0_124 = arith.constant 0 : index
    %c2_125 = arith.constant 2 : index
    %c0_126 = arith.constant 0 : index
    %c0_127 = arith.constant 0 : index
    %116 = vector.load %arg10[%c0_124, %c2_125, %c0_126, %c0_127] : memref<2x10x10x128xf32, #tpu.memory_space<vmem>>, vector<2x8x8x128xf32>
    %117 = vector.shape_cast %116 : vector<2x8x8x128xf32> to vector<128x128xf32>
    %118 = arith.truncf %117 : vector<128x128xf32> to vector<128x128xbf16>
    %c6_128 = arith.constant 6 : index
    %c0_129 = arith.constant 0 : index
    %c0_130 = arith.constant 0 : index
    %119 = vector.load %arg7[%c6_128, %c0_129, %c0_130] : memref<9x128x128xbf16, #tpu.memory_space<vmem>>, vector<1x128x128xbf16>
    %120 = vector.shape_cast %119 : vector<1x128x128xbf16> to vector<128x128xbf16>
    %cst_131 = arith.constant dense<0.000000e+00> : vector<128x128xf32>
    %121 = tpu.matmul %118, %120, %cst_131 {dimension_numbers = #tpu.dot_dimension_numbers<[1], [0], [0], [1], [0, 0, 1, 1], [], []>} : vector<128x128xbf16>, vector<128x128xbf16>, vector<128x128xf32> -> vector<128x128xf32>
    %122 = arith.addf %115, %121 : vector<128x128xf32>
    %c0_132 = arith.constant 0 : index
    %c2_133 = arith.constant 2 : index
    %c1_134 = arith.constant 1 : index
    %c0_135 = arith.constant 0 : index
    %123 = vector.load %arg10[%c0_132, %c2_133, %c1_134, %c0_135] : memref<2x10x10x128xf32, #tpu.memory_space<vmem>>, vector<2x8x8x128xf32>
    %124 = vector.shape_cast %123 : vector<2x8x8x128xf32> to vector<128x128xf32>
    %125 = arith.truncf %124 : vector<128x128xf32> to vector<128x128xbf16>
    %c7_136 = arith.constant 7 : index
    %c0_137 = arith.constant 0 : index
    %c0_138 = arith.constant 0 : index
    %126 = vector.load %arg7[%c7_136, %c0_137, %c0_138] : memref<9x128x128xbf16, #tpu.memory_space<vmem>>, vector<1x128x128xbf16>
    %127 = vector.shape_cast %126 : vector<1x128x128xbf16> to vector<128x128xbf16>
    %cst_139 = arith.constant dense<0.000000e+00> : vector<128x128xf32>
    %128 = tpu.matmul %125, %127, %cst_139 {dimension_numbers = #tpu.dot_dimension_numbers<[1], [0], [0], [1], [0, 0, 1, 1], [], []>} : vector<128x128xbf16>, vector<128x128xbf16>, vector<128x128xf32> -> vector<128x128xf32>
    %129 = arith.addf %122, %128 : vector<128x128xf32>
    %c0_140 = arith.constant 0 : index
    %c2_141 = arith.constant 2 : index
    %c2_142 = arith.constant 2 : index
    %c0_143 = arith.constant 0 : index
    %130 = vector.load %arg10[%c0_140, %c2_141, %c2_142, %c0_143] : memref<2x10x10x128xf32, #tpu.memory_space<vmem>>, vector<2x8x8x128xf32>
    %131 = vector.shape_cast %130 : vector<2x8x8x128xf32> to vector<128x128xf32>
    %132 = arith.truncf %131 : vector<128x128xf32> to vector<128x128xbf16>
    %c8_144 = arith.constant 8 : index
    %c0_145 = arith.constant 0 : index
    %c0_146 = arith.constant 0 : index
    %133 = vector.load %arg7[%c8_144, %c0_145, %c0_146] : memref<9x128x128xbf16, #tpu.memory_space<vmem>>, vector<1x128x128xbf16>
    %134 = vector.shape_cast %133 : vector<1x128x128xbf16> to vector<128x128xbf16>
    %cst_147 = arith.constant dense<0.000000e+00> : vector<128x128xf32>
    %135 = tpu.matmul %132, %134, %cst_147 {dimension_numbers = #tpu.dot_dimension_numbers<[1], [0], [0], [1], [0, 0, 1, 1], [], []>} : vector<128x128xbf16>, vector<128x128xbf16>, vector<128x128xf32> -> vector<128x128xf32>
    %136 = arith.addf %129, %135 : vector<128x128xf32>
    %c0_148 = arith.constant 0 : index
    %c0_149 = arith.constant 0 : index
    %137 = vector.load %arg8[%c0_148, %c0_149] : memref<1x128xf32, #tpu.memory_space<vmem>>, vector<1x128xf32>
    %138 = vector.broadcast %137 : vector<1x128xf32> to vector<128x128xf32>
    %139 = arith.addf %136, %138 : vector<128x128xf32>
    %cst_150 = arith.constant 0.000000e+00 : f32
    %140 = vector.broadcast %cst_150 : f32 to vector<128x128xf32>
    %141 = arith.maximumf %139, %140 : vector<128x128xf32>
    %142 = vector.shape_cast %141 : vector<128x128xf32> to vector<2x8x8x128xf32>
    %c0_151 = arith.constant 0 : index
    %c0_152 = arith.constant 0 : index
    %c0_153 = arith.constant 0 : index
    %c0_154 = arith.constant 0 : index
    %143 = vector.load %arg9[%c0_151, %c0_152, %c0_153, %c0_154] : memref<2x8x8x128xf32, #tpu.memory_space<vmem>>, vector<2x8x8x128xf32>
    tpu.vector_store %arg9[%c0_151, %c0_152, %c0_153, %c0_154], %142 {strides = array<i32>} : memref<2x8x8x128xf32, #tpu.memory_space<vmem>>, vector<2x8x8x128xf32>,
    return
  }
  func.func @transform_0(%arg0: i32) -> (i32, i32, i32, i32) {
    %c0_i32 = arith.constant 0 : i32
    %c0_i32_0 = arith.constant 0 : i32
    %c0_i32_1 = arith.constant 0 : i32
    %c0_i32_2 = arith.constant 0 : i32
    %c0_i32_3 = arith.constant 0 : i32
    return %c0_i32, %c0_i32_0, %c0_i32_1, %c0_i32_2 : i32, i32, i32, i32
  }
  func.func @transform_1(%arg0: i32) -> (i32, i32, i32, i32) {
    %c0_i32 = arith.constant 0 : i32
    %c0_i32_0 = arith.constant 0 : i32
    %c0_i32_1 = arith.constant 0 : i32
    %c0_i32_2 = arith.constant 0 : i32
    %c0_i32_3 = arith.constant 0 : i32
    return %c0_i32, %c0_i32_0, %c0_i32_1, %c0_i32_2 : i32, i32, i32, i32
  }
  func.func @transform_2(%arg0: i32) -> (i32, i32, i32, i32) {
    %c0_i32 = arith.constant 0 : i32
    %c0_i32_0 = arith.constant 0 : i32
    %c0_i32_1 = arith.constant 0 : i32
    %c0_i32_2 = arith.constant 0 : i32
    %c0_i32_3 = arith.constant 0 : i32
    return %c0_i32, %c0_i32_0, %c0_i32_1, %c0_i32_2 : i32, i32, i32, i32
  }
  func.func @transform_3(%arg0: i32) -> (i32, i32, i32, i32) {
    %c0_i32 = arith.constant 0 : i32
    %c0_i32_0 = arith.constant 0 : i32
    %c0_i32_1 = arith.constant 0 : i32
    %c0_i32_2 = arith.constant 0 : i32
    %c0_i32_3 = arith.constant 0 : i32
    return %c0_i32, %c0_i32_0, %c0_i32_1, %c0_i32_2 : i32, i32, i32, i32
  }
  func.func @transform_4(%arg0: i32) -> (i32, i32, i32) {
    %c0_i32 = arith.constant 0 : i32
    %c0_i32_0 = arith.constant 0 : i32
    %c0_i32_1 = arith.constant 0 : i32
    %c0_i32_2 = arith.constant 0 : i32
    return %c0_i32, %c0_i32_0, %c0_i32_1 : i32, i32, i32
  }
  func.func @transform_5(%arg0: i32) -> (i32, i32) {
    %c0_i32 = arith.constant 0 : i32
    %c0_i32_0 = arith.constant 0 : i32
    %c0_i32_1 = arith.constant 0 : i32
    return %c0_i32, %c0_i32_0 : i32, i32
  }
  func.func @transform_6(%arg0: i32) -> (i32, i32, i32) {
    %c0_i32 = arith.constant 0 : i32
    %c0_i32_0 = arith.constant 0 : i32
    %c0_i32_1 = arith.constant 0 : i32
    %c0_i32_2 = arith.constant 0 : i32
    return %c0_i32, %c0_i32_0, %c0_i32_1 : i32, i32, i32
  }
  func.func @transform_7(%arg0: i32) -> (i32, i32) {
    %c0_i32 = arith.constant 0 : i32
    %c0_i32_0 = arith.constant 0 : i32
    %c0_i32_1 = arith.constant 0 : i32
    return %c0_i32, %c0_i32_0 : i32, i32
  }
  func.func @transform_8(%arg0: i32) -> (i32, i32, i32, i32) {
    %c0_i32 = arith.constant 0 : i32
    %c0_i32_0 = arith.constant 0 : i32
    %c0_i32_1 = arith.constant 0 : i32
    %c0_i32_2 = arith.constant 0 : i32
    %c0_i32_3 = arith.constant 0 : i32
    return %c0_i32, %c0_i32_0, %c0_i32_1, %c0_i32_2 : i32, i32, i32, i32
  }
}

</mosaic_0001>

<llo_original>
// kernel: backbone_forward.1
$region0: #{backbone_forward.1}
  #allocation0 [shape = 'u32[]', space=smem, size = 0x4, offset = 0x4, fixed_abs, tag = 'smem constant byte address 0x4 - core index']
  #allocation1 [shape = 'u32[144,128]{1,0:T(1,128)}', space=vmem, size = 0x12000, scoped, tag = 'internal scratch']
  #allocation2 [shape = 'f32[2,10,10,128]{3,2,1,0:T(8,128)}', space=vmem, size = 0x28000, scoped, tag = 'scratch operand']
  %s0 = inlined_call_operand.vmem [shape: f32[2,9,9,64], index: 0, kind: input, shape index: {}]
  %s1 = inlined_call_operand.vmem [shape: f32[2,9,9,64], index: 1, kind: input, shape index: {}]
  %s2 = inlined_call_operand.vmem [shape: f32[2,9,9,64], index: 2, kind: input, shape index: {}]
  %s3 = inlined_call_operand.vmem [shape: f32[2,9,9,64], index: 3, kind: input, shape index: {}]
  %s4 = inlined_call_operand.vmem [shape: bf16[9,64,128], index: 4, kind: input, shape index: {}]
  %s5 = inlined_call_operand.vmem [shape: f32[1,128], index: 5, kind: input, shape index: {}]
  %s6 = inlined_call_operand.vmem [shape: bf16[9,128,128], index: 6, kind: input, shape index: {}]
  %s7 = inlined_call_operand.vmem [shape: f32[1,128], index: 7, kind: input, shape index: {}]
  %s8 = inlined_call_operand.hbm [shape: f32[2,8,8,128], index: 8, kind: output, shape index: {}]
  %s9 = sld [smem:[#allocation0]]
  $region42: #{backbone_forward.1} parent=0
    _
  %s11 = ssub.s32 1, %s9
  %s12 = scalar_select 0, %s11, %s9
  $region1: #{backbone_forward.1} parent=0
    #allocation3 [shape = 'u8[65536]{0}', space=vmem, size = 0x10000, scoped, tag = 'output window, operand 0, single buffered']
    #allocation4 [shape = 's32[1]{0}', space=sflag, size = 0x4, scoped, tag = 'scoped memory for backbone_forward.1']
    %13 = vsyncpa [#allocation4], 0
    // Predicated region
    $region2: #{backbone_forward.1} parent=1 // pred_check
      _
    $region3: #{backbone_forward.1} parent=1 // pred_check_branch
      %15 = sbr.rel (0) target = $region5
    $region4: #{backbone_forward.1} parent=1 // pred_region
      _
    $region5: #{backbone_forward.1} parent=1 // pred_fallthru
      _
    // Predicated region
    $region6: #{backbone_forward.1} parent=1 // pred_check
      _
    $region7: #{backbone_forward.1} parent=1 // pred_check_branch
      %17 = sbr.rel (0) target = $region9
    $region8: #{backbone_forward.1} parent=1 // pred_region
      _
    $region9: #{backbone_forward.1} parent=1 // pred_fallthru
      _
    // Predicated region
    $region10: #{backbone_forward.1} parent=1 // pred_check
      _
    $region11: #{backbone_forward.1} parent=1 // pred_check_branch
      %19 = sbr.rel (0) target = $region13
    $region12: #{backbone_forward.1} parent=1 // pred_region
      _
    $region13: #{backbone_forward.1} parent=1 // pred_fallthru
      _
    // Predicated region
    $region14: #{backbone_forward.1} parent=1 // pred_check
      _
    $region15: #{backbone_forward.1} parent=1 // pred_check_branch
      %21 = sbr.rel (0) target = $region17
    $region16: #{backbone_forward.1} parent=1 // pred_region
      _
    $region17: #{backbone_forward.1} parent=1 // pred_fallthru
      _
    // Predicated region
    $region18: #{backbone_forward.1} parent=1 // pred_check
      _
    $region19: #{backbone_forward.1} parent=1 // pred_check_branch
      %23 = sbr.rel (0) target = $region21
    $region20: #{backbone_forward.1} parent=1 // pred_region
      _
    $region21: #{backbone_forward.1} parent=1 // pred_fallthru
      _
    // Predicated region
    $region22: #{backbone_forward.1} parent=1 // pred_check
      _
    $region23: #{backbone_forward.1} parent=1 // pred_check_branch
      %25 = sbr.rel (0) target = $region25
    $region24: #{backbone_forward.1} parent=1 // pred_region
      _
    $region25: #{backbone_forward.1} parent=1 // pred_fallthru
      _
    // Predicated region
    $region26: #{backbone_forward.1} parent=1 // pred_check
      _
    $region27: #{backbone_forward.1} parent=1 // pred_check_branch
      %27 = sbr.rel (0) target = $region29
    $region28: #{backbone_forward.1} parent=1 // pred_region
      _
    $region29: #{backbone_forward.1} parent=1 // pred_fallthru
      _
    // Predicated region
    $region30: #{backbone_forward.1} parent=1 // pred_check
      _
    $region31: #{backbone_forward.1} parent=1 // pred_check_branch
      %29 = sbr.rel (0) target = $region33
    $region32: #{backbone_forward.1} parent=1 // pred_region
      _
    $region33: #{backbone_forward.1} parent=1 // pred_fallthru
      _
    %v31 = vld [vmem:[%s0] sm:$0xff]
    %v32 = vld [vmem:[%s0 + $0x10] sm:$0xff]
    %v33 = vld [vmem:[%s0 + $0x20] sm:$0xff]
    %v34 = vld [vmem:[%s0 + $0x30] sm:$0xff]
    %v35 = vld [vmem:[%s0 + $0x40] sm:$0xff]
    %v36 = vld [vmem:[%s0 + $0x50] sm:$0xff]
    %v37 = vld [vmem:[%s0 + $0x60] sm:$0xff]
    %v38 = vld [vmem:[%s0 + $0x70] sm:$0xff]
    %v39 = vld [vmem:[%s0 + $0x90] sm:$0xff]
    %v40 = vld [vmem:[%s0 + $0xa0] sm:$0xff]
    %v41 = vld [vmem:[%s0 + $0xb0] sm:$0xff]
    %v42 = vld [vmem:[%s0 + $0xc0] sm:$0xff]
    %v43 = vld [vmem:[%s0 + $0xd0] sm:$0xff]
    %v44 = vld [vmem:[%s0 + $0xe0] sm:$0xff]
    %v45 = vld [vmem:[%s0 + $0xf0] sm:$0xff]
    %v46 = vld [vmem:[%s0 + $0x100] sm:$0xff]
    %v47 = vpack.c.bf16 %v32, %v31
    %v48 = vpack.c.bf16 %v34, %v33
    %v49 = vpack.c.bf16 %v36, %v35
    %v50 = vpack.c.bf16 %v38, %v37
    %v51 = vpack.c.bf16 %v40, %v39
    %v52 = vpack.c.bf16 %v42, %v41
    %v53 = vpack.c.bf16 %v44, %v43
    %v54 = vpack.c.bf16 %v46, %v45
    %v55 = vld [vmem:[%s4] sm:$0xf]
    %v56 = vld [vmem:[%s4 + $0x4] sm:$0xf]
    %v57 = vld [vmem:[%s4 + $0x8] sm:$0xf]
    %v58 = vld [vmem:[%s4 + $0xc] sm:$0xf]
    %v59 = vld [vmem:[%s4 + $0x10] sm:$0xf]
    %v60 = vld [vmem:[%s4 + $0x14] sm:$0xf]
    %v61 = vld [vmem:[%s4 + $0x18] sm:$0xf]
    %v62 = vld [vmem:[%s4 + $0x1c] sm:$0xf]
    %v63 = vld [vmem:[%s1] sm:$0xff]
    %v64 = vld [vmem:[%s1 + $0x10] sm:$0xff]
    %v65 = vld [vmem:[%s1 + $0x20] sm:$0xff]
    %v66 = vld [vmem:[%s1 + $0x30] sm:$0xff]
    %v67 = vld [vmem:[%s1 + $0x40] sm:$0xff]
    %v68 = vld [vmem:[%s1 + $0x50] sm:$0xff]
    %v69 = vld [vmem:[%s1 + $0x60] sm:$0xff]
    %v70 = vld [vmem:[%s1 + $0x70] sm:$0xff]
    %v71 = vld [vmem:[%s1 + $0x90] sm:$0xff]
    %v72 = vld [vmem:[%s1 + $0xa0] sm:$0xff]
    %v73 = vld [vmem:[%s1 + $0xb0] sm:$0xff]
    %v74 = vld [vmem:[%s1 + $0xc0] sm:$0xff]
    %v75 = vld [vmem:[%s1 + $0xd0] sm:$0xff]
    %v76 = vld [vmem:[%s1 + $0xe0] sm:$0xff]
    %v77 = vld [vmem:[%s1 + $0xf0] sm:$0xff]
    %v78 = vld [vmem:[%s1 + $0x100] sm:$0xff]
    %v79 = vpack.c.bf16 %v64, %v63
    %v80 = vpack.c.bf16 %v66, %v65
    %v81 = vpack.c.bf16 %v68, %v67
    %v82 = vpack.c.bf16 %v70, %v69
    %v83 = vpack.c.bf16 %v72, %v71
    %v84 = vpack.c.bf16 %v74, %v73
    %v85 = vpack.c.bf16 %v76, %v75
    %v86 = vpack.c.bf16 %v78, %v77
    %s87 = scalar_lea.vmem %s4, 32
    %v88 = vld [vmem:[%s87] sm:$0xf]
    %v89 = vld [vmem:[%s87 + $0x4] sm:$0xf]
    %v90 = vld [vmem:[%s87 + $0x8] sm:$0xf]
    %v91 = vld [vmem:[%s87 + $0xc] sm:$0xf]
    %v92 = vld [vmem:[%s87 + $0x10] sm:$0xf]
    %v93 = vld [vmem:[%s87 + $0x14] sm:$0xf]
    %v94 = vld [vmem:[%s87 + $0x18] sm:$0xf]
    %v95 = vld [vmem:[%s87 + $0x1c] sm:$0xf]
    %v104 = vunpack.c.l.b16 %v88
    %v105 = vunpack.c.l.b16 %v89
    %v106 = vunpack.c.l.b16 %v90
    %v107 = vunpack.c.l.b16 %v91
    %v108 = vunpack.c.l.b16 %v92
    %v109 = vunpack.c.l.b16 %v93
    %v110 = vunpack.c.l.b16 %v94
    %v111 = vunpack.c.l.b16 %v95
    %v112 = vpack.c.b16 %v105, %v104
    %v113 = vpack.c.b16 %v107, %v106
    %v114 = vpack.c.b16 %v109, %v108
    %v115 = vpack.c.b16 %v111, %v110
    %vm120 = vcmask 523264
    %v122 = vsel %vm120, %v79, 0
    %v125 = vsel %vm120, %v80, 0
    %v128 = vsel %vm120, %v81, 0
    %v131 = vsel %vm120, %v82, 0
    %v134 = vsel %vm120, %v83, 0
    %v137 = vsel %vm120, %v84, 0
    %v140 = vsel %vm120, %v85, 0
    %v143 = vsel %vm120, %v86, 0
    %145 = vmatprep.subr.bf16.mxu0 0
    %146 = vmatpush1.bf16.msra.mxu0 %v112
    %147 = vmatprep.subr.bf16.mxu0 0
    %148 = vmatpush1.bf16.msra.mxu0 %v113
    %149 = vmatprep.subr.bf16.mxu0 0
    %150 = vmatpush1.bf16.msra.mxu0 %v114
    %151 = vmatprep.subr.bf16.mxu0 0
    %152 = vmatpush1.bf16.msra.mxu0 %v115
    %153 = vmatprep.subr.bf16.mxu0 0
    %154 = vmatpush1.bf16.msra.mxu0 0
    %155 = vmatprep.subr.bf16.mxu0 0
    %156 = vmatpush1.bf16.msra.mxu0 0
    %157 = vmatprep.subr.bf16.mxu0 0
    %158 = vmatpush1.bf16.msra.mxu0 0
    %159 = vmatprep.subr.bf16.mxu0 0
    %160 = vmatpush1.bf16.msra.mxu0 0
    %161 = vmatprep.subr.bf16.mxu0 0
    %162 = vmatpush1.bf16.msra.mxu0 0
    %163 = vmatprep.subr.bf16.mxu0 0
    %164 = vmatpush1.bf16.msra.mxu0 0
    %165 = vmatprep.subr.bf16.mxu0 0
    %166 = vmatpush1.bf16.msra.mxu0 0
    %167 = vmatprep.subr.bf16.mxu0 0
    %168 = vmatpush1.bf16.msra.mxu0 0
    %169 = vmatprep.subr.bf16.mxu0 0
    %170 = vmatpush1.bf16.msra.mxu0 0
    %171 = vmatprep.subr.bf16.mxu0 0
    %172 = vmatpush1.bf16.msra.mxu0 0
    %173 = vmatprep.subr.bf16.mxu0 0
    %174 = vmatpush1.bf16.msra.mxu0 0
    %175 = vmatprep.subr.bf16.mxu0 0
    %176 = vmatpush1.bf16.msra.mxu0 0
    %177 = vmatprep.mubr.bf16.mxu0 0
    %178 = vmatmul.mubr.bf16.gmra.mrb[0].mxu0 %v122
    %v179 = vpop.f32.mrb[0].mxu0
    %v180 = vadd.f32 0.0, %v179
    %v181 = vpop.f32.mrb[0].mxu0
    %v182 = vpop.f32.mrb[0].mxu0
    %v183 = vadd.f32 0.0, %v182
    %v184 = vpop.f32.mrb[0].mxu0
    %185 = vmatprep.mubr.bf16.mxu0 0
    %186 = vmatmul.mubr.bf16.gmra.mrb[0].mxu0 %v125
    %v187 = vpop.f32.mrb[0].mxu0
    %v188 = vadd.f32 0.0, %v187
    %v189 = vpop.f32.mrb[0].mxu0
    %v190 = vpop.f32.mrb[0].mxu0
    %v191 = vadd.f32 0.0, %v190
    %v192 = vpop.f32.mrb[0].mxu0
    %193 = vmatprep.mubr.bf16.mxu0 0
    %194 = vmatmul.mubr.bf16.gmra.mrb[0].mxu0 %v128
    %v195 = vpop.f32.mrb[0].mxu0
    %v196 = vadd.f32 0.0, %v195
    %v197 = vpop.f32.mrb[0].mxu0
    %v198 = vpop.f32.mrb[0].mxu0
    %v199 = vadd.f32 0.0, %v198
    %v200 = vpop.f32.mrb[0].mxu0
    %201 = vmatprep.mubr.bf16.mxu0 0
    %202 = vmatmul.mubr.bf16.gmra.mrb[0].mxu0 %v131
    %v203 = vpop.f32.mrb[0].mxu0
    %v204 = vadd.f32 0.0, %v203
    %v205 = vpop.f32.mrb[0].mxu0
    %v206 = vpop.f32.mrb[0].mxu0
    %v207 = vadd.f32 0.0, %v206
    %v208 = vpop.f32.mrb[0].mxu0
    %209 = vmatprep.mubr.bf16.mxu0 0
    %210 = vmatmul.mubr.bf16.gmra.mrb[0].mxu0 %v134
    %v211 = vpop.f32.mrb[0].mxu0
    %v212 = vadd.f32 0.0, %v211
    %v213 = vpop.f32.mrb[0].mxu0
    %v214 = vpop.f32.mrb[0].mxu0
    %v215 = vadd.f32 0.0, %v214
    %v216 = vpop.f32.mrb[0].mxu0
    %217 = vmatprep.mubr.bf16.mxu0 0
    %218 = vmatmul.mubr.bf16.gmra.mrb[0].mxu0 %v137
    %v219 = vpop.f32.mrb[0].mxu0
    %v220 = vadd.f32 0.0, %v219
    %v221 = vpop.f32.mrb[0].mxu0
    %v222 = vpop.f32.mrb[0].mxu0
    %v223 = vadd.f32 0.0, %v222
    %v224 = vpop.f32.mrb[0].mxu0
    %225 = vmatprep.mubr.bf16.mxu0 0
    %226 = vmatmul.mubr.bf16.gmra.mrb[0].mxu0 %v140
    %v227 = vpop.f32.mrb[0].mxu0
    %v228 = vadd.f32 0.0, %v227
    %v229 = vpop.f32.mrb[0].mxu0
    %v230 = vpop.f32.mrb[0].mxu0
    %v231 = vadd.f32 0.0, %v230
    %v232 = vpop.f32.mrb[0].mxu0
    %233 = vmatprep.mubr.bf16.mxu0 0
    %234 = vmatmul.mubr.bf16.gmra.mrb[0].mxu0 %v143
    %v235 = vpop.f32.mrb[0].mxu0
    %v236 = vadd.f32 0.0, %v235
    %v237 = vpop.f32.mrb[0].mxu0
    %v238 = vpop.f32.mrb[0].mxu0
    %v239 = vadd.f32 0.0, %v238
    %v240 = vpop.f32.mrb[0].mxu0
    %241 = vdwg.mxu0
    %v250 = vunpack.c.l.b16 %v55
    %v251 = vunpack.c.l.b16 %v56
    %v252 = vunpack.c.l.b16 %v57
    %v253 = vunpack.c.l.b16 %v58
    %v254 = vunpack.c.l.b16 %v59
    %v255 = vunpack.c.l.b16 %v60
    %v256 = vunpack.c.l.b16 %v61
    %v257 = vunpack.c.l.b16 %v62
    %v258 = vpack.c.b16 %v251, %v250
    %v259 = vpack.c.b16 %v253, %v252
    %v260 = vpack.c.b16 %v255, %v254
    %v261 = vpack.c.b16 %v257, %v256
    %v267 = vsel %vm120, %v47, 0
    %v270 = vsel %vm120, %v48, 0
    %v273 = vsel %vm120, %v49, 0
    %v276 = vsel %vm120, %v50, 0
    %v279 = vsel %vm120, %v51, 0
    %v282 = vsel %vm120, %v52, 0
    %v285 = vsel %vm120, %v53, 0
    %v288 = vsel %vm120, %v54, 0
    %290 = vmatprep.subr.bf16.mxu0 0
    %291 = vmatpush1.bf16.msra.mxu0 %v258
    %292 = vmatprep.subr.bf16.mxu0 0
    %293 = vmatpush1.bf16.msra.mxu0 %v259
    %294 = vmatprep.subr.bf16.mxu0 0
    %295 = vmatpush1.bf16.msra.mxu0 %v260
    %296 = vmatprep.subr.bf16.mxu0 0
    %297 = vmatpush1.bf16.msra.mxu0 %v261
    %298 = vmatprep.subr.bf16.mxu0 0
    %299 = vmatpush1.bf16.msra.mxu0 0
    %300 = vmatprep.subr.bf16.mxu0 0
    %301 = vmatpush1.bf16.msra.mxu0 0
    %302 = vmatprep.subr.bf16.mxu0 0
    %303 = vmatpush1.bf16.msra.mxu0 0
    %304 = vmatprep.subr.bf16.mxu0 0
    %305 = vmatpush1.bf16.msra.mxu0 0
    %306 = vmatprep.subr.bf16.mxu0 0
    %307 = vmatpush1.bf16.msra.mxu0 0
    %308 = vmatprep.subr.bf16.mxu0 0
    %309 = vmatpush1.bf16.msra.mxu0 0
    %310 = vmatprep.subr.bf16.mxu0 0
    %311 = vmatpush1.bf16.msra.mxu0 0
    %312 = vmatprep.subr.bf16.mxu0 0
    %313 = vmatpush1.bf16.msra.mxu0 0
    %314 = vmatprep.subr.bf16.mxu0 0
    %315 = vmatpush1.bf16.msra.mxu0 0
    %316 = vmatprep.subr.bf16.mxu0 0
    %317 = vmatpush1.bf16.msra.mxu0 0
    %318 = vmatprep.subr.bf16.mxu0 0
    %319 = vmatpush1.bf16.msra.mxu0 0
    %320 = vmatprep.subr.bf16.mxu0 0
    %321 = vmatpush1.bf16.msra.mxu0 0
    %322 = vmatprep.mubr.bf16.mxu0 0
    %323 = vmatmul.mubr.bf16.gmra.mrb[0].mxu0 %v267
    %v324 = vpop.f32.mrb[0].mxu0
    %v325 = vadd.f32 %v180, %v324
    %v326 = vpop.f32.mrb[0].mxu0
    %v327 = vpop.f32.mrb[0].mxu0
    %v328 = vadd.f32 %v183, %v327
    %v329 = vpop.f32.mrb[0].mxu0
    %330 = vmatprep.mubr.bf16.mxu0 0
    %331 = vmatmul.mubr.bf16.gmra.mrb[0].mxu0 %v270
    %v332 = vpop.f32.mrb[0].mxu0
    %v333 = vadd.f32 %v188, %v332
    %v334 = vpop.f32.mrb[0].mxu0
    %v335 = vpop.f32.mrb[0].mxu0
    %v336 = vadd.f32 %v191, %v335
    %v337 = vpop.f32.mrb[0].mxu0
    %338 = vmatprep.mubr.bf16.mxu0 0
    %339 = vmatmul.mubr.bf16.gmra.mrb[0].mxu0 %v273
    %v340 = vpop.f32.mrb[0].mxu0
    %v341 = vadd.f32 %v196, %v340
    %v342 = vpop.f32.mrb[0].mxu0
    %v343 = vpop.f32.mrb[0].mxu0
    %v344 = vadd.f32 %v199, %v343
    %v345 = vpop.f32.mrb[0].mxu0
    %346 = vmatprep.mubr.bf16.mxu0 0
    %347 = vmatmul.mubr.bf16.gmra.mrb[0].mxu0 %v276
    %v348 = vpop.f32.mrb[0].mxu0
    %v349 = vadd.f32 %v204, %v348
    %v350 = vpop.f32.mrb[0].mxu0
    %v351 = vpop.f32.mrb[0].mxu0
    %v352 = vadd.f32 %v207, %v351
    %v353 = vpop.f32.mrb[0].mxu0
    %354 = vmatprep.mubr.bf16.mxu0 0
    %355 = vmatmul.mubr.bf16.gmra.mrb[0].mxu0 %v279
    %v356 = vpop.f32.mrb[0].mxu0
    %v357 = vadd.f32 %v212, %v356
    %v358 = vpop.f32.mrb[0].mxu0
    %v359 = vpop.f32.mrb[0].mxu0
    %v360 = vadd.f32 %v215, %v359
    %v361 = vpop.f32.mrb[0].mxu0
    %362 = vmatprep.mubr.bf16.mxu0 0
    %363 = vmatmul.mubr.bf16.gmra.mrb[0].mxu0 %v282
    %v364 = vpop.f32.mrb[0].mxu0
    %v365 = vadd.f32 %v220, %v364
    %v366 = vpop.f32.mrb[0].mxu0
    %v367 = vpop.f32.mrb[0].mxu0
    %v368 = vadd.f32 %v223, %v367
    %v369 = vpop.f32.mrb[0].mxu0
    %370 = vmatprep.mubr.bf16.mxu0 0
    %371 = vmatmul.mubr.bf16.gmra.mrb[0].mxu0 %v285
    %v372 = vpop.f32.mrb[0].mxu0
    %v373 = vadd.f32 %v228, %v372
    %v374 = vpop.f32.mrb[0].mxu0
    %v375 = vpop.f32.mrb[0].mxu0
    %v376 = vadd.f32 %v231, %v375
    %v377 = vpop.f32.mrb[0].mxu0
    %378 = vmatprep.mubr.bf16.mxu0 0
    %379 = vmatmul.mubr.bf16.gmra.mrb[0].mxu0 %v288
    %v380 = vpop.f32.mrb[0].mxu0
    %v381 = vadd.f32 %v236, %v380
    %v382 = vpop.f32.mrb[0].mxu0
    %v383 = vpop.f32.mrb[0].mxu0
    %v384 = vadd.f32 %v239, %v383
    %v385 = vpop.f32.mrb[0].mxu0
    %386 = vdwg.mxu0
    %v387 = vld [vmem:[%s0 + $0x1] sm:$0xff]
    %v388 = vld [vmem:[%s0 + $0x11] sm:$0xff]
    %v389 = vld [vmem:[%s0 + $0x21] sm:$0xff]
    %v390 = vld [vmem:[%s0 + $0x31] sm:$0xff]
    %v391 = vld [vmem:[%s0 + $0x41] sm:$0xff]
    %v392 = vld [vmem:[%s0 + $0x51] sm:$0xff]
    %v393 = vld [vmem:[%s0 + $0x61] sm:$0xff]
    %v394 = vld [vmem:[%s0 + $0x71] sm:$0xff]
    %v395 = vld [vmem:[%s0 + $0x91] sm:$0xff]
    %v396 = vld [vmem:[%s0 + $0xa1] sm:$0xff]
    %v397 = vld [vmem:[%s0 + $0xb1] sm:$0xff]
    %v398 = vld [vmem:[%s0 + $0xc1] sm:$0xff]
    %v399 = vld [vmem:[%s0 + $0xd1] sm:$0xff]
    %v400 = vld [vmem:[%s0 + $0xe1] sm:$0xff]
    %v401 = vld [vmem:[%s0 + $0xf1] sm:$0xff]
    %v402 = vld [vmem:[%s0 + $0x101] sm:$0xff]
    %v403 = vpack.c.bf16 %v388, %v387
    %v404 = vpack.c.bf16 %v390, %v389
    %v405 = vpack.c.bf16 %v392, %v391
    %v406 = vpack.c.bf16 %v394, %v393
    %v407 = vpack.c.bf16 %v396, %v395
    %v408 = vpack.c.bf16 %v398, %v397
    %v409 = vpack.c.bf16 %v400, %v399
    %v410 = vpack.c.bf16 %v402, %v401
    %s411 = scalar_lea.vmem %s4, 64
    %v412 = vld [vmem:[%s411] sm:$0xf]
    %v413 = vld [vmem:[%s411 + $0x4] sm:$0xf]
    %v414 = vld [vmem:[%s411 + $0x8] sm:$0xf]
    %v415 = vld [vmem:[%s411 + $0xc] sm:$0xf]
    %v416 = vld [vmem:[%s411 + $0x10] sm:$0xf]
    %v417 = vld [vmem:[%s411 + $0x14] sm:$0xf]
    %v418 = vld [vmem:[%s411 + $0x18] sm:$0xf]
    %v419 = vld [vmem:[%s411 + $0x1c] sm:$0xf]
    %v428 = vunpack.c.l.b16 %v412
    %v429 = vunpack.c.l.b16 %v413
    %v430 = vunpack.c.l.b16 %v414
    %v431 = vunpack.c.l.b16 %v415
    %v432 = vunpack.c.l.b16 %v416
    %v433 = vunpack.c.l.b16 %v417
    %v434 = vunpack.c.l.b16 %v418
    %v435 = vunpack.c.l.b16 %v419
    %v436 = vpack.c.b16 %v429, %v428
    %v437 = vpack.c.b16 %v431, %v430
    %v438 = vpack.c.b16 %v433, %v432
    %v439 = vpack.c.b16 %v435, %v434
    %v445 = vsel %vm120, %v403, 0
    %v448 = vsel %vm120, %v404, 0
    %v451 = vsel %vm120, %v405, 0
    %v454 = vsel %vm120, %v406, 0
    %v457 = vsel %vm120, %v407, 0
    %v460 = vsel %vm120, %v408, 0
    %v463 = vsel %vm120, %v409, 0
    %v466 = vsel %vm120, %v410, 0
    %468 = vmatprep.subr.bf16.mxu0 0
    %469 = vmatpush1.bf16.msra.mxu0 %v436
    %470 = vmatprep.subr.bf16.mxu0 0
    %471 = vmatpush1.bf16.msra.mxu0 %v437
    %472 = vmatprep.subr.bf16.mxu0 0
    %473 = vmatpush1.bf16.msra.mxu0 %v438
    %474 = vmatprep.subr.bf16.mxu0 0
    %475 = vmatpush1.bf16.msra.mxu0 %v439
    %476 = vmatprep.subr.bf16.mxu0 0
    %477 = vmatpush1.bf16.msra.mxu0 0
    %478 = vmatprep.subr.bf16.mxu0 0
    %479 = vmatpush1.bf16.msra.mxu0 0
    %480 = vmatprep.subr.bf16.mxu0 0
    %481 = vmatpush1.bf16.msra.mxu0 0
    %482 = vmatprep.subr.bf16.mxu0 0
    %483 = vmatpush1.bf16.msra.mxu0 0
    %484 = vmatprep.subr.bf16.mxu0 0
    %485 = vmatpush1.bf16.msra.mxu0 0
    %486 = vmatprep.subr.bf16.mxu0 0
    %487 = vmatpush1.bf16.msra.mxu0 0
    %488 = vmatprep.subr.bf16.mxu0 0
    %489 = vmatpush1.bf16.msra.mxu0 0
    %490 = vmatprep.subr.bf16.mxu0 0
    %491 = vmatpush1.bf16.msra.mxu0 0
    %492 = vmatprep.subr.bf16.mxu0 0
    %493 = vmatpush1.bf16.msra.mxu0 0
    %494 = vmatprep.subr.bf16.mxu0 0
    %495 = vmatpush1.bf16.msra.mxu0 0
    %496 = vmatprep.subr.bf16.mxu0 0
    %497 = vmatpush1.bf16.msra.mxu0 0
    %498 = vmatprep.subr.bf16.mxu0 0
    %499 = vmatpush1.bf16.msra.mxu0 0
    %500 = vmatprep.mubr.bf16.mxu0 0
    %501 = vmatmul.mubr.bf16.gmra.mrb[0].mxu0 %v445
    %v502 = vpop.f32.mrb[0].mxu0
    %v503 = vadd.f32 0.0, %v502
    %v504 = vpop.f32.mrb[0].mxu0
    %v505 = vpop.f32.mrb[0].mxu0
    %v506 = vadd.f32 0.0, %v505
    %v507 = vpop.f32.mrb[0].mxu0
    %508 = vmatprep.mubr.bf16.mxu0 0
    %509 = vmatmul.mubr.bf16.gmra.mrb[0].mxu0 %v448
    %v510 = vpop.f32.mrb[0].mxu0
    %v511 = vadd.f32 0.0, %v510
    %v512 = vpop.f32.mrb[0].mxu0
    %v513 = vpop.f32.mrb[0].mxu0
    %v514 = vadd.f32 0.0, %v513
    %v515 = vpop.f32.mrb[0].mxu0
    %516 = vmatprep.mubr.bf16.mxu0 0
    %517 = vmatmul.mubr.bf16.gmra.mrb[0].mxu0 %v451
    %v518 = vpop.f32.mrb[0].mxu0
    %v519 = vadd.f32 0.0, %v518
    %v520 = vpop.f32.mrb[0].mxu0
    %v521 = vpop.f32.mrb[0].mxu0
    %v522 = vadd.f32 0.0, %v521
    %v523 = vpop.f32.mrb[0].mxu0
    %524 = vmatprep.mubr.bf16.mxu0 0
    %525 = vmatmul.mubr.bf16.gmra.mrb[0].mxu0 %v454
    %v526 = vpop.f32.mrb[0].mxu0
    %v527 = vadd.f32 0.0, %v526
    %v528 = vpop.f32.mrb[0].mxu0
    %v529 = vpop.f32.mrb[0].mxu0
    %v530 = vadd.f32 0.0, %v529
    %v531 = vpop.f32.mrb[0].mxu0
    %532 = vmatprep.mubr.bf16.mxu0 0
    %533 = vmatmul.mubr.bf16.gmra.mrb[0].mxu0 %v457
    %v534 = vpop.f32.mrb[0].mxu0
    %v535 = vadd.f32 0.0, %v534
    %v536 = vpop.f32.mrb[0].mxu0
    %v537 = vpop.f32.mrb[0].mxu0
    %v538 = vadd.f32 0.0, %v537
    %v539 = vpop.f32.mrb[0].mxu0
    %540 = vmatprep.mubr.bf16.mxu0 0
    %541 = vmatmul.mubr.bf16.gmra.mrb[0].mxu0 %v460
    %v542 = vpop.f32.mrb[0].mxu0
    %v543 = vadd.f32 0.0, %v542
    %v544 = vpop.f32.mrb[0].mxu0
    %v545 = vpop.f32.mrb[0].mxu0
    %v546 = vadd.f32 0.0, %v545
    %v547 = vpop.f32.mrb[0].mxu0
    %548 = vmatprep.mubr.bf16.mxu0 0
    %549 = vmatmul.mubr.bf16.gmra.mrb[0].mxu0 %v463
    %v550 = vpop.f32.mrb[0].mxu0
    %v551 = vadd.f32 0.0, %v550
    %v552 = vpop.f32.mrb[0].mxu0
    %v553 = vpop.f32.mrb[0].mxu0
    %v554 = vadd.f32 0.0, %v553
    %v555 = vpop.f32.mrb[0].mxu0
    %556 = vmatprep.mubr.bf16.mxu0 0
    %557 = vmatmul.mubr.bf16.gmra.mrb[0].mxu0 %v466
    %v558 = vpop.f32.mrb[0].mxu0
    %v559 = vadd.f32 0.0, %v558
    %v560 = vpop.f32.mrb[0].mxu0
    %v561 = vpop.f32.mrb[0].mxu0
    %v562 = vadd.f32 0.0, %v561
    %v563 = vpop.f32.mrb[0].mxu0
    %564 = vdwg.mxu0
    %v565 = vadd.f32 %v325, %v503
    %v566 = vadd.f32 %v328, %v506
    %v567 = vadd.f32 %v333, %v511
    %v568 = vadd.f32 %v336, %v514
    %v569 = vadd.f32 %v341, %v519
    %v570 = vadd.f32 %v344, %v522
    %v571 = vadd.f32 %v349, %v527
    %v572 = vadd.f32 %v352, %v530
    %v573 = vadd.f32 %v357, %v535
    %v574 = vadd.f32 %v360, %v538
    %v575 = vadd.f32 %v365, %v543
    %v576 = vadd.f32 %v368, %v546
    %v577 = vadd.f32 %v373, %v551
    %v578 = vadd.f32 %v376, %v554
    %v579 = vadd.f32 %v381, %v559
    %v580 = vadd.f32 %v384, %v562
    %v581 = vld [vmem:[%s2] sm:$0xff]
    %v582 = vld [vmem:[%s2 + $0x10] sm:$0xff]
    %v583 = vld [vmem:[%s2 + $0x20] sm:$0xff]
    %v584 = vld [vmem:[%s2 + $0x30] sm:$0xff]
    %v585 = vld [vmem:[%s2 + $0x40] sm:$0xff]
    %v586 = vld [vmem:[%s2 + $0x50] sm:$0xff]
    %v587 = vld [vmem:[%s2 + $0x60] sm:$0xff]
    %v588 = vld [vmem:[%s2 + $0x70] sm:$0xff]
    %v589 = vld [vmem:[%s2 + $0x90] sm:$0xff]
    %v590 = vld [vmem:[%s2 + $0xa0] sm:$0xff]
    %v591 = vld [vmem:[%s2 + $0xb0] sm:$0xff]
    %v592 = vld [vmem:[%s2 + $0xc0] sm:$0xff]
    %v593 = vld [vmem:[%s2 + $0xd0] sm:$0xff]
    %v594 = vld [vmem:[%s2 + $0xe0] sm:$0xff]
    %v595 = vld [vmem:[%s2 + $0xf0] sm:$0xff]
    %v596 = vld [vmem:[%s2 + $0x100] sm:$0xff]
    %v597 = vpack.c.bf16 %v582, %v581
    %v598 = vpack.c.bf16 %v584, %v583
    %v599 = vpack.c.bf16 %v586, %v585
    %v600 = vpack.c.bf16 %v588, %v587
    %v601 = vpack.c.bf16 %v590, %v589
    %v602 = vpack.c.bf16 %v592, %v591
    %v603 = vpack.c.bf16 %v594, %v593
    %v604 = vpack.c.bf16 %v596, %v595
    %s605 = scalar_lea.vmem %s4, 96
    %v606 = vld [vmem:[%s605] sm:$0xf]
    %v607 = vld [vmem:[%s605 + $0x4] sm:$0xf]
    %v608 = vld [vmem:[%s605 + $0x8] sm:$0xf]
    %v609 = vld [vmem:[%s605 + $0xc] sm:$0xf]
    %v610 = vld [vmem:[%s605 + $0x10] sm:$0xf]
    %v611 = vld [vmem:[%s605 + $0x14] sm:$0xf]
    %v612 = vld [vmem:[%s605 + $0x18] sm:$0xf]
    %v613 = vld [vmem:[%s605 + $0x1c] sm:$0xf]
    %v622 = vunpack.c.l.b16 %v606
    %v623 = vunpack.c.l.b16 %v607
    %v624 = vunpack.c.l.b16 %v608
    %v625 = vunpack.c.l.b16 %v609
    %v626 = vunpack.c.l.b16 %v610
    %v627 = vunpack.c.l.b16 %v611
    %v628 = vunpack.c.l.b16 %v612
    %v629 = vunpack.c.l.b16 %v613
    %v630 = vpack.c.b16 %v623, %v622
    %v631 = vpack.c.b16 %v625, %v624
    %v632 = vpack.c.b16 %v627, %v626
    %v633 = vpack.c.b16 %v629, %v628
    %v639 = vsel %vm120, %v597, 0
    %v642 = vsel %vm120, %v598, 0
    %v645 = vsel %vm120, %v599, 0
    %v648 = vsel %vm120, %v600, 0
    %v651 = vsel %vm120, %v601, 0
    %v654 = vsel %vm120, %v602, 0
    %v657 = vsel %vm120, %v603, 0
    %v660 = vsel %vm120, %v604, 0
    %662 = vmatprep.subr.bf16.mxu0 0
    %663 = vmatpush1.bf16.msra.mxu0 %v630
    %664 = vmatprep.subr.bf16.mxu0 0
    %665 = vmatpush1.bf16.msra.mxu0 %v631
    %666 = vmatprep.subr.bf16.mxu0 0
    %667 = vmatpush1.bf16.msra.mxu0 %v632
    %668 = vmatprep.subr.bf16.mxu0 0
    %669 = vmatpush1.bf16.msra.mxu0 %v633
    %670 = vmatprep.subr.bf16.mxu0 0
    %671 = vmatpush1.bf16.msra.mxu0 0
    %672 = vmatprep.subr.bf16.mxu0 0
    %673 = vmatpush1.bf16.msra.mxu0 0
    %674 = vmatprep.subr.bf16.mxu0 0
    %675 = vmatpush1.bf16.msra.mxu0 0
    %676 = vmatprep.subr.bf16.mxu0 0
    %677 = vmatpush1.bf16.msra.mxu0 0
    %678 = vmatprep.subr.bf16.mxu0 0
    %679 = vmatpush1.bf16.msra.mxu0 0
    %680 = vmatprep.subr.bf16.mxu0 0
    %681 = vmatpush1.bf16.msra.mxu0 0
    %682 = vmatprep.subr.bf16.mxu0 0
    %683 = vmatpush1.bf16.msra.mxu0 0
    %684 = vmatprep.subr.bf16.mxu0 0
    %685 = vmatpush1.bf16.msra.mxu0 0
    %686 = vmatprep.subr.bf16.mxu0 0
    %687 = vmatpush1.bf16.msra.mxu0 0
    %688 = vmatprep.subr.bf16.mxu0 0
    %689 = vmatpush1.bf16.msra.mxu0 0
    %690 = vmatprep.subr.bf16.mxu0 0
    %691 = vmatpush1.bf16.msra.mxu0 0
    %692 = vmatprep.subr.bf16.mxu0 0
    %693 = vmatpush1.bf16.msra.mxu0 0
    %694 = vmatprep.mubr.bf16.mxu0 0
    %695 = vmatmul.mubr.bf16.gmra.mrb[0].mxu0 %v639
    %v696 = vpop.f32.mrb[0].mxu0
    %v697 = vadd.f32 0.0, %v696
    %v698 = vpop.f32.mrb[0].mxu0
    %v699 = vpop.f32.mrb[0].mxu0
    %v700 = vadd.f32 0.0, %v699
    %v701 = vpop.f32.mrb[0].mxu0
    %702 = vmatprep.mubr.bf16.mxu0 0
    %703 = vmatmul.mubr.bf16.gmra.mrb[0].mxu0 %v642
    %v704 = vpop.f32.mrb[0].mxu0
    %v705 = vadd.f32 0.0, %v704
    %v706 = vpop.f32.mrb[0].mxu0
    %v707 = vpop.f32.mrb[0].mxu0
    %v708 = vadd.f32 0.0, %v707
    %v709 = vpop.f32.mrb[0].mxu0
    %710 = vmatprep.mubr.bf16.mxu0 0
    %711 = vmatmul.mubr.bf16.gmra.mrb[0].mxu0 %v645
    %v712 = vpop.f32.mrb[0].mxu0
    %v713 = vadd.f32 0.0, %v712
    %v714 = vpop.f32.mrb[0].mxu0
    %v715 = vpop.f32.mrb[0].mxu0
    %v716 = vadd.f32 0.0, %v715
    %v717 = vpop.f32.mrb[0].mxu0
    %718 = vmatprep.mubr.bf16.mxu0 0
    %719 = vmatmul.mubr.bf16.gmra.mrb[0].mxu0 %v648
    %v720 = vpop.f32.mrb[0].mxu0
    %v721 = vadd.f32 0.0, %v720
    %v722 = vpop.f32.mrb[0].mxu0
    %v723 = vpop.f32.mrb[0].mxu0
    %v724 = vadd.f32 0.0, %v723
    %v725 = vpop.f32.mrb[0].mxu0
    %726 = vmatprep.mubr.bf16.mxu0 0
    %727 = vmatmul.mubr.bf16.gmra.mrb[0].mxu0 %v651
    %v728 = vpop.f32.mrb[0].mxu0
    %v729 = vadd.f32 0.0, %v728
    %v730 = vpop.f32.mrb[0].mxu0
    %v731 = vpop.f32.mrb[0].mxu0
    %v732 = vadd.f32 0.0, %v731
    %v733 = vpop.f32.mrb[0].mxu0
    %734 = vmatprep.mubr.bf16.mxu0 0
    %735 = vmatmul.mubr.bf16.gmra.mrb[0].mxu0 %v654
    %v736 = vpop.f32.mrb[0].mxu0
    %v737 = vadd.f32 0.0, %v736
    %v738 = vpop.f32.mrb[0].mxu0
    %v739 = vpop.f32.mrb[0].mxu0
    %v740 = vadd.f32 0.0, %v739
    %v741 = vpop.f32.mrb[0].mxu0
    %742 = vmatprep.mubr.bf16.mxu0 0
    %743 = vmatmul.mubr.bf16.gmra.mrb[0].mxu0 %v657
    %v744 = vpop.f32.mrb[0].mxu0
    %v745 = vadd.f32 0.0, %v744
    %v746 = vpop.f32.mrb[0].mxu0
    %v747 = vpop.f32.mrb[0].mxu0
    %v748 = vadd.f32 0.0, %v747
    %v749 = vpop.f32.mrb[0].mxu0
    %750 = vmatprep.mubr.bf16.mxu0 0
    %751 = vmatmul.mubr.bf16.gmra.mrb[0].mxu0 %v660
    %v752 = vpop.f32.mrb[0].mxu0
    %v753 = vadd.f32 0.0, %v752
    %v754 = vpop.f32.mrb[0].mxu0
    %v755 = vpop.f32.mrb[0].mxu0
    %v756 = vadd.f32 0.0, %v755
    %v757 = vpop.f32.mrb[0].mxu0
    %758 = vdwg.mxu0
    %v759 = vadd.f32 %v565, %v697
    %v760 = vadd.f32 %v566, %v700
    %v761 = vadd.f32 %v567, %v705
    %v762 = vadd.f32 %v568, %v708
    %v763 = vadd.f32 %v569, %v713
    %v764 = vadd.f32 %v570, %v716
    %v765 = vadd.f32 %v571, %v721
    %v766 = vadd.f32 %v572, %v724
    %v767 = vadd.f32 %v573, %v729
    %v768 = vadd.f32 %v574, %v732
    %v769 = vadd.f32 %v575, %v737
    %v770 = vadd.f32 %v576, %v740
    %v771 = vadd.f32 %v577, %v745
    %v772 = vadd.f32 %v578, %v748
    %v773 = vadd.f32 %v579, %v753
    %v774 = vadd.f32 %v580, %v756
    %v775 = vld [vmem:[%s3] sm:$0xff]
    %v776 = vld [vmem:[%s3 + $0x10] sm:$0xff]
    %v777 = vld [vmem:[%s3 + $0x20] sm:$0xff]
    %v778 = vld [vmem:[%s3 + $0x30] sm:$0xff]
    %v779 = vld [vmem:[%s3 + $0x40] sm:$0xff]
    %v780 = vld [vmem:[%s3 + $0x50] sm:$0xff]
    %v781 = vld [vmem:[%s3 + $0x60] sm:$0xff]
    %v782 = vld [vmem:[%s3 + $0x70] sm:$0xff]
    %v783 = vld [vmem:[%s3 + $0x90] sm:$0xff]
    %v784 = vld [vmem:[%s3 + $0xa0] sm:$0xff]
    %v785 = vld [vmem:[%s3 + $0xb0] sm:$0xff]
    %v786 = vld [vmem:[%s3 + $0xc0] sm:$0xff]
    %v787 = vld [vmem:[%s3 + $0xd0] sm:$0xff]
    %v788 = vld [vmem:[%s3 + $0xe0] sm:$0xff]
    %v789 = vld [vmem:[%s3 + $0xf0] sm:$0xff]
    %v790 = vld [vmem:[%s3 + $0x100] sm:$0xff]
    %v791 = vpack.c.bf16 %v776, %v775
    %v792 = vpack.c.bf16 %v778, %v777
    %v793 = vpack.c.bf16 %v780, %v779
    %v794 = vpack.c.bf16 %v782, %v781
    %v795 = vpack.c.bf16 %v784, %v783
    %v796 = vpack.c.bf16 %v786, %v785
    %v797 = vpack.c.bf16 %v788, %v787
    %v798 = vpack.c.bf16 %v790, %v789
    %s799 = scalar_lea.vmem %s4, 128
    %v800 = vld [vmem:[%s799] sm:$0xf]
    %v801 = vld [vmem:[%s799 + $0x4] sm:$0xf]
    %v802 = vld [vmem:[%s799 + $0x8] sm:$0xf]
    %v803 = vld [vmem:[%s799 + $0xc] sm:$0xf]
    %v804 = vld [vmem:[%s799 + $0x10] sm:$0xf]
    %v805 = vld [vmem:[%s799 + $0x14] sm:$0xf]
    %v806 = vld [vmem:[%s799 + $0x18] sm:$0xf]
    %v807 = vld [vmem:[%s799 + $0x1c] sm:$0xf]
    %v816 = vunpack.c.l.b16 %v800
    %v817 = vunpack.c.l.b16 %v801
    %v818 = vunpack.c.l.b16 %v802
    %v819 = vunpack.c.l.b16 %v803
    %v820 = vunpack.c.l.b16 %v804
    %v821 = vunpack.c.l.b16 %v805
    %v822 = vunpack.c.l.b16 %v806
    %v823 = vunpack.c.l.b16 %v807
    %v824 = vpack.c.b16 %v817, %v816
    %v825 = vpack.c.b16 %v819, %v818
    %v826 = vpack.c.b16 %v821, %v820
    %v827 = vpack.c.b16 %v823, %v822
    %v833 = vsel %vm120, %v791, 0
    %v836 = vsel %vm120, %v792, 0
    %v839 = vsel %vm120, %v793, 0
    %v842 = vsel %vm120, %v794, 0
    %v845 = vsel %vm120, %v795, 0
    %v848 = vsel %vm120, %v796, 0
    %v851 = vsel %vm120, %v797, 0
    %v854 = vsel %vm120, %v798, 0
    %856 = vmatprep.subr.bf16.mxu0 0
    %857 = vmatpush1.bf16.msra.mxu0 %v824
    %858 = vmatprep.subr.bf16.mxu0 0
    %859 = vmatpush1.bf16.msra.mxu0 %v825
    %860 = vmatprep.subr.bf16.mxu0 0
    %861 = vmatpush1.bf16.msra.mxu0 %v826
    %862 = vmatprep.subr.bf16.mxu0 0
    %863 = vmatpush1.bf16.msra.mxu0 %v827
    %864 = vmatprep.subr.bf16.mxu0 0
    %865 = vmatpush1.bf16.msra.mxu0 0
    %866 = vmatprep.subr.bf16.mxu0 0
    %867 = vmatpush1.bf16.msra.mxu0 0
    %868 = vmatprep.subr.bf16.mxu0 0
    %869 = vmatpush1.bf16.msra.mxu0 0
    %870 = vmatprep.subr.bf16.mxu0 0
    %871 = vmatpush1.bf16.msra.mxu0 0
    %872 = vmatprep.subr.bf16.mxu0 0
    %873 = vmatpush1.bf16.msra.mxu0 0
    %874 = vmatprep.subr.bf16.mxu0 0
    %875 = vmatpush1.bf16.msra.mxu0 0
    %876 = vmatprep.subr.bf16.mxu0 0
    %877 = vmatpush1.bf16.msra.mxu0 0
    %878 = vmatprep.subr.bf16.mxu0 0
    %879 = vmatpush1.bf16.msra.mxu0 0
    %880 = vmatprep.subr.bf16.mxu0 0
    %881 = vmatpush1.bf16.msra.mxu0 0
    %882 = vmatprep.subr.bf16.mxu0 0
    %883 = vmatpush1.bf16.msra.mxu0 0
    %884 = vmatprep.subr.bf16.mxu0 0
    %885 = vmatpush1.bf16.msra.mxu0 0
    %886 = vmatprep.subr.bf16.mxu0 0
    %887 = vmatpush1.bf16.msra.mxu0 0
    %888 = vmatprep.mubr.bf16.mxu0 0
    %889 = vmatmul.mubr.bf16.gmra.mrb[0].mxu0 %v833
    %v890 = vpop.f32.mrb[0].mxu0
    %v891 = vadd.f32 0.0, %v890
    %v892 = vpop.f32.mrb[0].mxu0
    %v893 = vpop.f32.mrb[0].mxu0
    %v894 = vadd.f32 0.0, %v893
    %v895 = vpop.f32.mrb[0].mxu0
    %896 = vmatprep.mubr.bf16.mxu0 0
    %897 = vmatmul.mubr.bf16.gmra.mrb[0].mxu0 %v836
    %v898 = vpop.f32.mrb[0].mxu0
    %v899 = vadd.f32 0.0, %v898
    %v900 = vpop.f32.mrb[0].mxu0
    %v901 = vpop.f32.mrb[0].mxu0
    %v902 = vadd.f32 0.0, %v901
    %v903 = vpop.f32.mrb[0].mxu0
    %904 = vmatprep.mubr.bf16.mxu0 0
    %905 = vmatmul.mubr.bf16.gmra.mrb[0].mxu0 %v839
    %v906 = vpop.f32.mrb[0].mxu0
    %v907 = vadd.f32 0.0, %v906
    %v908 = vpop.f32.mrb[0].mxu0
    %v909 = vpop.f32.mrb[0].mxu0
    %v910 = vadd.f32 0.0, %v909
    %v911 = vpop.f32.mrb[0].mxu0
    %912 = vmatprep.mubr.bf16.mxu0 0
    %913 = vmatmul.mubr.bf16.gmra.mrb[0].mxu0 %v842
    %v914 = vpop.f32.mrb[0].mxu0
    %v915 = vadd.f32 0.0, %v914
    %v916 = vpop.f32.mrb[0].mxu0
    %v917 = vpop.f32.mrb[0].mxu0
    %v918 = vadd.f32 0.0, %v917
    %v919 = vpop.f32.mrb[0].mxu0
    %920 = vmatprep.mubr.bf16.mxu0 0
    %921 = vmatmul.mubr.bf16.gmra.mrb[0].mxu0 %v845
    %v922 = vpop.f32.mrb[0].mxu0
    %v923 = vadd.f32 0.0, %v922
    %v924 = vpop.f32.mrb[0].mxu0
    %v925 = vpop.f32.mrb[0].mxu0
    %v926 = vadd.f32 0.0, %v925
    %v927 = vpop.f32.mrb[0].mxu0
    %928 = vmatprep.mubr.bf16.mxu0 0
    %929 = vmatmul.mubr.bf16.gmra.mrb[0].mxu0 %v848
    %v930 = vpop.f32.mrb[0].mxu0
    %v931 = vadd.f32 0.0, %v930
    %v932 = vpop.f32.mrb[0].mxu0
    %v933 = vpop.f32.mrb[0].mxu0
    %v934 = vadd.f32 0.0, %v933
    %v935 = vpop.f32.mrb[0].mxu0
    %936 = vmatprep.mubr.bf16.mxu0 0
    %937 = vmatmul.mubr.bf16.gmra.mrb[0].mxu0 %v851
    %v938 = vpop.f32.mrb[0].mxu0
    %v939 = vadd.f32 0.0, %v938
    %v940 = vpop.f32.mrb[0].mxu0
    %v941 = vpop.f32.mrb[0].mxu0
    %v942 = vadd.f32 0.0, %v941
    %v943 = vpop.f32.mrb[0].mxu0
    %944 = vmatprep.mubr.bf16.mxu0 0
    %945 = vmatmul.mubr.bf16.gmra.mrb[0].mxu0 %v854
    %v946 = vpop.f32.mrb[0].mxu0
    %v947 = vadd.f32 0.0, %v946
    %v948 = vpop.f32.mrb[0].mxu0
    %v949 = vpop.f32.mrb[0].mxu0
    %v950 = vadd.f32 0.0, %v949
    %v951 = vpop.f32.mrb[0].mxu0
    %952 = vdwg.mxu0
    %v953 = vadd.f32 %v759, %v891
    %v954 = vadd.f32 %v760, %v894
    %v955 = vadd.f32 %v761, %v899
    %v956 = vadd.f32 %v762, %v902
    %v957 = vadd.f32 %v763, %v907
    %v958 = vadd.f32 %v764, %v910
    %v959 = vadd.f32 %v765, %v915
    %v960 = vadd.f32 %v766, %v918
    %v961 = vadd.f32 %v767, %v923
    %v962 = vadd.f32 %v768, %v926
    %v963 = vadd.f32 %v769, %v931
    %v964 = vadd.f32 %v770, %v934
    %v965 = vadd.f32 %v771, %v939
    %v966 = vadd.f32 %v772, %v942
    %v967 = vadd.f32 %v773, %v947
    %v968 = vadd.f32 %v774, %v950
    %v969 = vld [vmem:[%s2 + $0x1] sm:$0xff]
    %v970 = vld [vmem:[%s2 + $0x11] sm:$0xff]
    %v971 = vld [vmem:[%s2 + $0x21] sm:$0xff]
    %v972 = vld [vmem:[%s2 + $0x31] sm:$0xff]
    %v973 = vld [vmem:[%s2 + $0x41] sm:$0xff]
    %v974 = vld [vmem:[%s2 + $0x51] sm:$0xff]
    %v975 = vld [vmem:[%s2 + $0x61] sm:$0xff]
    %v976 = vld [vmem:[%s2 + $0x71] sm:$0xff]
    %v977 = vld [vmem:[%s2 + $0x91] sm:$0xff]
    %v978 = vld [vmem:[%s2 + $0xa1] sm:$0xff]
    %v979 = vld [vmem:[%s2 + $0xb1] sm:$0xff]
    %v980 = vld [vmem:[%s2 + $0xc1] sm:$0xff]
    %v981 = vld [vmem:[%s2 + $0xd1] sm:$0xff]
    %v982 = vld [vmem:[%s2 + $0xe1] sm:$0xff]
    %v983 = vld [vmem:[%s2 + $0xf1] sm:$0xff]
    %v984 = vld [vmem:[%s2 + $0x101] sm:$0xff]
    %v985 = vpack.c.bf16 %v970, %v969
    %v986 = vpack.c.bf16 %v972, %v971
    %v987 = vpack.c.bf16 %v974, %v973
    %v988 = vpack.c.bf16 %v976, %v975
    %v989 = vpack.c.bf16 %v978, %v977
    %v990 = vpack.c.bf16 %v980, %v979
    %v991 = vpack.c.bf16 %v982, %v981
    %v992 = vpack.c.bf16 %v984, %v983
    %s993 = scalar_lea.vmem %s4, 160
    %v994 = vld [vmem:[%s993] sm:$0xf]
    %v995 = vld [vmem:[%s993 + $0x4] sm:$0xf]
    %v996 = vld [vmem:[%s993 + $0x8] sm:$0xf]
    %v997 = vld [vmem:[%s993 + $0xc] sm:$0xf]
    %v998 = vld [vmem:[%s993 + $0x10] sm:$0xf]
    %v999 = vld [vmem:[%s993 + $0x14] sm:$0xf]
    %v1000 = vld [vmem:[%s993 + $0x18] sm:$0xf]
    %v1001 = vld [vmem:[%s993 + $0x1c] sm:$0xf]
    %v1010 = vunpack.c.l.b16 %v994
    %v1011 = vunpack.c.l.b16 %v995
    %v1012 = vunpack.c.l.b16 %v996
    %v1013 = vunpack.c.l.b16 %v997
    %v1014 = vunpack.c.l.b16 %v998
    %v1015 = vunpack.c.l.b16 %v999
    %v1016 = vunpack.c.l.b16 %v1000
    %v1017 = vunpack.c.l.b16 %v1001
    %v1018 = vpack.c.b16 %v1011, %v1010
    %v1019 = vpack.c.b16 %v1013, %v1012
    %v1020 = vpack.c.b16 %v1015, %v1014
    %v1021 = vpack.c.b16 %v1017, %v1016
    %v1027 = vsel %vm120, %v985, 0
    %v1030 = vsel %vm120, %v986, 0
    %v1033 = vsel %vm120, %v987, 0
    %v1036 = vsel %vm120, %v988, 0
    %v1039 = vsel %vm120, %v989, 0
    %v1042 = vsel %vm120, %v990, 0
    %v1045 = vsel %vm120, %v991, 0
    %v1048 = vsel %vm120, %v992, 0
    %1050 = vmatprep.subr.bf16.mxu0 0
    %1051 = vmatpush1.bf16.msra.mxu0 %v1018
    %1052 = vmatprep.subr.bf16.mxu0 0
    %1053 = vmatpush1.bf16.msra.mxu0 %v1019
    %1054 = vmatprep.subr.bf16.mxu0 0
    %1055 = vmatpush1.bf16.msra.mxu0 %v1020
    %1056 = vmatprep.subr.bf16.mxu0 0
    %1057 = vmatpush1.bf16.msra.mxu0 %v1021
    %1058 = vmatprep.subr.bf16.mxu0 0
    %1059 = vmatpush1.bf16.msra.mxu0 0
    %1060 = vmatprep.subr.bf16.mxu0 0
    %1061 = vmatpush1.bf16.msra.mxu0 0
    %1062 = vmatprep.subr.bf16.mxu0 0
    %1063 = vmatpush1.bf16.msra.mxu0 0
    %1064 = vmatprep.subr.bf16.mxu0 0
    %1065 = vmatpush1.bf16.msra.mxu0 0
    %1066 = vmatprep.subr.bf16.mxu0 0
    %1067 = vmatpush1.bf16.msra.mxu0 0
    %1068 = vmatprep.subr.bf16.mxu0 0
    %1069 = vmatpush1.bf16.msra.mxu0 0
    %1070 = vmatprep.subr.bf16.mxu0 0
    %1071 = vmatpush1.bf16.msra.mxu0 0
    %1072 = vmatprep.subr.bf16.mxu0 0
    %1073 = vmatpush1.bf16.msra.mxu0 0
    %1074 = vmatprep.subr.bf16.mxu0 0
    %1075 = vmatpush1.bf16.msra.mxu0 0
    %1076 = vmatprep.subr.bf16.mxu0 0
    %1077 = vmatpush1.bf16.msra.mxu0 0
    %1078 = vmatprep.subr.bf16.mxu0 0
    %1079 = vmatpush1.bf16.msra.mxu0 0
    %1080 = vmatprep.subr.bf16.mxu0 0
    %1081 = vmatpush1.bf16.msra.mxu0 0
    %1082 = vmatprep.mubr.bf16.mxu0 0
    %1083 = vmatmul.mubr.bf16.gmra.mrb[0].mxu0 %v1027
    %v1084 = vpop.f32.mrb[0].mxu0
    %v1085 = vadd.f32 0.0, %v1084
    %v1086 = vpop.f32.mrb[0].mxu0
    %v1087 = vpop.f32.mrb[0].mxu0
    %v1088 = vadd.f32 0.0, %v1087
    %v1089 = vpop.f32.mrb[0].mxu0
    %1090 = vmatprep.mubr.bf16.mxu0 0
    %1091 = vmatmul.mubr.bf16.gmra.mrb[0].mxu0 %v1030
    %v1092 = vpop.f32.mrb[0].mxu0
    %v1093 = vadd.f32 0.0, %v1092
    %v1094 = vpop.f32.mrb[0].mxu0
    %v1095 = vpop.f32.mrb[0].mxu0
    %v1096 = vadd.f32 0.0, %v1095
    %v1097 = vpop.f32.mrb[0].mxu0
    %1098 = vmatprep.mubr.bf16.mxu0 0
    %1099 = vmatmul.mubr.bf16.gmra.mrb[0].mxu0 %v1033
    %v1100 = vpop.f32.mrb[0].mxu0
    %v1101 = vadd.f32 0.0, %v1100
    %v1102 = vpop.f32.mrb[0].mxu0
    %v1103 = vpop.f32.mrb[0].mxu0
    %v1104 = vadd.f32 0.0, %v1103
    %v1105 = vpop.f32.mrb[0].mxu0
    %1106 = vmatprep.mubr.bf16.mxu0 0
    %1107 = vmatmul.mubr.bf16.gmra.mrb[0].mxu0 %v1036
    %v1108 = vpop.f32.mrb[0].mxu0
    %v1109 = vadd.f32 0.0, %v1108
    %v1110 = vpop.f32.mrb[0].mxu0
    %v1111 = vpop.f32.mrb[0].mxu0
    %v1112 = vadd.f32 0.0, %v1111
    %v1113 = vpop.f32.mrb[0].mxu0
    %1114 = vmatprep.mubr.bf16.mxu0 0
    %1115 = vmatmul.mubr.bf16.gmra.mrb[0].mxu0 %v1039
    %v1116 = vpop.f32.mrb[0].mxu0
    %v1117 = vadd.f32 0.0, %v1116
    %v1118 = vpop.f32.mrb[0].mxu0
    %v1119 = vpop.f32.mrb[0].mxu0
    %v1120 = vadd.f32 0.0, %v1119
    %v1121 = vpop.f32.mrb[0].mxu0
    %1122 = vmatprep.mubr.bf16.mxu0 0
    %1123 = vmatmul.mubr.bf16.gmra.mrb[0].mxu0 %v1042
    %v1124 = vpop.f32.mrb[0].mxu0
    %v1125 = vadd.f32 0.0, %v1124
    %v1126 = vpop.f32.mrb[0].mxu0
    %v1127 = vpop.f32.mrb[0].mxu0
    %v1128 = vadd.f32 0.0, %v1127
    %v1129 = vpop.f32.mrb[0].mxu0
    %1130 = vmatprep.mubr.bf16.mxu0 0
    %1131 = vmatmul.mubr.bf16.gmra.mrb[0].mxu0 %v1045
    %v1132 = vpop.f32.mrb[0].mxu0
    %v1133 = vadd.f32 0.0, %v1132
    %v1134 = vpop.f32.mrb[0].mxu0
    %v1135 = vpop.f32.mrb[0].mxu0
    %v1136 = vadd.f32 0.0, %v1135
    %v1137 = vpop.f32.mrb[0].mxu0
    %1138 = vmatprep.mubr.bf16.mxu0 0
    %1139 = vmatmul.mubr.bf16.gmra.mrb[0].mxu0 %v1048
    %v1140 = vpop.f32.mrb[0].mxu0
    %v1141 = vadd.f32 0.0, %v1140
    %v1142 = vpop.f32.mrb[0].mxu0
    %v1143 = vpop.f32.mrb[0].mxu0
    %v1144 = vadd.f32 0.0, %v1143
    %v1145 = vpop.f32.mrb[0].mxu0
    %1146 = vdwg.mxu0
    %v1147 = vadd.f32 %v953, %v1085
    %v1148 = vadd.f32 %v954, %v1088
    %v1149 = vadd.f32 %v955, %v1093
    %v1150 = vadd.f32 %v956, %v1096
    %v1151 = vadd.f32 %v957, %v1101
    %v1152 = vadd.f32 %v958, %v1104
    %v1153 = vadd.f32 %v959, %v1109
    %v1154 = vadd.f32 %v960, %v1112
    %v1155 = vadd.f32 %v961, %v1117
    %v1156 = vadd.f32 %v962, %v1120
    %v1157 = vadd.f32 %v963, %v1125
    %v1158 = vadd.f32 %v964, %v1128
    %v1159 = vadd.f32 %v965, %v1133
    %v1160 = vadd.f32 %v966, %v1136
    %v1161 = vadd.f32 %v967, %v1141
    %v1162 = vadd.f32 %v968, %v1144
    %s1163 = scalar_lea.vmem %s0, 16
    %v1164 = vld [vmem:[%s1163] sm:$0xff]
    %v1165 = vld [vmem:[%s1163 + $0x10] sm:$0xff]
    %v1166 = vld [vmem:[%s1163 + $0x20] sm:$0xff]
    %v1167 = vld [vmem:[%s1163 + $0x30] sm:$0xff]
    %v1168 = vld [vmem:[%s1163 + $0x40] sm:$0xff]
    %v1169 = vld [vmem:[%s1163 + $0x50] sm:$0xff]
    %v1170 = vld [vmem:[%s1163 + $0x60] sm:$0xff]
    %v1171 = vld [vmem:[%s1163 + $0x70] sm:$0xff]
    %v1172 = vld [vmem:[%s1163 + $0x90] sm:$0xff]
    %v1173 = vld [vmem:[%s1163 + $0xa0] sm:$0xff]
    %v1174 = vld [vmem:[%s1163 + $0xb0] sm:$0xff]
    %v1175 = vld [vmem:[%s1163 + $0xc0] sm:$0xff]
    %v1176 = vld [vmem:[%s1163 + $0xd0] sm:$0xff]
    %v1177 = vld [vmem:[%s1163 + $0xe0] sm:$0xff]
    %v1178 = vld [vmem:[%s1163 + $0xf0] sm:$0xff]
    %v1179 = vld [vmem:[%s1163 + $0x100] sm:$0xff]
    %v1180 = vpack.c.bf16 %v1165, %v1164
    %v1181 = vpack.c.bf16 %v1167, %v1166
    %v1182 = vpack.c.bf16 %v1169, %v1168
    %v1183 = vpack.c.bf16 %v1171, %v1170
    %v1184 = vpack.c.bf16 %v1173, %v1172
    %v1185 = vpack.c.bf16 %v1175, %v1174
    %v1186 = vpack.c.bf16 %v1177, %v1176
    %v1187 = vpack.c.bf16 %v1179, %v1178
    %s1188 = scalar_lea.vmem %s4, 192
    %v1189 = vld [vmem:[%s1188] sm:$0xf]
    %v1190 = vld [vmem:[%s1188 + $0x4] sm:$0xf]
    %v1191 = vld [vmem:[%s1188 + $0x8] sm:$0xf]
    %v1192 = vld [vmem:[%s1188 + $0xc] sm:$0xf]
    %v1193 = vld [vmem:[%s1188 + $0x10] sm:$0xf]
    %v1194 = vld [vmem:[%s1188 + $0x14] sm:$0xf]
    %v1195 = vld [vmem:[%s1188 + $0x18] sm:$0xf]
    %v1196 = vld [vmem:[%s1188 + $0x1c] sm:$0xf]
    %v1205 = vunpack.c.l.b16 %v1189
    %v1206 = vunpack.c.l.b16 %v1190
    %v1207 = vunpack.c.l.b16 %v1191
    %v1208 = vunpack.c.l.b16 %v1192
    %v1209 = vunpack.c.l.b16 %v1193
    %v1210 = vunpack.c.l.b16 %v1194
    %v1211 = vunpack.c.l.b16 %v1195
    %v1212 = vunpack.c.l.b16 %v1196
    %v1213 = vpack.c.b16 %v1206, %v1205
    %v1214 = vpack.c.b16 %v1208, %v1207
    %v1215 = vpack.c.b16 %v1210, %v1209
    %v1216 = vpack.c.b16 %v1212, %v1211
    %v1222 = vsel %vm120, %v1180, 0
    %v1225 = vsel %vm120, %v1181, 0
    %v1228 = vsel %vm120, %v1182, 0
    %v1231 = vsel %vm120, %v1183, 0
    %v1234 = vsel %vm120, %v1184, 0
    %v1237 = vsel %vm120, %v1185, 0
    %v1240 = vsel %vm120, %v1186, 0
    %v1243 = vsel %vm120, %v1187, 0
    %1245 = vmatprep.subr.bf16.mxu0 0
    %1246 = vmatpush1.bf16.msra.mxu0 %v1213
    %1247 = vmatprep.subr.bf16.mxu0 0
    %1248 = vmatpush1.bf16.msra.mxu0 %v1214
    %1249 = vmatprep.subr.bf16.mxu0 0
    %1250 = vmatpush1.bf16.msra.mxu0 %v1215
    %1251 = vmatprep.subr.bf16.mxu0 0
    %1252 = vmatpush1.bf16.msra.mxu0 %v1216
    %1253 = vmatprep.subr.bf16.mxu0 0
    %1254 = vmatpush1.bf16.msra.mxu0 0
    %1255 = vmatprep.subr.bf16.mxu0 0
    %1256 = vmatpush1.bf16.msra.mxu0 0
    %1257 = vmatprep.subr.bf16.mxu0 0
    %1258 = vmatpush1.bf16.msra.mxu0 0
    %1259 = vmatprep.subr.bf16.mxu0 0
    %1260 = vmatpush1.bf16.msra.mxu0 0
    %1261 = vmatprep.subr.bf16.mxu0 0
    %1262 = vmatpush1.bf16.msra.mxu0 0
    %1263 = vmatprep.subr.bf16.mxu0 0
    %1264 = vmatpush1.bf16.msra.mxu0 0
    %1265 = vmatprep.subr.bf16.mxu0 0
    %1266 = vmatpush1.bf16.msra.mxu0 0
    %1267 = vmatprep.subr.bf16.mxu0 0
    %1268 = vmatpush1.bf16.msra.mxu0 0
    %1269 = vmatprep.subr.bf16.mxu0 0
    %1270 = vmatpush1.bf16.msra.mxu0 0
    %1271 = vmatprep.subr.bf16.mxu0 0
    %1272 = vmatpush1.bf16.msra.mxu0 0
    %1273 = vmatprep.subr.bf16.mxu0 0
    %1274 = vmatpush1.bf16.msra.mxu0 0
    %1275 = vmatprep.subr.bf16.mxu0 0
    %1276 = vmatpush1.bf16.msra.mxu0 0
    %1277 = vmatprep.mubr.bf16.mxu0 0
    %1278 = vmatmul.mubr.bf16.gmra.mrb[0].mxu0 %v1222
    %v1279 = vpop.f32.mrb[0].mxu0
    %v1280 = vadd.f32 0.0, %v1279
    %v1281 = vpop.f32.mrb[0].mxu0
    %v1282 = vpop.f32.mrb[0].mxu0
    %v1283 = vadd.f32 0.0, %v1282
    %v1284 = vpop.f32.mrb[0].mxu0
    %1285 = vmatprep.mubr.bf16.mxu0 0
    %1286 = vmatmul.mubr.bf16.gmra.mrb[0].mxu0 %v1225
    %v1287 = vpop.f32.mrb[0].mxu0
    %v1288 = vadd.f32 0.0, %v1287
    %v1289 = vpop.f32.mrb[0].mxu0
    %v1290 = vpop.f32.mrb[0].mxu0
    %v1291 = vadd.f32 0.0, %v1290
    %v1292 = vpop.f32.mrb[0].mxu0
    %1293 = vmatprep.mubr.bf16.mxu0 0
    %1294 = vmatmul.mubr.bf16.gmra.mrb[0].mxu0 %v1228
    %v1295 = vpop.f32.mrb[0].mxu0
    %v1296 = vadd.f32 0.0, %v1295
    %v1297 = vpop.f32.mrb[0].mxu0
    %v1298 = vpop.f32.mrb[0].mxu0
    %v1299 = vadd.f32 0.0, %v1298
    %v1300 = vpop.f32.mrb[0].mxu0
    %1301 = vmatprep.mubr.bf16.mxu0 0
    %1302 = vmatmul.mubr.bf16.gmra.mrb[0].mxu0 %v1231
    %v1303 = vpop.f32.mrb[0].mxu0
    %v1304 = vadd.f32 0.0, %v1303
    %v1305 = vpop.f32.mrb[0].mxu0
    %v1306 = vpop.f32.mrb[0].mxu0
    %v1307 = vadd.f32 0.0, %v1306
    %v1308 = vpop.f32.mrb[0].mxu0
    %1309 = vmatprep.mubr.bf16.mxu0 0
    %1310 = vmatmul.mubr.bf16.gmra.mrb[0].mxu0 %v1234
    %v1311 = vpop.f32.mrb[0].mxu0
    %v1312 = vadd.f32 0.0, %v1311
    %v1313 = vpop.f32.mrb[0].mxu0
    %v1314 = vpop.f32.mrb[0].mxu0
    %v1315 = vadd.f32 0.0, %v1314
    %v1316 = vpop.f32.mrb[0].mxu0
    %1317 = vmatprep.mubr.bf16.mxu0 0
    %1318 = vmatmul.mubr.bf16.gmra.mrb[0].mxu0 %v1237
    %v1319 = vpop.f32.mrb[0].mxu0
    %v1320 = vadd.f32 0.0, %v1319
    %v1321 = vpop.f32.mrb[0].mxu0
    %v1322 = vpop.f32.mrb[0].mxu0
    %v1323 = vadd.f32 0.0, %v1322
    %v1324 = vpop.f32.mrb[0].mxu0
    %1325 = vmatprep.mubr.bf16.mxu0 0
    %1326 = vmatmul.mubr.bf16.gmra.mrb[0].mxu0 %v1240
    %v1327 = vpop.f32.mrb[0].mxu0
    %v1328 = vadd.f32 0.0, %v1327
    %v1329 = vpop.f32.mrb[0].mxu0
    %v1330 = vpop.f32.mrb[0].mxu0
    %v1331 = vadd.f32 0.0, %v1330
    %v1332 = vpop.f32.mrb[0].mxu0
    %1333 = vmatprep.mubr.bf16.mxu0 0
    %1334 = vmatmul.mubr.bf16.gmra.mrb[0].mxu0 %v1243
    %v1335 = vpop.f32.mrb[0].mxu0
    %v1336 = vadd.f32 0.0, %v1335
    %v1337 = vpop.f32.mrb[0].mxu0
    %v1338 = vpop.f32.mrb[0].mxu0
    %v1339 = vadd.f32 0.0, %v1338
    %v1340 = vpop.f32.mrb[0].mxu0
    %1341 = vdwg.mxu0
    %v1342 = vadd.f32 %v1147, %v1280
    %v1343 = vadd.f32 %v1148, %v1283
    %v1344 = vadd.f32 %v1149, %v1288
    %v1345 = vadd.f32 %v1150, %v1291
    %v1346 = vadd.f32 %v1151, %v1296
    %v1347 = vadd.f32 %v1152, %v1299
    %v1348 = vadd.f32 %v1153, %v1304
    %v1349 = vadd.f32 %v1154, %v1307
    %v1350 = vadd.f32 %v1155, %v1312
    %v1351 = vadd.f32 %v1156, %v1315
    %v1352 = vadd.f32 %v1157, %v1320
    %v1353 = vadd.f32 %v1158, %v1323
    %v1354 = vadd.f32 %v1159, %v1328
    %v1355 = vadd.f32 %v1160, %v1331
    %v1356 = vadd.f32 %v1161, %v1336
    %v1357 = vadd.f32 %v1162, %v1339
    %s1358 = scalar_lea.vmem %s1, 16
    %v1359 = vld [vmem:[%s1358] sm:$0xff]
    %v1360 = vld [vmem:[%s1358 + $0x10] sm:$0xff]
    %v1361 = vld [vmem:[%s1358 + $0x20] sm:$0xff]
    %v1362 = vld [vmem:[%s1358 + $0x30] sm:$0xff]
    %v1363 = vld [vmem:[%s1358 + $0x40] sm:$0xff]
    %v1364 = vld [vmem:[%s1358 + $0x50] sm:$0xff]
    %v1365 = vld [vmem:[%s1358 + $0x60] sm:$0xff]
    %v1366 = vld [vmem:[%s1358 + $0x70] sm:$0xff]
    %v1367 = vld [vmem:[%s1358 + $0x90] sm:$0xff]
    %v1368 = vld [vmem:[%s1358 + $0xa0] sm:$0xff]
    %v1369 = vld [vmem:[%s1358 + $0xb0] sm:$0xff]
    %v1370 = vld [vmem:[%s1358 + $0xc0] sm:$0xff]
    %v1371 = vld [vmem:[%s1358 + $0xd0] sm:$0xff]
    %v1372 = vld [vmem:[%s1358 + $0xe0] sm:$0xff]
    %v1373 = vld [vmem:[%s1358 + $0xf0] sm:$0xff]
    %v1374 = vld [vmem:[%s1358 + $0x100] sm:$0xff]
    %v1375 = vpack.c.bf16 %v1360, %v1359
    %v1376 = vpack.c.bf16 %v1362, %v1361
    %v1377 = vpack.c.bf16 %v1364, %v1363
    %v1378 = vpack.c.bf16 %v1366, %v1365
    %v1379 = vpack.c.bf16 %v1368, %v1367
    %v1380 = vpack.c.bf16 %v1370, %v1369
    %v1381 = vpack.c.bf16 %v1372, %v1371
    %v1382 = vpack.c.bf16 %v1374, %v1373
    %s1383 = scalar_lea.vmem %s4, 224
    %v1384 = vld [vmem:[%s1383] sm:$0xf]
    %v1385 = vld [vmem:[%s1383 + $0x4] sm:$0xf]
    %v1386 = vld [vmem:[%s1383 + $0x8] sm:$0xf]
    %v1387 = vld [vmem:[%s1383 + $0xc] sm:$0xf]
    %v1388 = vld [vmem:[%s1383 + $0x10] sm:$0xf]
    %v1389 = vld [vmem:[%s1383 + $0x14] sm:$0xf]
    %v1390 = vld [vmem:[%s1383 + $0x18] sm:$0xf]
    %v1391 = vld [vmem:[%s1383 + $0x1c] sm:$0xf]
    %v1400 = vunpack.c.l.b16 %v1384
    %v1401 = vunpack.c.l.b16 %v1385
    %v1402 = vunpack.c.l.b16 %v1386
    %v1403 = vunpack.c.l.b16 %v1387
    %v1404 = vunpack.c.l.b16 %v1388
    %v1405 = vunpack.c.l.b16 %v1389
    %v1406 = vunpack.c.l.b16 %v1390
    %v1407 = vunpack.c.l.b16 %v1391
    %v1408 = vpack.c.b16 %v1401, %v1400
    %v1409 = vpack.c.b16 %v1403, %v1402
    %v1410 = vpack.c.b16 %v1405, %v1404
    %v1411 = vpack.c.b16 %v1407, %v1406
    %v1417 = vsel %vm120, %v1375, 0
    %v1420 = vsel %vm120, %v1376, 0
    %v1423 = vsel %vm120, %v1377, 0
    %v1426 = vsel %vm120, %v1378, 0
    %v1429 = vsel %vm120, %v1379, 0
    %v1432 = vsel %vm120, %v1380, 0
    %v1435 = vsel %vm120, %v1381, 0
    %v1438 = vsel %vm120, %v1382, 0
    %1440 = vmatprep.subr.bf16.mxu0 0
    %1441 = vmatpush1.bf16.msra.mxu0 %v1408
    %1442 = vmatprep.subr.bf16.mxu0 0
    %1443 = vmatpush1.bf16.msra.mxu0 %v1409
    %1444 = vmatprep.subr.bf16.mxu0 0
    %1445 = vmatpush1.bf16.msra.mxu0 %v1410
    %1446 = vmatprep.subr.bf16.mxu0 0
    %1447 = vmatpush1.bf16.msra.mxu0 %v1411
    %1448 = vmatprep.subr.bf16.mxu0 0
    %1449 = vmatpush1.bf16.msra.mxu0 0
    %1450 = vmatprep.subr.bf16.mxu0 0
    %1451 = vmatpush1.bf16.msra.mxu0 0
    %1452 = vmatprep.subr.bf16.mxu0 0
    %1453 = vmatpush1.bf16.msra.mxu0 0
    %1454 = vmatprep.subr.bf16.mxu0 0
    %1455 = vmatpush1.bf16.msra.mxu0 0
    %1456 = vmatprep.subr.bf16.mxu0 0
    %1457 = vmatpush1.bf16.msra.mxu0 0
    %1458 = vmatprep.subr.bf16.mxu0 0
    %1459 = vmatpush1.bf16.msra.mxu0 0
    %1460 = vmatprep.subr.bf16.mxu0 0
    %1461 = vmatpush1.bf16.msra.mxu0 0
    %1462 = vmatprep.subr.bf16.mxu0 0
    %1463 = vmatpush1.bf16.msra.mxu0 0
    %1464 = vmatprep.subr.bf16.mxu0 0
    %1465 = vmatpush1.bf16.msra.mxu0 0
    %1466 = vmatprep.subr.bf16.mxu0 0
    %1467 = vmatpush1.bf16.msra.mxu0 0
    %1468 = vmatprep.subr.bf16.mxu0 0
    %1469 = vmatpush1.bf16.msra.mxu0 0
    %1470 = vmatprep.subr.bf16.mxu0 0
    %1471 = vmatpush1.bf16.msra.mxu0 0
    %1472 = vmatprep.mubr.bf16.mxu0 0
    %1473 = vmatmul.mubr.bf16.gmra.mrb[0].mxu0 %v1417
    %v1474 = vpop.f32.mrb[0].mxu0
    %v1475 = vadd.f32 0.0, %v1474
    %v1476 = vpop.f32.mrb[0].mxu0
    %v1477 = vpop.f32.mrb[0].mxu0
    %v1478 = vadd.f32 0.0, %v1477
    %v1479 = vpop.f32.mrb[0].mxu0
    %1480 = vmatprep.mubr.bf16.mxu0 0
    %1481 = vmatmul.mubr.bf16.gmra.mrb[0].mxu0 %v1420
    %v1482 = vpop.f32.mrb[0].mxu0
    %v1483 = vadd.f32 0.0, %v1482
    %v1484 = vpop.f32.mrb[0].mxu0
    %v1485 = vpop.f32.mrb[0].mxu0
    %v1486 = vadd.f32 0.0, %v1485
    %v1487 = vpop.f32.mrb[0].mxu0
    %1488 = vmatprep.mubr.bf16.mxu0 0
    %1489 = vmatmul.mubr.bf16.gmra.mrb[0].mxu0 %v1423
    %v1490 = vpop.f32.mrb[0].mxu0
    %v1491 = vadd.f32 0.0, %v1490
    %v1492 = vpop.f32.mrb[0].mxu0
    %v1493 = vpop.f32.mrb[0].mxu0
    %v1494 = vadd.f32 0.0, %v1493
    %v1495 = vpop.f32.mrb[0].mxu0
    %1496 = vmatprep.mubr.bf16.mxu0 0
    %1497 = vmatmul.mubr.bf16.gmra.mrb[0].mxu0 %v1426
    %v1498 = vpop.f32.mrb[0].mxu0
    %v1499 = vadd.f32 0.0, %v1498
    %v1500 = vpop.f32.mrb[0].mxu0
    %v1501 = vpop.f32.mrb[0].mxu0
    %v1502 = vadd.f32 0.0, %v1501
    %v1503 = vpop.f32.mrb[0].mxu0
    %1504 = vmatprep.mubr.bf16.mxu0 0
    %1505 = vmatmul.mubr.bf16.gmra.mrb[0].mxu0 %v1429
    %v1506 = vpop.f32.mrb[0].mxu0
    %v1507 = vadd.f32 0.0, %v1506
    %v1508 = vpop.f32.mrb[0].mxu0
    %v1509 = vpop.f32.mrb[0].mxu0
    %v1510 = vadd.f32 0.0, %v1509
    %v1511 = vpop.f32.mrb[0].mxu0
    %1512 = vmatprep.mubr.bf16.mxu0 0
    %1513 = vmatmul.mubr.bf16.gmra.mrb[0].mxu0 %v1432
    %v1514 = vpop.f32.mrb[0].mxu0
    %v1515 = vadd.f32 0.0, %v1514
    %v1516 = vpop.f32.mrb[0].mxu0
    %v1517 = vpop.f32.mrb[0].mxu0
    %v1518 = vadd.f32 0.0, %v1517
    %v1519 = vpop.f32.mrb[0].mxu0
    %1520 = vmatprep.mubr.bf16.mxu0 0
    %1521 = vmatmul.mubr.bf16.gmra.mrb[0].mxu0 %v1435
    %v1522 = vpop.f32.mrb[0].mxu0
    %v1523 = vadd.f32 0.0, %v1522
    %v1524 = vpop.f32.mrb[0].mxu0
    %v1525 = vpop.f32.mrb[0].mxu0
    %v1526 = vadd.f32 0.0, %v1525
    %v1527 = vpop.f32.mrb[0].mxu0
    %1528 = vmatprep.mubr.bf16.mxu0 0
    %1529 = vmatmul.mubr.bf16.gmra.mrb[0].mxu0 %v1438
    %v1530 = vpop.f32.mrb[0].mxu0
    %v1531 = vadd.f32 0.0, %v1530
    %v1532 = vpop.f32.mrb[0].mxu0
    %v1533 = vpop.f32.mrb[0].mxu0
    %v1534 = vadd.f32 0.0, %v1533
    %v1535 = vpop.f32.mrb[0].mxu0
    %1536 = vdwg.mxu0
    %v1537 = vadd.f32 %v1342, %v1475
    %v1538 = vadd.f32 %v1343, %v1478
    %v1539 = vadd.f32 %v1344, %v1483
    %v1540 = vadd.f32 %v1345, %v1486
    %v1541 = vadd.f32 %v1346, %v1491
    %v1542 = vadd.f32 %v1347, %v1494
    %v1543 = vadd.f32 %v1348, %v1499
    %v1544 = vadd.f32 %v1349, %v1502
    %v1545 = vadd.f32 %v1350, %v1507
    %v1546 = vadd.f32 %v1351, %v1510
    %v1547 = vadd.f32 %v1352, %v1515
    %v1548 = vadd.f32 %v1353, %v1518
    %v1549 = vadd.f32 %v1354, %v1523
    %v1550 = vadd.f32 %v1355, %v1526
    %v1551 = vadd.f32 %v1356, %v1531
    %v1552 = vadd.f32 %v1357, %v1534
    %v1553 = vld [vmem:[%s1163 + $0x1] sm:$0xff]
    %v1554 = vld [vmem:[%s1163 + $0x11] sm:$0xff]
    %v1555 = vld [vmem:[%s1163 + $0x21] sm:$0xff]
    %v1556 = vld [vmem:[%s1163 + $0x31] sm:$0xff]
    %v1557 = vld [vmem:[%s1163 + $0x41] sm:$0xff]
    %v1558 = vld [vmem:[%s1163 + $0x51] sm:$0xff]
    %v1559 = vld [vmem:[%s1163 + $0x61] sm:$0xff]
    %v1560 = vld [vmem:[%s1163 + $0x71] sm:$0xff]
    %v1561 = vld [vmem:[%s1163 + $0x91] sm:$0xff]
    %v1562 = vld [vmem:[%s1163 + $0xa1] sm:$0xff]
    %v1563 = vld [vmem:[%s1163 + $0xb1] sm:$0xff]
    %v1564 = vld [vmem:[%s1163 + $0xc1] sm:$0xff]
    %v1565 = vld [vmem:[%s1163 + $0xd1] sm:$0xff]
    %v1566 = vld [vmem:[%s1163 + $0xe1] sm:$0xff]
    %v1567 = vld [vmem:[%s1163 + $0xf1] sm:$0xff]
    %v1568 = vld [vmem:[%s1163 + $0x101] sm:$0xff]
    %v1569 = vpack.c.bf16 %v1554, %v1553
    %v1570 = vpack.c.bf16 %v1556, %v1555
    %v1571 = vpack.c.bf16 %v1558, %v1557
    %v1572 = vpack.c.bf16 %v1560, %v1559
    %v1573 = vpack.c.bf16 %v1562, %v1561
    %v1574 = vpack.c.bf16 %v1564, %v1563
    %v1575 = vpack.c.bf16 %v1566, %v1565
    %v1576 = vpack.c.bf16 %v1568, %v1567
    %s1577 = scalar_lea.vmem %s4, 256
    %v1578 = vld [vmem:[%s1577] sm:$0xf]
    %v1579 = vld [vmem:[%s1577 + $0x4] sm:$0xf]
    %v1580 = vld [vmem:[%s1577 + $0x8] sm:$0xf]
    %v1581 = vld [vmem:[%s1577 + $0xc] sm:$0xf]
    %v1582 = vld [vmem:[%s1577 + $0x10] sm:$0xf]
    %v1583 = vld [vmem:[%s1577 + $0x14] sm:$0xf]
    %v1584 = vld [vmem:[%s1577 + $0x18] sm:$0xf]
    %v1585 = vld [vmem:[%s1577 + $0x1c] sm:$0xf]
    %v1594 = vunpack.c.l.b16 %v1578
    %v1595 = vunpack.c.l.b16 %v1579
    %v1596 = vunpack.c.l.b16 %v1580
    %v1597 = vunpack.c.l.b16 %v1581
    %v1598 = vunpack.c.l.b16 %v1582
    %v1599 = vunpack.c.l.b16 %v1583
    %v1600 = vunpack.c.l.b16 %v1584
    %v1601 = vunpack.c.l.b16 %v1585
    %v1602 = vpack.c.b16 %v1595, %v1594
    %v1603 = vpack.c.b16 %v1597, %v1596
    %v1604 = vpack.c.b16 %v1599, %v1598
    %v1605 = vpack.c.b16 %v1601, %v1600
    %v1611 = vsel %vm120, %v1569, 0
    %v1614 = vsel %vm120, %v1570, 0
    %v1617 = vsel %vm120, %v1571, 0
    %v1620 = vsel %vm120, %v1572, 0
    %v1623 = vsel %vm120, %v1573, 0
    %v1626 = vsel %vm120, %v1574, 0
    %v1629 = vsel %vm120, %v1575, 0
    %v1632 = vsel %vm120, %v1576, 0
    %1634 = vmatprep.subr.bf16.mxu0 0
    %1635 = vmatpush1.bf16.msra.mxu0 %v1602
    %1636 = vmatprep.subr.bf16.mxu0 0
    %1637 = vmatpush1.bf16.msra.mxu0 %v1603
    %1638 = vmatprep.subr.bf16.mxu0 0
    %1639 = vmatpush1.bf16.msra.mxu0 %v1604
    %1640 = vmatprep.subr.bf16.mxu0 0
    %1641 = vmatpush1.bf16.msra.mxu0 %v1605
    %1642 = vmatprep.subr.bf16.mxu0 0
    %1643 = vmatpush1.bf16.msra.mxu0 0
    %1644 = vmatprep.subr.bf16.mxu0 0
    %1645 = vmatpush1.bf16.msra.mxu0 0
    %1646 = vmatprep.subr.bf16.mxu0 0
    %1647 = vmatpush1.bf16.msra.mxu0 0
    %1648 = vmatprep.subr.bf16.mxu0 0
    %1649 = vmatpush1.bf16.msra.mxu0 0
    %1650 = vmatprep.subr.bf16.mxu0 0
    %1651 = vmatpush1.bf16.msra.mxu0 0
    %1652 = vmatprep.subr.bf16.mxu0 0
    %1653 = vmatpush1.bf16.msra.mxu0 0
    %1654 = vmatprep.subr.bf16.mxu0 0
    %1655 = vmatpush1.bf16.msra.mxu0 0
    %1656 = vmatprep.subr.bf16.mxu0 0
    %1657 = vmatpush1.bf16.msra.mxu0 0
    %1658 = vmatprep.subr.bf16.mxu0 0
    %1659 = vmatpush1.bf16.msra.mxu0 0
    %1660 = vmatprep.subr.bf16.mxu0 0
    %1661 = vmatpush1.bf16.msra.mxu0 0
    %1662 = vmatprep.subr.bf16.mxu0 0
    %1663 = vmatpush1.bf16.msra.mxu0 0
    %1664 = vmatprep.subr.bf16.mxu0 0
    %1665 = vmatpush1.bf16.msra.mxu0 0
    %1666 = vmatprep.mubr.bf16.mxu0 0
    %1667 = vmatmul.mubr.bf16.gmra.mrb[0].mxu0 %v1611
    %v1668 = vpop.f32.mrb[0].mxu0
    %v1669 = vadd.f32 0.0, %v1668
    %v1670 = vpop.f32.mrb[0].mxu0
    %v1671 = vpop.f32.mrb[0].mxu0
    %v1672 = vadd.f32 0.0, %v1671
    %v1673 = vpop.f32.mrb[0].mxu0
    %1674 = vmatprep.mubr.bf16.mxu0 0
    %1675 = vmatmul.mubr.bf16.gmra.mrb[0].mxu0 %v1614
    %v1676 = vpop.f32.mrb[0].mxu0
    %v1677 = vadd.f32 0.0, %v1676
    %v1678 = vpop.f32.mrb[0].mxu0
    %v1679 = vpop.f32.mrb[0].mxu0
    %v1680 = vadd.f32 0.0, %v1679
    %v1681 = vpop.f32.mrb[0].mxu0
    %1682 = vmatprep.mubr.bf16.mxu0 0
    %1683 = vmatmul.mubr.bf16.gmra.mrb[0].mxu0 %v1617
    %v1684 = vpop.f32.mrb[0].mxu0
    %v1685 = vadd.f32 0.0, %v1684
    %v1686 = vpop.f32.mrb[0].mxu0
    %v1687 = vpop.f32.mrb[0].mxu0
    %v1688 = vadd.f32 0.0, %v1687
    %v1689 = vpop.f32.mrb[0].mxu0
    %1690 = vmatprep.mubr.bf16.mxu0 0
    %1691 = vmatmul.mubr.bf16.gmra.mrb[0].mxu0 %v1620
    %v1692 = vpop.f32.mrb[0].mxu0
    %v1693 = vadd.f32 0.0, %v1692
    %v1694 = vpop.f32.mrb[0].mxu0
    %v1695 = vpop.f32.mrb[0].mxu0
    %v1696 = vadd.f32 0.0, %v1695
    %v1697 = vpop.f32.mrb[0].mxu0
    %1698 = vmatprep.mubr.bf16.mxu0 0
    %1699 = vmatmul.mubr.bf16.gmra.mrb[0].mxu0 %v1623
    %v1700 = vpop.f32.mrb[0].mxu0
    %v1701 = vadd.f32 0.0, %v1700
    %v1702 = vpop.f32.mrb[0].mxu0
    %v1703 = vpop.f32.mrb[0].mxu0
    %v1704 = vadd.f32 0.0, %v1703
    %v1705 = vpop.f32.mrb[0].mxu0
    %1706 = vmatprep.mubr.bf16.mxu0 0
    %1707 = vmatmul.mubr.bf16.gmra.mrb[0].mxu0 %v1626
    %v1708 = vpop.f32.mrb[0].mxu0
    %v1709 = vadd.f32 0.0, %v1708
    %v1710 = vpop.f32.mrb[0].mxu0
    %v1711 = vpop.f32.mrb[0].mxu0
    %v1712 = vadd.f32 0.0, %v1711
    %v1713 = vpop.f32.mrb[0].mxu0
    %1714 = vmatprep.mubr.bf16.mxu0 0
    %1715 = vmatmul.mubr.bf16.gmra.mrb[0].mxu0 %v1629
    %v1716 = vpop.f32.mrb[0].mxu0
    %v1717 = vadd.f32 0.0, %v1716
    %v1718 = vpop.f32.mrb[0].mxu0
    %v1719 = vpop.f32.mrb[0].mxu0
    %v1720 = vadd.f32 0.0, %v1719
    %v1721 = vpop.f32.mrb[0].mxu0
    %1722 = vmatprep.mubr.bf16.mxu0 0
    %1723 = vmatmul.mubr.bf16.gmra.mrb[0].mxu0 %v1632
    %v1724 = vpop.f32.mrb[0].mxu0
    %v1725 = vadd.f32 0.0, %v1724
    %v1726 = vpop.f32.mrb[0].mxu0
    %v1727 = vpop.f32.mrb[0].mxu0
    %v1728 = vadd.f32 0.0, %v1727
    %v1729 = vpop.f32.mrb[0].mxu0
    %1730 = vdwg.mxu0
    %v1731 = vadd.f32 %v1537, %v1669
    %v1732 = vadd.f32 %v1538, %v1672
    %v1733 = vadd.f32 %v1539, %v1677
    %v1734 = vadd.f32 %v1540, %v1680
    %v1735 = vadd.f32 %v1541, %v1685
    %v1736 = vadd.f32 %v1542, %v1688
    %v1737 = vadd.f32 %v1543, %v1693
    %v1738 = vadd.f32 %v1544, %v1696
    %v1739 = vadd.f32 %v1545, %v1701
    %v1740 = vadd.f32 %v1546, %v1704
    %v1741 = vadd.f32 %v1547, %v1709
    %v1742 = vadd.f32 %v1548, %v1712
    %v1743 = vadd.f32 %v1549, %v1717
    %v1744 = vadd.f32 %v1550, %v1720
    %v1745 = vadd.f32 %v1551, %v1725
    %v1746 = vadd.f32 %v1552, %v1728
    %v1747 = vld [vmem:[%s5] sm:$0x1]
    %v1749 = vlaneseq
    %v1750 = vshrl.u32 %v1749, 7
    %v1751 = vsub.s32 0, %v1750
    %v1752 = vrot.slane %v1747, %v1751
    %v1754 = vadd.f32 %v1731, %v1752
    %v1755 = vadd.f32 %v1732, %v1752
    %v1756 = vadd.f32 %v1733, %v1752
    %v1757 = vadd.f32 %v1734, %v1752
    %v1758 = vadd.f32 %v1735, %v1752
    %v1759 = vadd.f32 %v1736, %v1752
    %v1760 = vadd.f32 %v1737, %v1752
    %v1761 = vadd.f32 %v1738, %v1752
    %v1762 = vadd.f32 %v1739, %v1752
    %v1763 = vadd.f32 %v1740, %v1752
    %v1764 = vadd.f32 %v1741, %v1752
    %v1765 = vadd.f32 %v1742, %v1752
    %v1766 = vadd.f32 %v1743, %v1752
    %v1767 = vadd.f32 %v1744, %v1752
    %v1768 = vadd.f32 %v1745, %v1752
    %v1769 = vadd.f32 %v1746, %v1752
    %v1770 = vmax.f32 %v1754, 0.0
    %v1771 = vmax.f32 %v1755, 0.0
    %v1772 = vmax.f32 %v1756, 0.0
    %v1773 = vmax.f32 %v1757, 0.0
    %v1774 = vmax.f32 %v1758, 0.0
    %v1775 = vmax.f32 %v1759, 0.0
    %v1776 = vmax.f32 %v1760, 0.0
    %v1777 = vmax.f32 %v1761, 0.0
    %v1778 = vmax.f32 %v1762, 0.0
    %v1779 = vmax.f32 %v1763, 0.0
    %v1780 = vmax.f32 %v1764, 0.0
    %v1781 = vmax.f32 %v1765, 0.0
    %v1782 = vmax.f32 %v1766, 0.0
    %v1783 = vmax.f32 %v1767, 0.0
    %v1784 = vmax.f32 %v1768, 0.0
    %v1785 = vmax.f32 %v1769, 0.0
    %1786 = vst [vmem:[#allocation2] sm:$0xff] 0.0
    %1787 = vst [vmem:[#allocation2 + $0x8] sm:$0x3] 0.0
    %1788 = vst [vmem:[#allocation2 + $0x10] sm:$0xff] 0.0
    %1789 = vst [vmem:[#allocation2 + $0x18] sm:$0x3] 0.0
    %1790 = vst [vmem:[#allocation2 + $0x20] sm:$0xff] 0.0
    %1791 = vst [vmem:[#allocation2 + $0x28] sm:$0x3] 0.0
    %1792 = vst [vmem:[#allocation2 + $0x30] sm:$0xff] 0.0
    %1793 = vst [vmem:[#allocation2 + $0x38] sm:$0x3] 0.0
    %1794 = vst [vmem:[#allocation2 + $0x40] sm:$0xff] 0.0
    %1795 = vst [vmem:[#allocation2 + $0x48] sm:$0x3] 0.0
    %1796 = vst [vmem:[#allocation2 + $0x50] sm:$0xff] 0.0
    %1797 = vst [vmem:[#allocation2 + $0x58] sm:$0x3] 0.0
    %1798 = vst [vmem:[#allocation2 + $0x60] sm:$0xff] 0.0
    %1799 = vst [vmem:[#allocation2 + $0x68] sm:$0x3] 0.0
    %1800 = vst [vmem:[#allocation2 + $0x70] sm:$0xff] 0.0
    %1801 = vst [vmem:[#allocation2 + $0x78] sm:$0x3] 0.0
    %1802 = vst [vmem:[#allocation2 + $0x80] sm:$0xff] 0.0
    %1803 = vst [vmem:[#allocation2 + $0x88] sm:$0x3] 0.0
    %1804 = vst [vmem:[#allocation2 + $0x90] sm:$0xff] 0.0
    %1805 = vst [vmem:[#allocation2 + $0x98] sm:$0x3] 0.0
    %1806 = vst [vmem:[#allocation2 + $0xa0] sm:$0xff] 0.0
    %1807 = vst [vmem:[#allocation2 + $0xa8] sm:$0x3] 0.0
    %1808 = vst [vmem:[#allocation2 + $0xb0] sm:$0xff] 0.0
    %1809 = vst [vmem:[#allocation2 + $0xb8] sm:$0x3] 0.0
    %1810 = vst [vmem:[#allocation2 + $0xc0] sm:$0xff] 0.0
    %1811 = vst [vmem:[#allocation2 + $0xc8] sm:$0x3] 0.0
    %1812 = vst [vmem:[#allocation2 + $0xd0] sm:$0xff] 0.0
    %1813 = vst [vmem:[#allocation2 + $0xd8] sm:$0x3] 0.0
    %1814 = vst [vmem:[#allocation2 + $0xe0] sm:$0xff] 0.0
    %1815 = vst [vmem:[#allocation2 + $0xe8] sm:$0x3] 0.0
    %1816 = vst [vmem:[#allocation2 + $0xf0] sm:$0xff] 0.0
    %1817 = vst [vmem:[#allocation2 + $0xf8] sm:$0x3] 0.0
    %1818 = vst [vmem:[#allocation2 + $0x100] sm:$0xff] 0.0
    %1819 = vst [vmem:[#allocation2 + $0x108] sm:$0x3] 0.0
    %1820 = vst [vmem:[#allocation2 + $0x110] sm:$0xff] 0.0
    %1821 = vst [vmem:[#allocation2 + $0x118] sm:$0x3] 0.0
    %1822 = vst [vmem:[#allocation2 + $0x120] sm:$0xff] 0.0
    %1823 = vst [vmem:[#allocation2 + $0x128] sm:$0x3] 0.0
    %1824 = vst [vmem:[#allocation2 + $0x130] sm:$0xff] 0.0
    %1825 = vst [vmem:[#allocation2 + $0x138] sm:$0x3] 0.0
    %s1826 = scalar_lea.vmem [#allocation2], 16
    %1827 = vst [vmem:[%s1826 + $0x1] sm:$0xff] %v1770
    %1828 = vst [vmem:[%s1826 + $0x11] sm:$0xff] %v1771
    %1829 = vst [vmem:[%s1826 + $0x21] sm:$0xff] %v1772
    %1830 = vst [vmem:[%s1826 + $0x31] sm:$0xff] %v1773
    %1831 = vst [vmem:[%s1826 + $0x41] sm:$0xff] %v1774
    %1832 = vst [vmem:[%s1826 + $0x51] sm:$0xff] %v1775
    %1833 = vst [vmem:[%s1826 + $0x61] sm:$0xff] %v1776
    %1834 = vst [vmem:[%s1826 + $0x71] sm:$0xff] %v1777
    %1835 = vst [vmem:[%s1826 + $0xa1] sm:$0xff] %v1778
    %1836 = vst [vmem:[%s1826 + $0xb1] sm:$0xff] %v1779
    %1837 = vst [vmem:[%s1826 + $0xc1] sm:$0xff] %v1780
    %1838 = vst [vmem:[%s1826 + $0xd1] sm:$0xff] %v1781
    %1839 = vst [vmem:[%s1826 + $0xe1] sm:$0xff] %v1782
    %1840 = vst [vmem:[%s1826 + $0xf1] sm:$0xff] %v1783
    %1841 = vst [vmem:[%s1826 + $0x101] sm:$0xff] %v1784
    %1842 = vst [vmem:[%s1826 + $0x111] sm:$0xff] %v1785
    %v1843 = vld [vmem:[#allocation2] sm:$0xff]
    %v1844 = vld [vmem:[#allocation2 + $0x10] sm:$0xff]
    %v1845 = vld [vmem:[#allocation2 + $0x20] sm:$0xff]
    %v1846 = vld [vmem:[#allocation2 + $0x30] sm:$0xff]
    %v1847 = vld [vmem:[#allocation2 + $0x40] sm:$0xff]
    %v1848 = vld [vmem:[#allocation2 + $0x50] sm:$0xff]
    %v1849 = vld [vmem:[#allocation2 + $0x60] sm:$0xff]
    %v1850 = vld [vmem:[#allocation2 + $0x70] sm:$0xff]
    %v1851 = vld [vmem:[#allocation2 + $0xa0] sm:$0xff]
    %v1852 = vld [vmem:[#allocation2 + $0xb0] sm:$0xff]
    %v1853 = vld [vmem:[#allocation2 + $0xc0] sm:$0xff]
    %v1854 = vld [vmem:[#allocation2 + $0xd0] sm:$0xff]
    %v1855 = vld [vmem:[#allocation2 + $0xe0] sm:$0xff]
    %v1856 = vld [vmem:[#allocation2 + $0xf0] sm:$0xff]
    %v1857 = vld [vmem:[#allocation2 + $0x100] sm:$0xff]
    %v1858 = vld [vmem:[#allocation2 + $0x110] sm:$0xff]
    %v1859 = vpack.c.bf16 %v1844, %v1843
    %v1860 = vpack.c.bf16 %v1846, %v1845
    %v1861 = vpack.c.bf16 %v1848, %v1847
    %v1862 = vpack.c.bf16 %v1850, %v1849
    %v1863 = vpack.c.bf16 %v1852, %v1851
    %v1864 = vpack.c.bf16 %v1854, %v1853
    %v1865 = vpack.c.bf16 %v1856, %v1855
    %v1866 = vpack.c.bf16 %v1858, %v1857
    %v1867 = vld [vmem:[%s6] sm:$0xf]
    %v1868 = vld [vmem:[%s6 + $0x4] sm:$0xf]
    %v1869 = vld [vmem:[%s6 + $0x8] sm:$0xf]
    %v1870 = vld [vmem:[%s6 + $0xc] sm:$0xf]
    %v1871 = vld [vmem:[%s6 + $0x10] sm:$0xf]
    %v1872 = vld [vmem:[%s6 + $0x14] sm:$0xf]
    %v1873 = vld [vmem:[%s6 + $0x18] sm:$0xf]
    %v1874 = vld [vmem:[%s6 + $0x1c] sm:$0xf]
    %v1875 = vld [vmem:[%s6 + $0x20] sm:$0xf]
    %v1876 = vld [vmem:[%s6 + $0x24] sm:$0xf]
    %v1877 = vld [vmem:[%s6 + $0x28] sm:$0xf]
    %v1878 = vld [vmem:[%s6 + $0x2c] sm:$0xf]
    %v1879 = vld [vmem:[%s6 + $0x30] sm:$0xf]
    %v1880 = vld [vmem:[%s6 + $0x34] sm:$0xf]
    %v1881 = vld [vmem:[%s6 + $0x38] sm:$0xf]
    %v1882 = vld [vmem:[%s6 + $0x3c] sm:$0xf]
    %v1883 = vld [vmem:[#allocation2 + $0x1] sm:$0xff]
    %v1884 = vld [vmem:[#allocation2 + $0x11] sm:$0xff]
    %v1885 = vld [vmem:[#allocation2 + $0x21] sm:$0xff]
    %v1886 = vld [vmem:[#allocation2 + $0x31] sm:$0xff]
    %v1887 = vld [vmem:[#allocation2 + $0x41] sm:$0xff]
    %v1888 = vld [vmem:[#allocation2 + $0x51] sm:$0xff]
    %v1889 = vld [vmem:[#allocation2 + $0x61] sm:$0xff]
    %v1890 = vld [vmem:[#allocation2 + $0x71] sm:$0xff]
    %v1891 = vld [vmem:[#allocation2 + $0xa1] sm:$0xff]
    %v1892 = vld [vmem:[#allocation2 + $0xb1] sm:$0xff]
    %v1893 = vld [vmem:[#allocation2 + $0xc1] sm:$0xff]
    %v1894 = vld [vmem:[#allocation2 + $0xd1] sm:$0xff]
    %v1895 = vld [vmem:[#allocation2 + $0xe1] sm:$0xff]
    %v1896 = vld [vmem:[#allocation2 + $0xf1] sm:$0xff]
    %v1897 = vld [vmem:[#allocation2 + $0x101] sm:$0xff]
    %v1898 = vld [vmem:[#allocation2 + $0x111] sm:$0xff]
    %v1899 = vpack.c.bf16 %v1884, %v1883
    %v1900 = vpack.c.bf16 %v1886, %v1885
    %v1901 = vpack.c.bf16 %v1888, %v1887
    %v1902 = vpack.c.bf16 %v1890, %v1889
    %v1903 = vpack.c.bf16 %v1892, %v1891
    %v1904 = vpack.c.bf16 %v1894, %v1893
    %v1905 = vpack.c.bf16 %v1896, %v1895
    %v1906 = vpack.c.bf16 %v1898, %v1897
    %s1907 = scalar_lea.vmem %s6, 64
    %v1908 = vld [vmem:[%s1907] sm:$0xf]
    %v1909 = vld [vmem:[%s1907 + $0x4] sm:$0xf]
    %v1910 = vld [vmem:[%s1907 + $0x8] sm:$0xf]
    %v1911 = vld [vmem:[%s1907 + $0xc] sm:$0xf]
    %v1912 = vld [vmem:[%s1907 + $0x10] sm:$0xf]
    %v1913 = vld [vmem:[%s1907 + $0x14] sm:$0xf]
    %v1914 = vld [vmem:[%s1907 + $0x18] sm:$0xf]
    %v1915 = vld [vmem:[%s1907 + $0x1c] sm:$0xf]
    %v1916 = vld [vmem:[%s1907 + $0x20] sm:$0xf]
    %v1917 = vld [vmem:[%s1907 + $0x24] sm:$0xf]
    %v1918 = vld [vmem:[%s1907 + $0x28] sm:$0xf]
    %v1919 = vld [vmem:[%s1907 + $0x2c] sm:$0xf]
    %v1920 = vld [vmem:[%s1907 + $0x30] sm:$0xf]
    %v1921 = vld [vmem:[%s1907 + $0x34] sm:$0xf]
    %v1922 = vld [vmem:[%s1907 + $0x38] sm:$0xf]
    %v1923 = vld [vmem:[%s1907 + $0x3c] sm:$0xf]
    %v1940 = vunpack.c.l.b16 %v1908
    %v1941 = vunpack.c.l.b16 %v1909
    %v1942 = vunpack.c.l.b16 %v1910
    %v1943 = vunpack.c.l.b16 %v1911
    %v1944 = vunpack.c.l.b16 %v1912
    %v1945 = vunpack.c.l.b16 %v1913
    %v1946 = vunpack.c.l.b16 %v1914
    %v1947 = vunpack.c.l.b16 %v1915
    %v1948 = vunpack.c.l.b16 %v1916
    %v1949 = vunpack.c.l.b16 %v1917
    %v1950 = vunpack.c.l.b16 %v1918
    %v1951 = vunpack.c.l.b16 %v1919
    %v1952 = vunpack.c.l.b16 %v1920
    %v1953 = vunpack.c.l.b16 %v1921
    %v1954 = vunpack.c.l.b16 %v1922
    %v1955 = vunpack.c.l.b16 %v1923
    %v1956 = vpack.c.b16 %v1941, %v1940
    %v1957 = vpack.c.b16 %v1943, %v1942
    %v1958 = vpack.c.b16 %v1945, %v1944
    %v1959 = vpack.c.b16 %v1947, %v1946
    %v1960 = vpack.c.b16 %v1949, %v1948
    %v1961 = vpack.c.b16 %v1951, %v1950
    %v1962 = vpack.c.b16 %v1953, %v1952
    %v1963 = vpack.c.b16 %v1955, %v1954
    %1972 = vmatprep.subr.bf16.mxu0 0
    %1973 = vmatpush1.bf16.msra.mxu0 %v1956
    %1974 = vmatprep.subr.bf16.mxu0 0
    %1975 = vmatpush1.bf16.msra.mxu0 %v1957
    %1976 = vmatprep.subr.bf16.mxu0 0
    %1977 = vmatpush1.bf16.msra.mxu0 %v1958
    %1978 = vmatprep.subr.bf16.mxu0 0
    %1979 = vmatpush1.bf16.msra.mxu0 %v1959
    %1980 = vmatprep.subr.bf16.mxu0 0
    %1981 = vmatpush1.bf16.msra.mxu0 %v1960
    %1982 = vmatprep.subr.bf16.mxu0 0
    %1983 = vmatpush1.bf16.msra.mxu0 %v1961
    %1984 = vmatprep.subr.bf16.mxu0 0
    %1985 = vmatpush1.bf16.msra.mxu0 %v1962
    %1986 = vmatprep.subr.bf16.mxu0 0
    %1987 = vmatpush1.bf16.msra.mxu0 %v1963
    %1988 = vmatprep.subr.bf16.mxu0 0
    %1989 = vmatpush1.bf16.msra.mxu0 0
    %1990 = vmatprep.subr.bf16.mxu0 0
    %1991 = vmatpush1.bf16.msra.mxu0 0
    %1992 = vmatprep.subr.bf16.mxu0 0
    %1993 = vmatpush1.bf16.msra.mxu0 0
    %1994 = vmatprep.subr.bf16.mxu0 0
    %1995 = vmatpush1.bf16.msra.mxu0 0
    %1996 = vmatprep.subr.bf16.mxu0 0
    %1997 = vmatpush1.bf16.msra.mxu0 0
    %1998 = vmatprep.subr.bf16.mxu0 0
    %1999 = vmatpush1.bf16.msra.mxu0 0
    %2000 = vmatprep.subr.bf16.mxu0 0
    %2001 = vmatpush1.bf16.msra.mxu0 0
    %2002 = vmatprep.subr.bf16.mxu0 0
    %2003 = vmatpush1.bf16.msra.mxu0 0
    %2004 = vmatprep.mubr.bf16.mxu0 0
    %2005 = vmatmul.mubr.bf16.gmra.mrb[0].mxu0 %v1899
    %v2006 = vpop.f32.mrb[0].mxu0
    %v2007 = vadd.f32 0.0, %v2006
    %v2008 = vpop.f32.mrb[0].mxu0
    %v2009 = vpop.f32.mrb[0].mxu0
    %v2010 = vadd.f32 0.0, %v2009
    %v2011 = vpop.f32.mrb[0].mxu0
    %2012 = vmatprep.mubr.bf16.mxu0 0
    %2013 = vmatmul.mubr.bf16.gmra.mrb[0].mxu0 %v1900
    %v2014 = vpop.f32.mrb[0].mxu0
    %v2015 = vadd.f32 0.0, %v2014
    %v2016 = vpop.f32.mrb[0].mxu0
    %v2017 = vpop.f32.mrb[0].mxu0
    %v2018 = vadd.f32 0.0, %v2017
    %v2019 = vpop.f32.mrb[0].mxu0
    %2020 = vmatprep.mubr.bf16.mxu0 0
    %2021 = vmatmul.mubr.bf16.gmra.mrb[0].mxu0 %v1901
    %v2022 = vpop.f32.mrb[0].mxu0
    %v2023 = vadd.f32 0.0, %v2022
    %v2024 = vpop.f32.mrb[0].mxu0
    %v2025 = vpop.f32.mrb[0].mxu0
    %v2026 = vadd.f32 0.0, %v2025
    %v2027 = vpop.f32.mrb[0].mxu0
    %2028 = vmatprep.mubr.bf16.mxu0 0
    %2029 = vmatmul.mubr.bf16.gmra.mrb[0].mxu0 %v1902
    %v2030 = vpop.f32.mrb[0].mxu0
    %v2031 = vadd.f32 0.0, %v2030
    %v2032 = vpop.f32.mrb[0].mxu0
    %v2033 = vpop.f32.mrb[0].mxu0
    %v2034 = vadd.f32 0.0, %v2033
    %v2035 = vpop.f32.mrb[0].mxu0
    %2036 = vmatprep.mubr.bf16.mxu0 0
    %2037 = vmatmul.mubr.bf16.gmra.mrb[0].mxu0 %v1903
    %v2038 = vpop.f32.mrb[0].mxu0
    %v2039 = vadd.f32 0.0, %v2038
    %v2040 = vpop.f32.mrb[0].mxu0
    %v2041 = vpop.f32.mrb[0].mxu0
    %v2042 = vadd.f32 0.0, %v2041
    %v2043 = vpop.f32.mrb[0].mxu0
    %2044 = vmatprep.mubr.bf16.mxu0 0
    %2045 = vmatmul.mubr.bf16.gmra.mrb[0].mxu0 %v1904
    %v2046 = vpop.f32.mrb[0].mxu0
    %v2047 = vadd.f32 0.0, %v2046
    %v2048 = vpop.f32.mrb[0].mxu0
    %v2049 = vpop.f32.mrb[0].mxu0
    %v2050 = vadd.f32 0.0, %v2049
    %v2051 = vpop.f32.mrb[0].mxu0
    %2052 = vmatprep.mubr.bf16.mxu0 0
    %2053 = vmatmul.mubr.bf16.gmra.mrb[0].mxu0 %v1905
    %v2054 = vpop.f32.mrb[0].mxu0
    %v2055 = vadd.f32 0.0, %v2054
    %v2056 = vpop.f32.mrb[0].mxu0
    %v2057 = vpop.f32.mrb[0].mxu0
    %v2058 = vadd.f32 0.0, %v2057
    %v2059 = vpop.f32.mrb[0].mxu0
    %2060 = vmatprep.mubr.bf16.mxu0 0
    %2061 = vmatmul.mubr.bf16.gmra.mrb[0].mxu0 %v1906
    %v2062 = vpop.f32.mrb[0].mxu0
    %v2063 = vadd.f32 0.0, %v2062
    %v2064 = vpop.f32.mrb[0].mxu0
    %v2065 = vpop.f32.mrb[0].mxu0
    %v2066 = vadd.f32 0.0, %v2065
    %v2067 = vpop.f32.mrb[0].mxu0
    %2068 = vdwg.mxu0
    %v2085 = vunpack.c.l.b16 %v1867
    %v2086 = vunpack.c.l.b16 %v1868
    %v2087 = vunpack.c.l.b16 %v1869
    %v2088 = vunpack.c.l.b16 %v1870
    %v2089 = vunpack.c.l.b16 %v1871
    %v2090 = vunpack.c.l.b16 %v1872
    %v2091 = vunpack.c.l.b16 %v1873
    %v2092 = vunpack.c.l.b16 %v1874
    %v2093 = vunpack.c.l.b16 %v1875
    %v2094 = vunpack.c.l.b16 %v1876
    %v2095 = vunpack.c.l.b16 %v1877
    %v2096 = vunpack.c.l.b16 %v1878
    %v2097 = vunpack.c.l.b16 %v1879
    %v2098 = vunpack.c.l.b16 %v1880
    %v2099 = vunpack.c.l.b16 %v1881
    %v2100 = vunpack.c.l.b16 %v1882
    %v2101 = vpack.c.b16 %v2086, %v2085
    %v2102 = vpack.c.b16 %v2088, %v2087
    %v2103 = vpack.c.b16 %v2090, %v2089
    %v2104 = vpack.c.b16 %v2092, %v2091
    %v2105 = vpack.c.b16 %v2094, %v2093
    %v2106 = vpack.c.b16 %v2096, %v2095
    %v2107 = vpack.c.b16 %v2098, %v2097
    %v2108 = vpack.c.b16 %v2100, %v2099
    %2117 = vmatprep.subr.bf16.mxu0 0
    %2118 = vmatpush1.bf16.msra.mxu0 %v2101
    %2119 = vmatprep.subr.bf16.mxu0 0
    %2120 = vmatpush1.bf16.msra.mxu0 %v2102
    %2121 = vmatprep.subr.bf16.mxu0 0
    %2122 = vmatpush1.bf16.msra.mxu0 %v2103
    %2123 = vmatprep.subr.bf16.mxu0 0
    %2124 = vmatpush1.bf16.msra.mxu0 %v2104
    %2125 = vmatprep.subr.bf16.mxu0 0
    %2126 = vmatpush1.bf16.msra.mxu0 %v2105
    %2127 = vmatprep.subr.bf16.mxu0 0
    %2128 = vmatpush1.bf16.msra.mxu0 %v2106
    %2129 = vmatprep.subr.bf16.mxu0 0
    %2130 = vmatpush1.bf16.msra.mxu0 %v2107
    %2131 = vmatprep.subr.bf16.mxu0 0
    %2132 = vmatpush1.bf16.msra.mxu0 %v2108
    %2133 = vmatprep.subr.bf16.mxu0 0
    %2134 = vmatpush1.bf16.msra.mxu0 0
    %2135 = vmatprep.subr.bf16.mxu0 0
    %2136 = vmatpush1.bf16.msra.mxu0 0
    %2137 = vmatprep.subr.bf16.mxu0 0
    %2138 = vmatpush1.bf16.msra.mxu0 0
    %2139 = vmatprep.subr.bf16.mxu0 0
    %2140 = vmatpush1.bf16.msra.mxu0 0
    %2141 = vmatprep.subr.bf16.mxu0 0
    %2142 = vmatpush1.bf16.msra.mxu0 0
    %2143 = vmatprep.subr.bf16.mxu0 0
    %2144 = vmatpush1.bf16.msra.mxu0 0
    %2145 = vmatprep.subr.bf16.mxu0 0
    %2146 = vmatpush1.bf16.msra.mxu0 0
    %2147 = vmatprep.subr.bf16.mxu0 0
    %2148 = vmatpush1.bf16.msra.mxu0 0
    %2149 = vmatprep.mubr.bf16.mxu0 0
    %2150 = vmatmul.mubr.bf16.gmra.mrb[0].mxu0 %v1859
    %v2151 = vpop.f32.mrb[0].mxu0
    %v2152 = vadd.f32 %v2007, %v2151
    %v2153 = vpop.f32.mrb[0].mxu0
    %v2154 = vpop.f32.mrb[0].mxu0
    %v2155 = vadd.f32 %v2010, %v2154
    %v2156 = vpop.f32.mrb[0].mxu0
    %2157 = vmatprep.mubr.bf16.mxu0 0
    %2158 = vmatmul.mubr.bf16.gmra.mrb[0].mxu0 %v1860
    %v2159 = vpop.f32.mrb[0].mxu0
    %v2160 = vadd.f32 %v2015, %v2159
    %v2161 = vpop.f32.mrb[0].mxu0
    %v2162 = vpop.f32.mrb[0].mxu0
    %v2163 = vadd.f32 %v2018, %v2162
    %v2164 = vpop.f32.mrb[0].mxu0
    %2165 = vmatprep.mubr.bf16.mxu0 0
    %2166 = vmatmul.mubr.bf16.gmra.mrb[0].mxu0 %v1861
    %v2167 = vpop.f32.mrb[0].mxu0
    %v2168 = vadd.f32 %v2023, %v2167
    %v2169 = vpop.f32.mrb[0].mxu0
    %v2170 = vpop.f32.mrb[0].mxu0
    %v2171 = vadd.f32 %v2026, %v2170
    %v2172 = vpop.f32.mrb[0].mxu0
    %2173 = vmatprep.mubr.bf16.mxu0 0
    %2174 = vmatmul.mubr.bf16.gmra.mrb[0].mxu0 %v1862
    %v2175 = vpop.f32.mrb[0].mxu0
    %v2176 = vadd.f32 %v2031, %v2175
    %v2177 = vpop.f32.mrb[0].mxu0
    %v2178 = vpop.f32.mrb[0].mxu0
    %v2179 = vadd.f32 %v2034, %v2178
    %v2180 = vpop.f32.mrb[0].mxu0
    %2181 = vmatprep.mubr.bf16.mxu0 0
    %2182 = vmatmul.mubr.bf16.gmra.mrb[0].mxu0 %v1863
    %v2183 = vpop.f32.mrb[0].mxu0
    %v2184 = vadd.f32 %v2039, %v2183
    %v2185 = vpop.f32.mrb[0].mxu0
    %v2186 = vpop.f32.mrb[0].mxu0
    %v2187 = vadd.f32 %v2042, %v2186
    %v2188 = vpop.f32.mrb[0].mxu0
    %2189 = vmatprep.mubr.bf16.mxu0 0
    %2190 = vmatmul.mubr.bf16.gmra.mrb[0].mxu0 %v1864
    %v2191 = vpop.f32.mrb[0].mxu0
    %v2192 = vadd.f32 %v2047, %v2191
    %v2193 = vpop.f32.mrb[0].mxu0
    %v2194 = vpop.f32.mrb[0].mxu0
    %v2195 = vadd.f32 %v2050, %v2194
    %v2196 = vpop.f32.mrb[0].mxu0
    %2197 = vmatprep.mubr.bf16.mxu0 0
    %2198 = vmatmul.mubr.bf16.gmra.mrb[0].mxu0 %v1865
    %v2199 = vpop.f32.mrb[0].mxu0
    %v2200 = vadd.f32 %v2055, %v2199
    %v2201 = vpop.f32.mrb[0].mxu0
    %v2202 = vpop.f32.mrb[0].mxu0
    %v2203 = vadd.f32 %v2058, %v2202
    %v2204 = vpop.f32.mrb[0].mxu0
    %2205 = vmatprep.mubr.bf16.mxu0 0
    %2206 = vmatmul.mubr.bf16.gmra.mrb[0].mxu0 %v1866
    %v2207 = vpop.f32.mrb[0].mxu0
    %v2208 = vadd.f32 %v2063, %v2207
    %v2209 = vpop.f32.mrb[0].mxu0
    %v2210 = vpop.f32.mrb[0].mxu0
    %v2211 = vadd.f32 %v2066, %v2210
    %v2212 = vpop.f32.mrb[0].mxu0
    %2213 = vdwg.mxu0
    %v2214 = vld [vmem:[#allocation2 + $0x2] sm:$0xff]
    %v2215 = vld [vmem:[#allocation2 + $0x12] sm:$0xff]
    %v2216 = vld [vmem:[#allocation2 + $0x22] sm:$0xff]
    %v2217 = vld [vmem:[#allocation2 + $0x32] sm:$0xff]
    %v2218 = vld [vmem:[#allocation2 + $0x42] sm:$0xff]
    %v2219 = vld [vmem:[#allocation2 + $0x52] sm:$0xff]
    %v2220 = vld [vmem:[#allocation2 + $0x62] sm:$0xff]
    %v2221 = vld [vmem:[#allocation2 + $0x72] sm:$0xff]
    %v2222 = vld [vmem:[#allocation2 + $0xa2] sm:$0xff]
    %v2223 = vld [vmem:[#allocation2 + $0xb2] sm:$0xff]
    %v2224 = vld [vmem:[#allocation2 + $0xc2] sm:$0xff]
    %v2225 = vld [vmem:[#allocation2 + $0xd2] sm:$0xff]
    %v2226 = vld [vmem:[#allocation2 + $0xe2] sm:$0xff]
    %v2227 = vld [vmem:[#allocation2 + $0xf2] sm:$0xff]
    %v2228 = vld [vmem:[#allocation2 + $0x102] sm:$0xff]
    %v2229 = vld [vmem:[#allocation2 + $0x112] sm:$0xff]
    %v2230 = vpack.c.bf16 %v2215, %v2214
    %v2231 = vpack.c.bf16 %v2217, %v2216
    %v2232 = vpack.c.bf16 %v2219, %v2218
    %v2233 = vpack.c.bf16 %v2221, %v2220
    %v2234 = vpack.c.bf16 %v2223, %v2222
    %v2235 = vpack.c.bf16 %v2225, %v2224
    %v2236 = vpack.c.bf16 %v2227, %v2226
    %v2237 = vpack.c.bf16 %v2229, %v2228
    %s2238 = scalar_lea.vmem %s6, 128
    %v2239 = vld [vmem:[%s2238] sm:$0xf]
    %v2240 = vld [vmem:[%s2238 + $0x4] sm:$0xf]
    %v2241 = vld [vmem:[%s2238 + $0x8] sm:$0xf]
    %v2242 = vld [vmem:[%s2238 + $0xc] sm:$0xf]
    %v2243 = vld [vmem:[%s2238 + $0x10] sm:$0xf]
    %v2244 = vld [vmem:[%s2238 + $0x14] sm:$0xf]
    %v2245 = vld [vmem:[%s2238 + $0x18] sm:$0xf]
    %v2246 = vld [vmem:[%s2238 + $0x1c] sm:$0xf]
    %v2247 = vld [vmem:[%s2238 + $0x20] sm:$0xf]
    %v2248 = vld [vmem:[%s2238 + $0x24] sm:$0xf]
    %v2249 = vld [vmem:[%s2238 + $0x28] sm:$0xf]
    %v2250 = vld [vmem:[%s2238 + $0x2c] sm:$0xf]
    %v2251 = vld [vmem:[%s2238 + $0x30] sm:$0xf]
    %v2252 = vld [vmem:[%s2238 + $0x34] sm:$0xf]
    %v2253 = vld [vmem:[%s2238 + $0x38] sm:$0xf]
    %v2254 = vld [vmem:[%s2238 + $0x3c] sm:$0xf]
    %v2271 = vunpack.c.l.b16 %v2239
    %v2272 = vunpack.c.l.b16 %v2240
    %v2273 = vunpack.c.l.b16 %v2241
    %v2274 = vunpack.c.l.b16 %v2242
    %v2275 = vunpack.c.l.b16 %v2243
    %v2276 = vunpack.c.l.b16 %v2244
    %v2277 = vunpack.c.l.b16 %v2245
    %v2278 = vunpack.c.l.b16 %v2246
    %v2279 = vunpack.c.l.b16 %v2247
    %v2280 = vunpack.c.l.b16 %v2248
    %v2281 = vunpack.c.l.b16 %v2249
    %v2282 = vunpack.c.l.b16 %v2250
    %v2283 = vunpack.c.l.b16 %v2251
    %v2284 = vunpack.c.l.b16 %v2252
    %v2285 = vunpack.c.l.b16 %v2253
    %v2286 = vunpack.c.l.b16 %v2254
    %v2287 = vpack.c.b16 %v2272, %v2271
    %v2288 = vpack.c.b16 %v2274, %v2273
    %v2289 = vpack.c.b16 %v2276, %v2275
    %v2290 = vpack.c.b16 %v2278, %v2277
    %v2291 = vpack.c.b16 %v2280, %v2279
    %v2292 = vpack.c.b16 %v2282, %v2281
    %v2293 = vpack.c.b16 %v2284, %v2283
    %v2294 = vpack.c.b16 %v2286, %v2285
    %2303 = vmatprep.subr.bf16.mxu0 0
    %2304 = vmatpush1.bf16.msra.mxu0 %v2287
    %2305 = vmatprep.subr.bf16.mxu0 0
    %2306 = vmatpush1.bf16.msra.mxu0 %v2288
    %2307 = vmatprep.subr.bf16.mxu0 0
    %2308 = vmatpush1.bf16.msra.mxu0 %v2289
    %2309 = vmatprep.subr.bf16.mxu0 0
    %2310 = vmatpush1.bf16.msra.mxu0 %v2290
    %2311 = vmatprep.subr.bf16.mxu0 0
    %2312 = vmatpush1.bf16.msra.mxu0 %v2291
    %2313 = vmatprep.subr.bf16.mxu0 0
    %2314 = vmatpush1.bf16.msra.mxu0 %v2292
    %2315 = vmatprep.subr.bf16.mxu0 0
    %2316 = vmatpush1.bf16.msra.mxu0 %v2293
    %2317 = vmatprep.subr.bf16.mxu0 0
    %2318 = vmatpush1.bf16.msra.mxu0 %v2294
    %2319 = vmatprep.subr.bf16.mxu0 0
    %2320 = vmatpush1.bf16.msra.mxu0 0
    %2321 = vmatprep.subr.bf16.mxu0 0
    %2322 = vmatpush1.bf16.msra.mxu0 0
    %2323 = vmatprep.subr.bf16.mxu0 0
    %2324 = vmatpush1.bf16.msra.mxu0 0
    %2325 = vmatprep.subr.bf16.mxu0 0
    %2326 = vmatpush1.bf16.msra.mxu0 0
    %2327 = vmatprep.subr.bf16.mxu0 0
    %2328 = vmatpush1.bf16.msra.mxu0 0
    %2329 = vmatprep.subr.bf16.mxu0 0
    %2330 = vmatpush1.bf16.msra.mxu0 0
    %2331 = vmatprep.subr.bf16.mxu0 0
    %2332 = vmatpush1.bf16.msra.mxu0 0
    %2333 = vmatprep.subr.bf16.mxu0 0
    %2334 = vmatpush1.bf16.msra.mxu0 0
    %2335 = vmatprep.mubr.bf16.mxu0 0
    %2336 = vmatmul.mubr.bf16.gmra.mrb[0].mxu0 %v2230
    %v2337 = vpop.f32.mrb[0].mxu0
    %v2338 = vadd.f32 0.0, %v2337
    %v2339 = vpop.f32.mrb[0].mxu0
    %v2340 = vpop.f32.mrb[0].mxu0
    %v2341 = vadd.f32 0.0, %v2340
    %v2342 = vpop.f32.mrb[0].mxu0
    %2343 = vmatprep.mubr.bf16.mxu0 0
    %2344 = vmatmul.mubr.bf16.gmra.mrb[0].mxu0 %v2231
    %v2345 = vpop.f32.mrb[0].mxu0
    %v2346 = vadd.f32 0.0, %v2345
    %v2347 = vpop.f32.mrb[0].mxu0
    %v2348 = vpop.f32.mrb[0].mxu0
    %v2349 = vadd.f32 0.0, %v2348
    %v2350 = vpop.f32.mrb[0].mxu0
    %2351 = vmatprep.mubr.bf16.mxu0 0
    %2352 = vmatmul.mubr.bf16.gmra.mrb[0].mxu0 %v2232
    %v2353 = vpop.f32.mrb[0].mxu0
    %v2354 = vadd.f32 0.0, %v2353
    %v2355 = vpop.f32.mrb[0].mxu0
    %v2356 = vpop.f32.mrb[0].mxu0
    %v2357 = vadd.f32 0.0, %v2356
    %v2358 = vpop.f32.mrb[0].mxu0
    %2359 = vmatprep.mubr.bf16.mxu0 0
    %2360 = vmatmul.mubr.bf16.gmra.mrb[0].mxu0 %v2233
    %v2361 = vpop.f32.mrb[0].mxu0
    %v2362 = vadd.f32 0.0, %v2361
    %v2363 = vpop.f32.mrb[0].mxu0
    %v2364 = vpop.f32.mrb[0].mxu0
    %v2365 = vadd.f32 0.0, %v2364
    %v2366 = vpop.f32.mrb[0].mxu0
    %2367 = vmatprep.mubr.bf16.mxu0 0
    %2368 = vmatmul.mubr.bf16.gmra.mrb[0].mxu0 %v2234
    %v2369 = vpop.f32.mrb[0].mxu0
    %v2370 = vadd.f32 0.0, %v2369
    %v2371 = vpop.f32.mrb[0].mxu0
    %v2372 = vpop.f32.mrb[0].mxu0
    %v2373 = vadd.f32 0.0, %v2372
    %v2374 = vpop.f32.mrb[0].mxu0
    %2375 = vmatprep.mubr.bf16.mxu0 0
    %2376 = vmatmul.mubr.bf16.gmra.mrb[0].mxu0 %v2235
    %v2377 = vpop.f32.mrb[0].mxu0
    %v2378 = vadd.f32 0.0, %v2377
    %v2379 = vpop.f32.mrb[0].mxu0
    %v2380 = vpop.f32.mrb[0].mxu0
    %v2381 = vadd.f32 0.0, %v2380
    %v2382 = vpop.f32.mrb[0].mxu0
    %2383 = vmatprep.mubr.bf16.mxu0 0
    %2384 = vmatmul.mubr.bf16.gmra.mrb[0].mxu0 %v2236
    %v2385 = vpop.f32.mrb[0].mxu0
    %v2386 = vadd.f32 0.0, %v2385
    %v2387 = vpop.f32.mrb[0].mxu0
    %v2388 = vpop.f32.mrb[0].mxu0
    %v2389 = vadd.f32 0.0, %v2388
    %v2390 = vpop.f32.mrb[0].mxu0
    %2391 = vmatprep.mubr.bf16.mxu0 0
    %2392 = vmatmul.mubr.bf16.gmra.mrb[0].mxu0 %v2237
    %v2393 = vpop.f32.mrb[0].mxu0
    %v2394 = vadd.f32 0.0, %v2393
    %v2395 = vpop.f32.mrb[0].mxu0
    %v2396 = vpop.f32.mrb[0].mxu0
    %v2397 = vadd.f32 0.0, %v2396
    %v2398 = vpop.f32.mrb[0].mxu0
    %2399 = vdwg.mxu0
    %v2400 = vadd.f32 %v2152, %v2338
    %v2401 = vadd.f32 %v2155, %v2341
    %v2402 = vadd.f32 %v2160, %v2346
    %v2403 = vadd.f32 %v2163, %v2349
    %v2404 = vadd.f32 %v2168, %v2354
    %v2405 = vadd.f32 %v2171, %v2357
    %v2406 = vadd.f32 %v2176, %v2362
    %v2407 = vadd.f32 %v2179, %v2365
    %v2408 = vadd.f32 %v2184, %v2370
    %v2409 = vadd.f32 %v2187, %v2373
    %v2410 = vadd.f32 %v2192, %v2378
    %v2411 = vadd.f32 %v2195, %v2381
    %v2412 = vadd.f32 %v2200, %v2386
    %v2413 = vadd.f32 %v2203, %v2389
    %v2414 = vadd.f32 %v2208, %v2394
    %v2415 = vadd.f32 %v2211, %v2397
    %v2416 = vld [vmem:[%s1826] sm:$0xff]
    %v2417 = vld [vmem:[%s1826 + $0x10] sm:$0xff]
    %v2418 = vld [vmem:[%s1826 + $0x20] sm:$0xff]
    %v2419 = vld [vmem:[%s1826 + $0x30] sm:$0xff]
    %v2420 = vld [vmem:[%s1826 + $0x40] sm:$0xff]
    %v2421 = vld [vmem:[%s1826 + $0x50] sm:$0xff]
    %v2422 = vld [vmem:[%s1826 + $0x60] sm:$0xff]
    %v2423 = vld [vmem:[%s1826 + $0x70] sm:$0xff]
    %v2424 = vld [vmem:[%s1826 + $0xa0] sm:$0xff]
    %v2425 = vld [vmem:[%s1826 + $0xb0] sm:$0xff]
    %v2426 = vld [vmem:[%s1826 + $0xc0] sm:$0xff]
    %v2427 = vld [vmem:[%s1826 + $0xd0] sm:$0xff]
    %v2428 = vld [vmem:[%s1826 + $0xe0] sm:$0xff]
    %v2429 = vld [vmem:[%s1826 + $0xf0] sm:$0xff]
    %v2430 = vld [vmem:[%s1826 + $0x100] sm:$0xff]
    %v2431 = vld [vmem:[%s1826 + $0x110] sm:$0xff]
    %v2432 = vpack.c.bf16 %v2417, %v2416
    %v2433 = vpack.c.bf16 %v2419, %v2418
    %v2434 = vpack.c.bf16 %v2421, %v2420
    %v2435 = vpack.c.bf16 %v2423, %v2422
    %v2436 = vpack.c.bf16 %v2425, %v2424
    %v2437 = vpack.c.bf16 %v2427, %v2426
    %v2438 = vpack.c.bf16 %v2429, %v2428
    %v2439 = vpack.c.bf16 %v2431, %v2430
    %s2440 = scalar_lea.vmem %s6, 192
    %v2441 = vld [vmem:[%s2440] sm:$0xf]
    %v2442 = vld [vmem:[%s2440 + $0x4] sm:$0xf]
    %v2443 = vld [vmem:[%s2440 + $0x8] sm:$0xf]
    %v2444 = vld [vmem:[%s2440 + $0xc] sm:$0xf]
    %v2445 = vld [vmem:[%s2440 + $0x10] sm:$0xf]
    %v2446 = vld [vmem:[%s2440 + $0x14] sm:$0xf]
    %v2447 = vld [vmem:[%s2440 + $0x18] sm:$0xf]
    %v2448 = vld [vmem:[%s2440 + $0x1c] sm:$0xf]
    %v2449 = vld [vmem:[%s2440 + $0x20] sm:$0xf]
    %v2450 = vld [vmem:[%s2440 + $0x24] sm:$0xf]
    %v2451 = vld [vmem:[%s2440 + $0x28] sm:$0xf]
    %v2452 = vld [vmem:[%s2440 + $0x2c] sm:$0xf]
    %v2453 = vld [vmem:[%s2440 + $0x30] sm:$0xf]
    %v2454 = vld [vmem:[%s2440 + $0x34] sm:$0xf]
    %v2455 = vld [vmem:[%s2440 + $0x38] sm:$0xf]
    %v2456 = vld [vmem:[%s2440 + $0x3c] sm:$0xf]
    %v2473 = vunpack.c.l.b16 %v2441
    %v2474 = vunpack.c.l.b16 %v2442
    %v2475 = vunpack.c.l.b16 %v2443
    %v2476 = vunpack.c.l.b16 %v2444
    %v2477 = vunpack.c.l.b16 %v2445
    %v2478 = vunpack.c.l.b16 %v2446
    %v2479 = vunpack.c.l.b16 %v2447
    %v2480 = vunpack.c.l.b16 %v2448
    %v2481 = vunpack.c.l.b16 %v2449
    %v2482 = vunpack.c.l.b16 %v2450
    %v2483 = vunpack.c.l.b16 %v2451
    %v2484 = vunpack.c.l.b16 %v2452
    %v2485 = vunpack.c.l.b16 %v2453
    %v2486 = vunpack.c.l.b16 %v2454
    %v2487 = vunpack.c.l.b16 %v2455
    %v2488 = vunpack.c.l.b16 %v2456
    %v2489 = vpack.c.b16 %v2474, %v2473
    %v2490 = vpack.c.b16 %v2476, %v2475
    %v2491 = vpack.c.b16 %v2478, %v2477
    %v2492 = vpack.c.b16 %v2480, %v2479
    %v2493 = vpack.c.b16 %v2482, %v2481
    %v2494 = vpack.c.b16 %v2484, %v2483
    %v2495 = vpack.c.b16 %v2486, %v2485
    %v2496 = vpack.c.b16 %v2488, %v2487
    %2505 = vmatprep.subr.bf16.mxu0 0
    %2506 = vmatpush1.bf16.msra.mxu0 %v2489
    %2507 = vmatprep.subr.bf16.mxu0 0
    %2508 = vmatpush1.bf16.msra.mxu0 %v2490
    %2509 = vmatprep.subr.bf16.mxu0 0
    %2510 = vmatpush1.bf16.msra.mxu0 %v2491
    %2511 = vmatprep.subr.bf16.mxu0 0
    %2512 = vmatpush1.bf16.msra.mxu0 %v2492
    %2513 = vmatprep.subr.bf16.mxu0 0
    %2514 = vmatpush1.bf16.msra.mxu0 %v2493
    %2515 = vmatprep.subr.bf16.mxu0 0
    %2516 = vmatpush1.bf16.msra.mxu0 %v2494
    %2517 = vmatprep.subr.bf16.mxu0 0
    %2518 = vmatpush1.bf16.msra.mxu0 %v2495
    %2519 = vmatprep.subr.bf16.mxu0 0
    %2520 = vmatpush1.bf16.msra.mxu0 %v2496
    %2521 = vmatprep.subr.bf16.mxu0 0
    %2522 = vmatpush1.bf16.msra.mxu0 0
    %2523 = vmatprep.subr.bf16.mxu0 0
    %2524 = vmatpush1.bf16.msra.mxu0 0
    %2525 = vmatprep.subr.bf16.mxu0 0
    %2526 = vmatpush1.bf16.msra.mxu0 0
    %2527 = vmatprep.subr.bf16.mxu0 0
    %2528 = vmatpush1.bf16.msra.mxu0 0
    %2529 = vmatprep.subr.bf16.mxu0 0
    %2530 = vmatpush1.bf16.msra.mxu0 0
    %2531 = vmatprep.subr.bf16.mxu0 0
    %2532 = vmatpush1.bf16.msra.mxu0 0
    %2533 = vmatprep.subr.bf16.mxu0 0
    %2534 = vmatpush1.bf16.msra.mxu0 0
    %2535 = vmatprep.subr.bf16.mxu0 0
    %2536 = vmatpush1.bf16.msra.mxu0 0
    %2537 = vmatprep.mubr.bf16.mxu0 0
    %2538 = vmatmul.mubr.bf16.gmra.mrb[0].mxu0 %v2432
    %v2539 = vpop.f32.mrb[0].mxu0
    %v2540 = vadd.f32 0.0, %v2539
    %v2541 = vpop.f32.mrb[0].mxu0
    %v2542 = vpop.f32.mrb[0].mxu0
    %v2543 = vadd.f32 0.0, %v2542
    %v2544 = vpop.f32.mrb[0].mxu0
    %2545 = vmatprep.mubr.bf16.mxu0 0
    %2546 = vmatmul.mubr.bf16.gmra.mrb[0].mxu0 %v2433
    %v2547 = vpop.f32.mrb[0].mxu0
    %v2548 = vadd.f32 0.0, %v2547
    %v2549 = vpop.f32.mrb[0].mxu0
    %v2550 = vpop.f32.mrb[0].mxu0
    %v2551 = vadd.f32 0.0, %v2550
    %v2552 = vpop.f32.mrb[0].mxu0
    %2553 = vmatprep.mubr.bf16.mxu0 0
    %2554 = vmatmul.mubr.bf16.gmra.mrb[0].mxu0 %v2434
    %v2555 = vpop.f32.mrb[0].mxu0
    %v2556 = vadd.f32 0.0, %v2555
    %v2557 = vpop.f32.mrb[0].mxu0
    %v2558 = vpop.f32.mrb[0].mxu0
    %v2559 = vadd.f32 0.0, %v2558
    %v2560 = vpop.f32.mrb[0].mxu0
    %2561 = vmatprep.mubr.bf16.mxu0 0
    %2562 = vmatmul.mubr.bf16.gmra.mrb[0].mxu0 %v2435
    %v2563 = vpop.f32.mrb[0].mxu0
    %v2564 = vadd.f32 0.0, %v2563
    %v2565 = vpop.f32.mrb[0].mxu0
    %v2566 = vpop.f32.mrb[0].mxu0
    %v2567 = vadd.f32 0.0, %v2566
    %v2568 = vpop.f32.mrb[0].mxu0
    %2569 = vmatprep.mubr.bf16.mxu0 0
    %2570 = vmatmul.mubr.bf16.gmra.mrb[0].mxu0 %v2436
    %v2571 = vpop.f32.mrb[0].mxu0
    %v2572 = vadd.f32 0.0, %v2571
    %v2573 = vpop.f32.mrb[0].mxu0
    %v2574 = vpop.f32.mrb[0].mxu0
    %v2575 = vadd.f32 0.0, %v2574
    %v2576 = vpop.f32.mrb[0].mxu0
    %2577 = vmatprep.mubr.bf16.mxu0 0
    %2578 = vmatmul.mubr.bf16.gmra.mrb[0].mxu0 %v2437
    %v2579 = vpop.f32.mrb[0].mxu0
    %v2580 = vadd.f32 0.0, %v2579
    %v2581 = vpop.f32.mrb[0].mxu0
    %v2582 = vpop.f32.mrb[0].mxu0
    %v2583 = vadd.f32 0.0, %v2582
    %v2584 = vpop.f32.mrb[0].mxu0
    %2585 = vmatprep.mubr.bf16.mxu0 0
    %2586 = vmatmul.mubr.bf16.gmra.mrb[0].mxu0 %v2438
    %v2587 = vpop.f32.mrb[0].mxu0
    %v2588 = vadd.f32 0.0, %v2587
    %v2589 = vpop.f32.mrb[0].mxu0
    %v2590 = vpop.f32.mrb[0].mxu0
    %v2591 = vadd.f32 0.0, %v2590
    %v2592 = vpop.f32.mrb[0].mxu0
    %2593 = vmatprep.mubr.bf16.mxu0 0
    %2594 = vmatmul.mubr.bf16.gmra.mrb[0].mxu0 %v2439
    %v2595 = vpop.f32.mrb[0].mxu0
    %v2596 = vadd.f32 0.0, %v2595
    %v2597 = vpop.f32.mrb[0].mxu0
    %v2598 = vpop.f32.mrb[0].mxu0
    %v2599 = vadd.f32 0.0, %v2598
    %v2600 = vpop.f32.mrb[0].mxu0
    %2601 = vdwg.mxu0
    %v2602 = vadd.f32 %v2400, %v2540
    %v2603 = vadd.f32 %v2401, %v2543
    %v2604 = vadd.f32 %v2402, %v2548
    %v2605 = vadd.f32 %v2403, %v2551
    %v2606 = vadd.f32 %v2404, %v2556
    %v2607 = vadd.f32 %v2405, %v2559
    %v2608 = vadd.f32 %v2406, %v2564
    %v2609 = vadd.f32 %v2407, %v2567
    %v2610 = vadd.f32 %v2408, %v2572
    %v2611 = vadd.f32 %v2409, %v2575
    %v2612 = vadd.f32 %v2410, %v2580
    %v2613 = vadd.f32 %v2411, %v2583
    %v2614 = vadd.f32 %v2412, %v2588
    %v2615 = vadd.f32 %v2413, %v2591
    %v2616 = vadd.f32 %v2414, %v2596
    %v2617 = vadd.f32 %v2415, %v2599
    %v2618 = vld [vmem:[%s1826 + $0x1] sm:$0xff]
    %v2619 = vld [vmem:[%s1826 + $0x11] sm:$0xff]
    %v2620 = vld [vmem:[%s1826 + $0x21] sm:$0xff]
    %v2621 = vld [vmem:[%s1826 + $0x31] sm:$0xff]
    %v2622 = vld [vmem:[%s1826 + $0x41] sm:$0xff]
    %v2623 = vld [vmem:[%s1826 + $0x51] sm:$0xff]
    %v2624 = vld [vmem:[%s1826 + $0x61] sm:$0xff]
    %v2625 = vld [vmem:[%s1826 + $0x71] sm:$0xff]
    %v2626 = vld [vmem:[%s1826 + $0xa1] sm:$0xff]
    %v2627 = vld [vmem:[%s1826 + $0xb1] sm:$0xff]
    %v2628 = vld [vmem:[%s1826 + $0xc1] sm:$0xff]
    %v2629 = vld [vmem:[%s1826 + $0xd1] sm:$0xff]
    %v2630 = vld [vmem:[%s1826 + $0xe1] sm:$0xff]
    %v2631 = vld [vmem:[%s1826 + $0xf1] sm:$0xff]
    %v2632 = vld [vmem:[%s1826 + $0x101] sm:$0xff]
    %v2633 = vld [vmem:[%s1826 + $0x111] sm:$0xff]
    %v2634 = vpack.c.bf16 %v2619, %v2618
    %v2635 = vpack.c.bf16 %v2621, %v2620
    %v2636 = vpack.c.bf16 %v2623, %v2622
    %v2637 = vpack.c.bf16 %v2625, %v2624
    %v2638 = vpack.c.bf16 %v2627, %v2626
    %v2639 = vpack.c.bf16 %v2629, %v2628
    %v2640 = vpack.c.bf16 %v2631, %v2630
    %v2641 = vpack.c.bf16 %v2633, %v2632
    %s2642 = scalar_lea.vmem %s6, 256
    %v2643 = vld [vmem:[%s2642] sm:$0xf]
    %v2644 = vld [vmem:[%s2642 + $0x4] sm:$0xf]
    %v2645 = vld [vmem:[%s2642 + $0x8] sm:$0xf]
    %v2646 = vld [vmem:[%s2642 + $0xc] sm:$0xf]
    %v2647 = vld [vmem:[%s2642 + $0x10] sm:$0xf]
    %v2648 = vld [vmem:[%s2642 + $0x14] sm:$0xf]
    %v2649 = vld [vmem:[%s2642 + $0x18] sm:$0xf]
    %v2650 = vld [vmem:[%s2642 + $0x1c] sm:$0xf]
    %v2651 = vld [vmem:[%s2642 + $0x20] sm:$0xf]
    %v2652 = vld [vmem:[%s2642 + $0x24] sm:$0xf]
    %v2653 = vld [vmem:[%s2642 + $0x28] sm:$0xf]
    %v2654 = vld [vmem:[%s2642 + $0x2c] sm:$0xf]
    %v2655 = vld [vmem:[%s2642 + $0x30] sm:$0xf]
    %v2656 = vld [vmem:[%s2642 + $0x34] sm:$0xf]
    %v2657 = vld [vmem:[%s2642 + $0x38] sm:$0xf]
    %v2658 = vld [vmem:[%s2642 + $0x3c] sm:$0xf]
    %v2675 = vunpack.c.l.b16 %v2643
    %v2676 = vunpack.c.l.b16 %v2644
    %v2677 = vunpack.c.l.b16 %v2645
    %v2678 = vunpack.c.l.b16 %v2646
    %v2679 = vunpack.c.l.b16 %v2647
    %v2680 = vunpack.c.l.b16 %v2648
    %v2681 = vunpack.c.l.b16 %v2649
    %v2682 = vunpack.c.l.b16 %v2650
    %v2683 = vunpack.c.l.b16 %v2651
    %v2684 = vunpack.c.l.b16 %v2652
    %v2685 = vunpack.c.l.b16 %v2653
    %v2686 = vunpack.c.l.b16 %v2654
    %v2687 = vunpack.c.l.b16 %v2655
    %v2688 = vunpack.c.l.b16 %v2656
    %v2689 = vunpack.c.l.b16 %v2657
    %v2690 = vunpack.c.l.b16 %v2658
    %v2691 = vpack.c.b16 %v2676, %v2675
    %v2692 = vpack.c.b16 %v2678, %v2677
    %v2693 = vpack.c.b16 %v2680, %v2679
    %v2694 = vpack.c.b16 %v2682, %v2681
    %v2695 = vpack.c.b16 %v2684, %v2683
    %v2696 = vpack.c.b16 %v2686, %v2685
    %v2697 = vpack.c.b16 %v2688, %v2687
    %v2698 = vpack.c.b16 %v2690, %v2689
    %2707 = vmatprep.subr.bf16.mxu0 0
    %2708 = vmatpush1.bf16.msra.mxu0 %v2691
    %2709 = vmatprep.subr.bf16.mxu0 0
    %2710 = vmatpush1.bf16.msra.mxu0 %v2692
    %2711 = vmatprep.subr.bf16.mxu0 0
    %2712 = vmatpush1.bf16.msra.mxu0 %v2693
    %2713 = vmatprep.subr.bf16.mxu0 0
    %2714 = vmatpush1.bf16.msra.mxu0 %v2694
    %2715 = vmatprep.subr.bf16.mxu0 0
    %2716 = vmatpush1.bf16.msra.mxu0 %v2695
    %2717 = vmatprep.subr.bf16.mxu0 0
    %2718 = vmatpush1.bf16.msra.mxu0 %v2696
    %2719 = vmatprep.subr.bf16.mxu0 0
    %2720 = vmatpush1.bf16.msra.mxu0 %v2697
    %2721 = vmatprep.subr.bf16.mxu0 0
    %2722 = vmatpush1.bf16.msra.mxu0 %v2698
    %2723 = vmatprep.subr.bf16.mxu0 0
    %2724 = vmatpush1.bf16.msra.mxu0 0
    %2725 = vmatprep.subr.bf16.mxu0 0
    %2726 = vmatpush1.bf16.msra.mxu0 0
    %2727 = vmatprep.subr.bf16.mxu0 0
    %2728 = vmatpush1.bf16.msra.mxu0 0
    %2729 = vmatprep.subr.bf16.mxu0 0
    %2730 = vmatpush1.bf16.msra.mxu0 0
    %2731 = vmatprep.subr.bf16.mxu0 0
    %2732 = vmatpush1.bf16.msra.mxu0 0
    %2733 = vmatprep.subr.bf16.mxu0 0
    %2734 = vmatpush1.bf16.msra.mxu0 0
    %2735 = vmatprep.subr.bf16.mxu0 0
    %2736 = vmatpush1.bf16.msra.mxu0 0
    %2737 = vmatprep.subr.bf16.mxu0 0
    %2738 = vmatpush1.bf16.msra.mxu0 0
    %2739 = vmatprep.mubr.bf16.mxu0 0
    %2740 = vmatmul.mubr.bf16.gmra.mrb[0].mxu0 %v2634
    %v2741 = vpop.f32.mrb[0].mxu0
    %v2742 = vadd.f32 0.0, %v2741
    %v2743 = vpop.f32.mrb[0].mxu0
    %v2744 = vpop.f32.mrb[0].mxu0
    %v2745 = vadd.f32 0.0, %v2744
    %v2746 = vpop.f32.mrb[0].mxu0
    %2747 = vmatprep.mubr.bf16.mxu0 0
    %2748 = vmatmul.mubr.bf16.gmra.mrb[0].mxu0 %v2635
    %v2749 = vpop.f32.mrb[0].mxu0
    %v2750 = vadd.f32 0.0, %v2749
    %v2751 = vpop.f32.mrb[0].mxu0
    %v2752 = vpop.f32.mrb[0].mxu0
    %v2753 = vadd.f32 0.0, %v2752
    %v2754 = vpop.f32.mrb[0].mxu0
    %2755 = vmatprep.mubr.bf16.mxu0 0
    %2756 = vmatmul.mubr.bf16.gmra.mrb[0].mxu0 %v2636
    %v2757 = vpop.f32.mrb[0].mxu0
    %v2758 = vadd.f32 0.0, %v2757
    %v2759 = vpop.f32.mrb[0].mxu0
    %v2760 = vpop.f32.mrb[0].mxu0
    %v2761 = vadd.f32 0.0, %v2760
    %v2762 = vpop.f32.mrb[0].mxu0
    %2763 = vmatprep.mubr.bf16.mxu0 0
    %2764 = vmatmul.mubr.bf16.gmra.mrb[0].mxu0 %v2637
    %v2765 = vpop.f32.mrb[0].mxu0
    %v2766 = vadd.f32 0.0, %v2765
    %v2767 = vpop.f32.mrb[0].mxu0
    %v2768 = vpop.f32.mrb[0].mxu0
    %v2769 = vadd.f32 0.0, %v2768
    %v2770 = vpop.f32.mrb[0].mxu0
    %2771 = vmatprep.mubr.bf16.mxu0 0
    %2772 = vmatmul.mubr.bf16.gmra.mrb[0].mxu0 %v2638
    %v2773 = vpop.f32.mrb[0].mxu0
    %v2774 = vadd.f32 0.0, %v2773
    %v2775 = vpop.f32.mrb[0].mxu0
    %v2776 = vpop.f32.mrb[0].mxu0
    %v2777 = vadd.f32 0.0, %v2776
    %v2778 = vpop.f32.mrb[0].mxu0
    %2779 = vmatprep.mubr.bf16.mxu0 0
    %2780 = vmatmul.mubr.bf16.gmra.mrb[0].mxu0 %v2639
    %v2781 = vpop.f32.mrb[0].mxu0
    %v2782 = vadd.f32 0.0, %v2781
    %v2783 = vpop.f32.mrb[0].mxu0
    %v2784 = vpop.f32.mrb[0].mxu0
    %v2785 = vadd.f32 0.0, %v2784
    %v2786 = vpop.f32.mrb[0].mxu0
    %2787 = vmatprep.mubr.bf16.mxu0 0
    %2788 = vmatmul.mubr.bf16.gmra.mrb[0].mxu0 %v2640
    %v2789 = vpop.f32.mrb[0].mxu0
    %v2790 = vadd.f32 0.0, %v2789
    %v2791 = vpop.f32.mrb[0].mxu0
    %v2792 = vpop.f32.mrb[0].mxu0
    %v2793 = vadd.f32 0.0, %v2792
    %v2794 = vpop.f32.mrb[0].mxu0
    %2795 = vmatprep.mubr.bf16.mxu0 0
    %2796 = vmatmul.mubr.bf16.gmra.mrb[0].mxu0 %v2641
    %v2797 = vpop.f32.mrb[0].mxu0
    %v2798 = vadd.f32 0.0, %v2797
    %v2799 = vpop.f32.mrb[0].mxu0
    %v2800 = vpop.f32.mrb[0].mxu0
    %v2801 = vadd.f32 0.0, %v2800
    %v2802 = vpop.f32.mrb[0].mxu0
    %2803 = vdwg.mxu0
    %v2804 = vadd.f32 %v2602, %v2742
    %v2805 = vadd.f32 %v2603, %v2745
    %v2806 = vadd.f32 %v2604, %v2750
    %v2807 = vadd.f32 %v2605, %v2753
    %v2808 = vadd.f32 %v2606, %v2758
    %v2809 = vadd.f32 %v2607, %v2761
    %v2810 = vadd.f32 %v2608, %v2766
    %v2811 = vadd.f32 %v2609, %v2769
    %v2812 = vadd.f32 %v2610, %v2774
    %v2813 = vadd.f32 %v2611, %v2777
    %v2814 = vadd.f32 %v2612, %v2782
    %v2815 = vadd.f32 %v2613, %v2785
    %v2816 = vadd.f32 %v2614, %v2790
    %v2817 = vadd.f32 %v2615, %v2793
    %v2818 = vadd.f32 %v2616, %v2798
    %v2819 = vadd.f32 %v2617, %v2801
    %v2820 = vld [vmem:[%s1826 + $0x2] sm:$0xff]
    %v2821 = vld [vmem:[%s1826 + $0x12] sm:$0xff]
    %v2822 = vld [vmem:[%s1826 + $0x22] sm:$0xff]
    %v2823 = vld [vmem:[%s1826 + $0x32] sm:$0xff]
    %v2824 = vld [vmem:[%s1826 + $0x42] sm:$0xff]
    %v2825 = vld [vmem:[%s1826 + $0x52] sm:$0xff]
    %v2826 = vld [vmem:[%s1826 + $0x62] sm:$0xff]
    %v2827 = vld [vmem:[%s1826 + $0x72] sm:$0xff]
    %v2828 = vld [vmem:[%s1826 + $0xa2] sm:$0xff]
    %v2829 = vld [vmem:[%s1826 + $0xb2] sm:$0xff]
    %v2830 = vld [vmem:[%s1826 + $0xc2] sm:$0xff]
    %v2831 = vld [vmem:[%s1826 + $0xd2] sm:$0xff]
    %v2832 = vld [vmem:[%s1826 + $0xe2] sm:$0xff]
    %v2833 = vld [vmem:[%s1826 + $0xf2] sm:$0xff]
    %v2834 = vld [vmem:[%s1826 + $0x102] sm:$0xff]
    %v2835 = vld [vmem:[%s1826 + $0x112] sm:$0xff]
    %v2836 = vpack.c.bf16 %v2821, %v2820
    %v2837 = vpack.c.bf16 %v2823, %v2822
    %v2838 = vpack.c.bf16 %v2825, %v2824
    %v2839 = vpack.c.bf16 %v2827, %v2826
    %v2840 = vpack.c.bf16 %v2829, %v2828
    %v2841 = vpack.c.bf16 %v2831, %v2830
    %v2842 = vpack.c.bf16 %v2833, %v2832
    %v2843 = vpack.c.bf16 %v2835, %v2834
    %s2844 = scalar_lea.vmem %s6, 320
    %v2845 = vld [vmem:[%s2844] sm:$0xf]
    %v2846 = vld [vmem:[%s2844 + $0x4] sm:$0xf]
    %v2847 = vld [vmem:[%s2844 + $0x8] sm:$0xf]
    %v2848 = vld [vmem:[%s2844 + $0xc] sm:$0xf]
    %v2849 = vld [vmem:[%s2844 + $0x10] sm:$0xf]
    %v2850 = vld [vmem:[%s2844 + $0x14] sm:$0xf]
    %v2851 = vld [vmem:[%s2844 + $0x18] sm:$0xf]
    %v2852 = vld [vmem:[%s2844 + $0x1c] sm:$0xf]
    %v2853 = vld [vmem:[%s2844 + $0x20] sm:$0xf]
    %v2854 = vld [vmem:[%s2844 + $0x24] sm:$0xf]
    %v2855 = vld [vmem:[%s2844 + $0x28] sm:$0xf]
    %v2856 = vld [vmem:[%s2844 + $0x2c] sm:$0xf]
    %v2857 = vld [vmem:[%s2844 + $0x30] sm:$0xf]
    %v2858 = vld [vmem:[%s2844 + $0x34] sm:$0xf]
    %v2859 = vld [vmem:[%s2844 + $0x38] sm:$0xf]
    %v2860 = vld [vmem:[%s2844 + $0x3c] sm:$0xf]
    %v2877 = vunpack.c.l.b16 %v2845
    %v2878 = vunpack.c.l.b16 %v2846
    %v2879 = vunpack.c.l.b16 %v2847
    %v2880 = vunpack.c.l.b16 %v2848
    %v2881 = vunpack.c.l.b16 %v2849
    %v2882 = vunpack.c.l.b16 %v2850
    %v2883 = vunpack.c.l.b16 %v2851
    %v2884 = vunpack.c.l.b16 %v2852
    %v2885 = vunpack.c.l.b16 %v2853
    %v2886 = vunpack.c.l.b16 %v2854
    %v2887 = vunpack.c.l.b16 %v2855
    %v2888 = vunpack.c.l.b16 %v2856
    %v2889 = vunpack.c.l.b16 %v2857
    %v2890 = vunpack.c.l.b16 %v2858
    %v2891 = vunpack.c.l.b16 %v2859
    %v2892 = vunpack.c.l.b16 %v2860
    %v2893 = vpack.c.b16 %v2878, %v2877
    %v2894 = vpack.c.b16 %v2880, %v2879
    %v2895 = vpack.c.b16 %v2882, %v2881
    %v2896 = vpack.c.b16 %v2884, %v2883
    %v2897 = vpack.c.b16 %v2886, %v2885
    %v2898 = vpack.c.b16 %v2888, %v2887
    %v2899 = vpack.c.b16 %v2890, %v2889
    %v2900 = vpack.c.b16 %v2892, %v2891
    %2909 = vmatprep.subr.bf16.mxu0 0
    %2910 = vmatpush1.bf16.msra.mxu0 %v2893
    %2911 = vmatprep.subr.bf16.mxu0 0
    %2912 = vmatpush1.bf16.msra.mxu0 %v2894
    %2913 = vmatprep.subr.bf16.mxu0 0
    %2914 = vmatpush1.bf16.msra.mxu0 %v2895
    %2915 = vmatprep.subr.bf16.mxu0 0
    %2916 = vmatpush1.bf16.msra.mxu0 %v2896
    %2917 = vmatprep.subr.bf16.mxu0 0
    %2918 = vmatpush1.bf16.msra.mxu0 %v2897
    %2919 = vmatprep.subr.bf16.mxu0 0
    %2920 = vmatpush1.bf16.msra.mxu0 %v2898
    %2921 = vmatprep.subr.bf16.mxu0 0
    %2922 = vmatpush1.bf16.msra.mxu0 %v2899
    %2923 = vmatprep.subr.bf16.mxu0 0
    %2924 = vmatpush1.bf16.msra.mxu0 %v2900
    %2925 = vmatprep.subr.bf16.mxu0 0
    %2926 = vmatpush1.bf16.msra.mxu0 0
    %2927 = vmatprep.subr.bf16.mxu0 0
    %2928 = vmatpush1.bf16.msra.mxu0 0
    %2929 = vmatprep.subr.bf16.mxu0 0
    %2930 = vmatpush1.bf16.msra.mxu0 0
    %2931 = vmatprep.subr.bf16.mxu0 0
    %2932 = vmatpush1.bf16.msra.mxu0 0
    %2933 = vmatprep.subr.bf16.mxu0 0
    %2934 = vmatpush1.bf16.msra.mxu0 0
    %2935 = vmatprep.subr.bf16.mxu0 0
    %2936 = vmatpush1.bf16.msra.mxu0 0
    %2937 = vmatprep.subr.bf16.mxu0 0
    %2938 = vmatpush1.bf16.msra.mxu0 0
    %2939 = vmatprep.subr.bf16.mxu0 0
    %2940 = vmatpush1.bf16.msra.mxu0 0
    %2941 = vmatprep.mubr.bf16.mxu0 0
    %2942 = vmatmul.mubr.bf16.gmra.mrb[0].mxu0 %v2836
    %v2943 = vpop.f32.mrb[0].mxu0
    %v2944 = vadd.f32 0.0, %v2943
    %v2945 = vpop.f32.mrb[0].mxu0
    %v2946 = vpop.f32.mrb[0].mxu0
    %v2947 = vadd.f32 0.0, %v2946
    %v2948 = vpop.f32.mrb[0].mxu0
    %2949 = vmatprep.mubr.bf16.mxu0 0
    %2950 = vmatmul.mubr.bf16.gmra.mrb[0].mxu0 %v2837
    %v2951 = vpop.f32.mrb[0].mxu0
    %v2952 = vadd.f32 0.0, %v2951
    %v2953 = vpop.f32.mrb[0].mxu0
    %v2954 = vpop.f32.mrb[0].mxu0
    %v2955 = vadd.f32 0.0, %v2954
    %v2956 = vpop.f32.mrb[0].mxu0
    %2957 = vmatprep.mubr.bf16.mxu0 0
    %2958 = vmatmul.mubr.bf16.gmra.mrb[0].mxu0 %v2838
    %v2959 = vpop.f32.mrb[0].mxu0
    %v2960 = vadd.f32 0.0, %v2959
    %v2961 = vpop.f32.mrb[0].mxu0
    %v2962 = vpop.f32.mrb[0].mxu0
    %v2963 = vadd.f32 0.0, %v2962
    %v2964 = vpop.f32.mrb[0].mxu0
    %2965 = vmatprep.mubr.bf16.mxu0 0
    %2966 = vmatmul.mubr.bf16.gmra.mrb[0].mxu0 %v2839
    %v2967 = vpop.f32.mrb[0].mxu0
    %v2968 = vadd.f32 0.0, %v2967
    %v2969 = vpop.f32.mrb[0].mxu0
    %v2970 = vpop.f32.mrb[0].mxu0
    %v2971 = vadd.f32 0.0, %v2970
    %v2972 = vpop.f32.mrb[0].mxu0
    %2973 = vmatprep.mubr.bf16.mxu0 0
    %2974 = vmatmul.mubr.bf16.gmra.mrb[0].mxu0 %v2840
    %v2975 = vpop.f32.mrb[0].mxu0
    %v2976 = vadd.f32 0.0, %v2975
    %v2977 = vpop.f32.mrb[0].mxu0
    %v2978 = vpop.f32.mrb[0].mxu0
    %v2979 = vadd.f32 0.0, %v2978
    %v2980 = vpop.f32.mrb[0].mxu0
    %2981 = vmatprep.mubr.bf16.mxu0 0
    %2982 = vmatmul.mubr.bf16.gmra.mrb[0].mxu0 %v2841
    %v2983 = vpop.f32.mrb[0].mxu0
    %v2984 = vadd.f32 0.0, %v2983
    %v2985 = vpop.f32.mrb[0].mxu0
    %v2986 = vpop.f32.mrb[0].mxu0
    %v2987 = vadd.f32 0.0, %v2986
    %v2988 = vpop.f32.mrb[0].mxu0
    %2989 = vmatprep.mubr.bf16.mxu0 0
    %2990 = vmatmul.mubr.bf16.gmra.mrb[0].mxu0 %v2842
    %v2991 = vpop.f32.mrb[0].mxu0
    %v2992 = vadd.f32 0.0, %v2991
    %v2993 = vpop.f32.mrb[0].mxu0
    %v2994 = vpop.f32.mrb[0].mxu0
    %v2995 = vadd.f32 0.0, %v2994
    %v2996 = vpop.f32.mrb[0].mxu0
    %2997 = vmatprep.mubr.bf16.mxu0 0
    %2998 = vmatmul.mubr.bf16.gmra.mrb[0].mxu0 %v2843
    %v2999 = vpop.f32.mrb[0].mxu0
    %v3000 = vadd.f32 0.0, %v2999
    %v3001 = vpop.f32.mrb[0].mxu0
    %v3002 = vpop.f32.mrb[0].mxu0
    %v3003 = vadd.f32 0.0, %v3002
    %v3004 = vpop.f32.mrb[0].mxu0
    %3005 = vdwg.mxu0
    %v3006 = vadd.f32 %v2804, %v2944
    %v3007 = vadd.f32 %v2805, %v2947
    %v3008 = vadd.f32 %v2806, %v2952
    %v3009 = vadd.f32 %v2807, %v2955
    %v3010 = vadd.f32 %v2808, %v2960
    %v3011 = vadd.f32 %v2809, %v2963
    %v3012 = vadd.f32 %v2810, %v2968
    %v3013 = vadd.f32 %v2811, %v2971
    %v3014 = vadd.f32 %v2812, %v2976
    %v3015 = vadd.f32 %v2813, %v2979
    %v3016 = vadd.f32 %v2814, %v2984
    %v3017 = vadd.f32 %v2815, %v2987
    %v3018 = vadd.f32 %v2816, %v2992
    %v3019 = vadd.f32 %v2817, %v2995
    %v3020 = vadd.f32 %v2818, %v3000
    %v3021 = vadd.f32 %v2819, %v3003
    %s3022 = scalar_lea.vmem [#allocation2], 32
    %v3023 = vld [vmem:[%s3022] sm:$0xff]
    %v3024 = vld [vmem:[%s3022 + $0x10] sm:$0xff]
    %v3025 = vld [vmem:[%s3022 + $0x20] sm:$0xff]
    %v3026 = vld [vmem:[%s3022 + $0x30] sm:$0xff]
    %v3027 = vld [vmem:[%s3022 + $0x40] sm:$0xff]
    %v3028 = vld [vmem:[%s3022 + $0x50] sm:$0xff]
    %v3029 = vld [vmem:[%s3022 + $0x60] sm:$0xff]
    %v3030 = vld [vmem:[%s3022 + $0x70] sm:$0xff]
    %v3031 = vld [vmem:[%s3022 + $0xa0] sm:$0xff]
    %v3032 = vld [vmem:[%s3022 + $0xb0] sm:$0xff]
    %v3033 = vld [vmem:[%s3022 + $0xc0] sm:$0xff]
    %v3034 = vld [vmem:[%s3022 + $0xd0] sm:$0xff]
    %v3035 = vld [vmem:[%s3022 + $0xe0] sm:$0xff]
    %v3036 = vld [vmem:[%s3022 + $0xf0] sm:$0xff]
    %v3037 = vld [vmem:[%s3022 + $0x100] sm:$0xff]
    %v3038 = vld [vmem:[%s3022 + $0x110] sm:$0xff]
    %v3039 = vpack.c.bf16 %v3024, %v3023
    %v3040 = vpack.c.bf16 %v3026, %v3025
    %v3041 = vpack.c.bf16 %v3028, %v3027
    %v3042 = vpack.c.bf16 %v3030, %v3029
    %v3043 = vpack.c.bf16 %v3032, %v3031
    %v3044 = vpack.c.bf16 %v3034, %v3033
    %v3045 = vpack.c.bf16 %v3036, %v3035
    %v3046 = vpack.c.bf16 %v3038, %v3037
    %s3047 = scalar_lea.vmem %s6, 384
    %v3048 = vld [vmem:[%s3047] sm:$0xf]
    %v3049 = vld [vmem:[%s3047 + $0x4] sm:$0xf]
    %v3050 = vld [vmem:[%s3047 + $0x8] sm:$0xf]
    %v3051 = vld [vmem:[%s3047 + $0xc] sm:$0xf]
    %v3052 = vld [vmem:[%s3047 + $0x10] sm:$0xf]
    %v3053 = vld [vmem:[%s3047 + $0x14] sm:$0xf]
    %v3054 = vld [vmem:[%s3047 + $0x18] sm:$0xf]
    %v3055 = vld [vmem:[%s3047 + $0x1c] sm:$0xf]
    %v3056 = vld [vmem:[%s3047 + $0x20] sm:$0xf]
    %v3057 = vld [vmem:[%s3047 + $0x24] sm:$0xf]
    %v3058 = vld [vmem:[%s3047 + $0x28] sm:$0xf]
    %v3059 = vld [vmem:[%s3047 + $0x2c] sm:$0xf]
    %v3060 = vld [vmem:[%s3047 + $0x30] sm:$0xf]
    %v3061 = vld [vmem:[%s3047 + $0x34] sm:$0xf]
    %v3062 = vld [vmem:[%s3047 + $0x38] sm:$0xf]
    %v3063 = vld [vmem:[%s3047 + $0x3c] sm:$0xf]
    %v3080 = vunpack.c.l.b16 %v3048
    %v3081 = vunpack.c.l.b16 %v3049
    %v3082 = vunpack.c.l.b16 %v3050
    %v3083 = vunpack.c.l.b16 %v3051
    %v3084 = vunpack.c.l.b16 %v3052
    %v3085 = vunpack.c.l.b16 %v3053
    %v3086 = vunpack.c.l.b16 %v3054
    %v3087 = vunpack.c.l.b16 %v3055
    %v3088 = vunpack.c.l.b16 %v3056
    %v3089 = vunpack.c.l.b16 %v3057
    %v3090 = vunpack.c.l.b16 %v3058
    %v3091 = vunpack.c.l.b16 %v3059
    %v3092 = vunpack.c.l.b16 %v3060
    %v3093 = vunpack.c.l.b16 %v3061
    %v3094 = vunpack.c.l.b16 %v3062
    %v3095 = vunpack.c.l.b16 %v3063
    %v3096 = vpack.c.b16 %v3081, %v3080
    %v3097 = vpack.c.b16 %v3083, %v3082
    %v3098 = vpack.c.b16 %v3085, %v3084
    %v3099 = vpack.c.b16 %v3087, %v3086
    %v3100 = vpack.c.b16 %v3089, %v3088
    %v3101 = vpack.c.b16 %v3091, %v3090
    %v3102 = vpack.c.b16 %v3093, %v3092
    %v3103 = vpack.c.b16 %v3095, %v3094
    %3112 = vmatprep.subr.bf16.mxu0 0
    %3113 = vmatpush1.bf16.msra.mxu0 %v3096
    %3114 = vmatprep.subr.bf16.mxu0 0
    %3115 = vmatpush1.bf16.msra.mxu0 %v3097
    %3116 = vmatprep.subr.bf16.mxu0 0
    %3117 = vmatpush1.bf16.msra.mxu0 %v3098
    %3118 = vmatprep.subr.bf16.mxu0 0
    %3119 = vmatpush1.bf16.msra.mxu0 %v3099
    %3120 = vmatprep.subr.bf16.mxu0 0
    %3121 = vmatpush1.bf16.msra.mxu0 %v3100
    %3122 = vmatprep.subr.bf16.mxu0 0
    %3123 = vmatpush1.bf16.msra.mxu0 %v3101
    %3124 = vmatprep.subr.bf16.mxu0 0
    %3125 = vmatpush1.bf16.msra.mxu0 %v3102
    %3126 = vmatprep.subr.bf16.mxu0 0
    %3127 = vmatpush1.bf16.msra.mxu0 %v3103
    %3128 = vmatprep.subr.bf16.mxu0 0
    %3129 = vmatpush1.bf16.msra.mxu0 0
    %3130 = vmatprep.subr.bf16.mxu0 0
    %3131 = vmatpush1.bf16.msra.mxu0 0
    %3132 = vmatprep.subr.bf16.mxu0 0
    %3133 = vmatpush1.bf16.msra.mxu0 0
    %3134 = vmatprep.subr.bf16.mxu0 0
    %3135 = vmatpush1.bf16.msra.mxu0 0
    %3136 = vmatprep.subr.bf16.mxu0 0
    %3137 = vmatpush1.bf16.msra.mxu0 0
    %3138 = vmatprep.subr.bf16.mxu0 0
    %3139 = vmatpush1.bf16.msra.mxu0 0
    %3140 = vmatprep.subr.bf16.mxu0 0
    %3141 = vmatpush1.bf16.msra.mxu0 0
    %3142 = vmatprep.subr.bf16.mxu0 0
    %3143 = vmatpush1.bf16.msra.mxu0 0
    %3144 = vmatprep.mubr.bf16.mxu0 0
    %3145 = vmatmul.mubr.bf16.gmra.mrb[0].mxu0 %v3039
    %v3146 = vpop.f32.mrb[0].mxu0
    %v3147 = vadd.f32 0.0, %v3146
    %v3148 = vpop.f32.mrb[0].mxu0
    %v3149 = vpop.f32.mrb[0].mxu0
    %v3150 = vadd.f32 0.0, %v3149
    %v3151 = vpop.f32.mrb[0].mxu0
    %3152 = vmatprep.mubr.bf16.mxu0 0
    %3153 = vmatmul.mubr.bf16.gmra.mrb[0].mxu0 %v3040
    %v3154 = vpop.f32.mrb[0].mxu0
    %v3155 = vadd.f32 0.0, %v3154
    %v3156 = vpop.f32.mrb[0].mxu0
    %v3157 = vpop.f32.mrb[0].mxu0
    %v3158 = vadd.f32 0.0, %v3157
    %v3159 = vpop.f32.mrb[0].mxu0
    %3160 = vmatprep.mubr.bf16.mxu0 0
    %3161 = vmatmul.mubr.bf16.gmra.mrb[0].mxu0 %v3041
    %v3162 = vpop.f32.mrb[0].mxu0
    %v3163 = vadd.f32 0.0, %v3162
    %v3164 = vpop.f32.mrb[0].mxu0
    %v3165 = vpop.f32.mrb[0].mxu0
    %v3166 = vadd.f32 0.0, %v3165
    %v3167 = vpop.f32.mrb[0].mxu0
    %3168 = vmatprep.mubr.bf16.mxu0 0
    %3169 = vmatmul.mubr.bf16.gmra.mrb[0].mxu0 %v3042
    %v3170 = vpop.f32.mrb[0].mxu0
    %v3171 = vadd.f32 0.0, %v3170
    %v3172 = vpop.f32.mrb[0].mxu0
    %v3173 = vpop.f32.mrb[0].mxu0
    %v3174 = vadd.f32 0.0, %v3173
    %v3175 = vpop.f32.mrb[0].mxu0
    %3176 = vmatprep.mubr.bf16.mxu0 0
    %3177 = vmatmul.mubr.bf16.gmra.mrb[0].mxu0 %v3043
    %v3178 = vpop.f32.mrb[0].mxu0
    %v3179 = vadd.f32 0.0, %v3178
    %v3180 = vpop.f32.mrb[0].mxu0
    %v3181 = vpop.f32.mrb[0].mxu0
    %v3182 = vadd.f32 0.0, %v3181
    %v3183 = vpop.f32.mrb[0].mxu0
    %3184 = vmatprep.mubr.bf16.mxu0 0
    %3185 = vmatmul.mubr.bf16.gmra.mrb[0].mxu0 %v3044
    %v3186 = vpop.f32.mrb[0].mxu0
    %v3187 = vadd.f32 0.0, %v3186
    %v3188 = vpop.f32.mrb[0].mxu0
    %v3189 = vpop.f32.mrb[0].mxu0
    %v3190 = vadd.f32 0.0, %v3189
    %v3191 = vpop.f32.mrb[0].mxu0
    %3192 = vmatprep.mubr.bf16.mxu0 0
    %3193 = vmatmul.mubr.bf16.gmra.mrb[0].mxu0 %v3045
    %v3194 = vpop.f32.mrb[0].mxu0
    %v3195 = vadd.f32 0.0, %v3194
    %v3196 = vpop.f32.mrb[0].mxu0
    %v3197 = vpop.f32.mrb[0].mxu0
    %v3198 = vadd.f32 0.0, %v3197
    %v3199 = vpop.f32.mrb[0].mxu0
    %3200 = vmatprep.mubr.bf16.mxu0 0
    %3201 = vmatmul.mubr.bf16.gmra.mrb[0].mxu0 %v3046
    %v3202 = vpop.f32.mrb[0].mxu0
    %v3203 = vadd.f32 0.0, %v3202
    %v3204 = vpop.f32.mrb[0].mxu0
    %v3205 = vpop.f32.mrb[0].mxu0
    %v3206 = vadd.f32 0.0, %v3205
    %v3207 = vpop.f32.mrb[0].mxu0
    %3208 = vdwg.mxu0
    %v3209 = vadd.f32 %v3006, %v3147
    %v3210 = vadd.f32 %v3007, %v3150
    %v3211 = vadd.f32 %v3008, %v3155
    %v3212 = vadd.f32 %v3009, %v3158
    %v3213 = vadd.f32 %v3010, %v3163
    %v3214 = vadd.f32 %v3011, %v3166
    %v3215 = vadd.f32 %v3012, %v3171
    %v3216 = vadd.f32 %v3013, %v3174
    %v3217 = vadd.f32 %v3014, %v3179
    %v3218 = vadd.f32 %v3015, %v3182
    %v3219 = vadd.f32 %v3016, %v3187
    %v3220 = vadd.f32 %v3017, %v3190
    %v3221 = vadd.f32 %v3018, %v3195
    %v3222 = vadd.f32 %v3019, %v3198
    %v3223 = vadd.f32 %v3020, %v3203
    %v3224 = vadd.f32 %v3021, %v3206
    %v3225 = vld [vmem:[%s3022 + $0x1] sm:$0xff]
    %v3226 = vld [vmem:[%s3022 + $0x11] sm:$0xff]
    %v3227 = vld [vmem:[%s3022 + $0x21] sm:$0xff]
    %v3228 = vld [vmem:[%s3022 + $0x31] sm:$0xff]
    %v3229 = vld [vmem:[%s3022 + $0x41] sm:$0xff]
    %v3230 = vld [vmem:[%s3022 + $0x51] sm:$0xff]
    %v3231 = vld [vmem:[%s3022 + $0x61] sm:$0xff]
    %v3232 = vld [vmem:[%s3022 + $0x71] sm:$0xff]
    %v3233 = vld [vmem:[%s3022 + $0xa1] sm:$0xff]
    %v3234 = vld [vmem:[%s3022 + $0xb1] sm:$0xff]
    %v3235 = vld [vmem:[%s3022 + $0xc1] sm:$0xff]
    %v3236 = vld [vmem:[%s3022 + $0xd1] sm:$0xff]
    %v3237 = vld [vmem:[%s3022 + $0xe1] sm:$0xff]
    %v3238 = vld [vmem:[%s3022 + $0xf1] sm:$0xff]
    %v3239 = vld [vmem:[%s3022 + $0x101] sm:$0xff]
    %v3240 = vld [vmem:[%s3022 + $0x111] sm:$0xff]
    %v3241 = vpack.c.bf16 %v3226, %v3225
    %v3242 = vpack.c.bf16 %v3228, %v3227
    %v3243 = vpack.c.bf16 %v3230, %v3229
    %v3244 = vpack.c.bf16 %v3232, %v3231
    %v3245 = vpack.c.bf16 %v3234, %v3233
    %v3246 = vpack.c.bf16 %v3236, %v3235
    %v3247 = vpack.c.bf16 %v3238, %v3237
    %v3248 = vpack.c.bf16 %v3240, %v3239
    %s3249 = scalar_lea.vmem %s6, 448
    %v3250 = vld [vmem:[%s3249] sm:$0xf]
    %v3251 = vld [vmem:[%s3249 + $0x4] sm:$0xf]
    %v3252 = vld [vmem:[%s3249 + $0x8] sm:$0xf]
    %v3253 = vld [vmem:[%s3249 + $0xc] sm:$0xf]
    %v3254 = vld [vmem:[%s3249 + $0x10] sm:$0xf]
    %v3255 = vld [vmem:[%s3249 + $0x14] sm:$0xf]
    %v3256 = vld [vmem:[%s3249 + $0x18] sm:$0xf]
    %v3257 = vld [vmem:[%s3249 + $0x1c] sm:$0xf]
    %v3258 = vld [vmem:[%s3249 + $0x20] sm:$0xf]
    %v3259 = vld [vmem:[%s3249 + $0x24] sm:$0xf]
    %v3260 = vld [vmem:[%s3249 + $0x28] sm:$0xf]
    %v3261 = vld [vmem:[%s3249 + $0x2c] sm:$0xf]
    %v3262 = vld [vmem:[%s3249 + $0x30] sm:$0xf]
    %v3263 = vld [vmem:[%s3249 + $0x34] sm:$0xf]
    %v3264 = vld [vmem:[%s3249 + $0x38] sm:$0xf]
    %v3265 = vld [vmem:[%s3249 + $0x3c] sm:$0xf]
    %v3282 = vunpack.c.l.b16 %v3250
    %v3283 = vunpack.c.l.b16 %v3251
    %v3284 = vunpack.c.l.b16 %v3252
    %v3285 = vunpack.c.l.b16 %v3253
    %v3286 = vunpack.c.l.b16 %v3254
    %v3287 = vunpack.c.l.b16 %v3255
    %v3288 = vunpack.c.l.b16 %v3256
    %v3289 = vunpack.c.l.b16 %v3257
    %v3290 = vunpack.c.l.b16 %v3258
    %v3291 = vunpack.c.l.b16 %v3259
    %v3292 = vunpack.c.l.b16 %v3260
    %v3293 = vunpack.c.l.b16 %v3261
    %v3294 = vunpack.c.l.b16 %v3262
    %v3295 = vunpack.c.l.b16 %v3263
    %v3296 = vunpack.c.l.b16 %v3264
    %v3297 = vunpack.c.l.b16 %v3265
    %v3298 = vpack.c.b16 %v3283, %v3282
    %v3299 = vpack.c.b16 %v3285, %v3284
    %v3300 = vpack.c.b16 %v3287, %v3286
    %v3301 = vpack.c.b16 %v3289, %v3288
    %v3302 = vpack.c.b16 %v3291, %v3290
    %v3303 = vpack.c.b16 %v3293, %v3292
    %v3304 = vpack.c.b16 %v3295, %v3294
    %v3305 = vpack.c.b16 %v3297, %v3296
    %3314 = vmatprep.subr.bf16.mxu0 0
    %3315 = vmatpush1.bf16.msra.mxu0 %v3298
    %3316 = vmatprep.subr.bf16.mxu0 0
    %3317 = vmatpush1.bf16.msra.mxu0 %v3299
    %3318 = vmatprep.subr.bf16.mxu0 0
    %3319 = vmatpush1.bf16.msra.mxu0 %v3300
    %3320 = vmatprep.subr.bf16.mxu0 0
    %3321 = vmatpush1.bf16.msra.mxu0 %v3301
    %3322 = vmatprep.subr.bf16.mxu0 0
    %3323 = vmatpush1.bf16.msra.mxu0 %v3302
    %3324 = vmatprep.subr.bf16.mxu0 0
    %3325 = vmatpush1.bf16.msra.mxu0 %v3303
    %3326 = vmatprep.subr.bf16.mxu0 0
    %3327 = vmatpush1.bf16.msra.mxu0 %v3304
    %3328 = vmatprep.subr.bf16.mxu0 0
    %3329 = vmatpush1.bf16.msra.mxu0 %v3305
    %3330 = vmatprep.subr.bf16.mxu0 0
    %3331 = vmatpush1.bf16.msra.mxu0 0
    %3332 = vmatprep.subr.bf16.mxu0 0
    %3333 = vmatpush1.bf16.msra.mxu0 0
    %3334 = vmatprep.subr.bf16.mxu0 0
    %3335 = vmatpush1.bf16.msra.mxu0 0
    %3336 = vmatprep.subr.bf16.mxu0 0
    %3337 = vmatpush1.bf16.msra.mxu0 0
    %3338 = vmatprep.subr.bf16.mxu0 0
    %3339 = vmatpush1.bf16.msra.mxu0 0
    %3340 = vmatprep.subr.bf16.mxu0 0
    %3341 = vmatpush1.bf16.msra.mxu0 0
    %3342 = vmatprep.subr.bf16.mxu0 0
    %3343 = vmatpush1.bf16.msra.mxu0 0
    %3344 = vmatprep.subr.bf16.mxu0 0
    %3345 = vmatpush1.bf16.msra.mxu0 0
    %3346 = vmatprep.mubr.bf16.mxu0 0
    %3347 = vmatmul.mubr.bf16.gmra.mrb[0].mxu0 %v3241
    %v3348 = vpop.f32.mrb[0].mxu0
    %v3349 = vadd.f32 0.0, %v3348
    %v3350 = vpop.f32.mrb[0].mxu0
    %v3351 = vpop.f32.mrb[0].mxu0
    %v3352 = vadd.f32 0.0, %v3351
    %v3353 = vpop.f32.mrb[0].mxu0
    %3354 = vmatprep.mubr.bf16.mxu0 0
    %3355 = vmatmul.mubr.bf16.gmra.mrb[0].mxu0 %v3242
    %v3356 = vpop.f32.mrb[0].mxu0
    %v3357 = vadd.f32 0.0, %v3356
    %v3358 = vpop.f32.mrb[0].mxu0
    %v3359 = vpop.f32.mrb[0].mxu0
    %v3360 = vadd.f32 0.0, %v3359
    %v3361 = vpop.f32.mrb[0].mxu0
    %3362 = vmatprep.mubr.bf16.mxu0 0
    %3363 = vmatmul.mubr.bf16.gmra.mrb[0].mxu0 %v3243
    %v3364 = vpop.f32.mrb[0].mxu0
    %v3365 = vadd.f32 0.0, %v3364
    %v3366 = vpop.f32.mrb[0].mxu0
    %v3367 = vpop.f32.mrb[0].mxu0
    %v3368 = vadd.f32 0.0, %v3367
    %v3369 = vpop.f32.mrb[0].mxu0
    %3370 = vmatprep.mubr.bf16.mxu0 0
    %3371 = vmatmul.mubr.bf16.gmra.mrb[0].mxu0 %v3244
    %v3372 = vpop.f32.mrb[0].mxu0
    %v3373 = vadd.f32 0.0, %v3372
    %v3374 = vpop.f32.mrb[0].mxu0
    %v3375 = vpop.f32.mrb[0].mxu0
    %v3376 = vadd.f32 0.0, %v3375
    %v3377 = vpop.f32.mrb[0].mxu0
    %3378 = vmatprep.mubr.bf16.mxu0 0
    %3379 = vmatmul.mubr.bf16.gmra.mrb[0].mxu0 %v3245
    %v3380 = vpop.f32.mrb[0].mxu0
    %v3381 = vadd.f32 0.0, %v3380
    %v3382 = vpop.f32.mrb[0].mxu0
    %v3383 = vpop.f32.mrb[0].mxu0
    %v3384 = vadd.f32 0.0, %v3383
    %v3385 = vpop.f32.mrb[0].mxu0
    %3386 = vmatprep.mubr.bf16.mxu0 0
    %3387 = vmatmul.mubr.bf16.gmra.mrb[0].mxu0 %v3246
    %v3388 = vpop.f32.mrb[0].mxu0
    %v3389 = vadd.f32 0.0, %v3388
    %v3390 = vpop.f32.mrb[0].mxu0
    %v3391 = vpop.f32.mrb[0].mxu0
    %v3392 = vadd.f32 0.0, %v3391
    %v3393 = vpop.f32.mrb[0].mxu0
    %3394 = vmatprep.mubr.bf16.mxu0 0
    %3395 = vmatmul.mubr.bf16.gmra.mrb[0].mxu0 %v3247
    %v3396 = vpop.f32.mrb[0].mxu0
    %v3397 = vadd.f32 0.0, %v3396
    %v3398 = vpop.f32.mrb[0].mxu0
    %v3399 = vpop.f32.mrb[0].mxu0
    %v3400 = vadd.f32 0.0, %v3399
    %v3401 = vpop.f32.mrb[0].mxu0
    %3402 = vmatprep.mubr.bf16.mxu0 0
    %3403 = vmatmul.mubr.bf16.gmra.mrb[0].mxu0 %v3248
    %v3404 = vpop.f32.mrb[0].mxu0
    %v3405 = vadd.f32 0.0, %v3404
    %v3406 = vpop.f32.mrb[0].mxu0
    %v3407 = vpop.f32.mrb[0].mxu0
    %v3408 = vadd.f32 0.0, %v3407
    %v3409 = vpop.f32.mrb[0].mxu0
    %3410 = vdwg.mxu0
    %v3411 = vadd.f32 %v3209, %v3349
    %v3412 = vadd.f32 %v3210, %v3352
    %v3413 = vadd.f32 %v3211, %v3357
    %v3414 = vadd.f32 %v3212, %v3360
    %v3415 = vadd.f32 %v3213, %v3365
    %v3416 = vadd.f32 %v3214, %v3368
    %v3417 = vadd.f32 %v3215, %v3373
    %v3418 = vadd.f32 %v3216, %v3376
    %v3419 = vadd.f32 %v3217, %v3381
    %v3420 = vadd.f32 %v3218, %v3384
    %v3421 = vadd.f32 %v3219, %v3389
    %v3422 = vadd.f32 %v3220, %v3392
    %v3423 = vadd.f32 %v3221, %v3397
    %v3424 = vadd.f32 %v3222, %v3400
    %v3425 = vadd.f32 %v3223, %v3405
    %v3426 = vadd.f32 %v3224, %v3408
    %v3427 = vld [vmem:[%s3022 + $0x2] sm:$0xff]
    %v3428 = vld [vmem:[%s3022 + $0x12] sm:$0xff]
    %v3429 = vld [vmem:[%s3022 + $0x22] sm:$0xff]
    %v3430 = vld [vmem:[%s3022 + $0x32] sm:$0xff]
    %v3431 = vld [vmem:[%s3022 + $0x42] sm:$0xff]
    %v3432 = vld [vmem:[%s3022 + $0x52] sm:$0xff]
    %v3433 = vld [vmem:[%s3022 + $0x62] sm:$0xff]
    %v3434 = vld [vmem:[%s3022 + $0x72] sm:$0xff]
    %v3435 = vld [vmem:[%s3022 + $0xa2] sm:$0xff]
    %v3436 = vld [vmem:[%s3022 + $0xb2] sm:$0xff]
    %v3437 = vld [vmem:[%s3022 + $0xc2] sm:$0xff]
    %v3438 = vld [vmem:[%s3022 + $0xd2] sm:$0xff]
    %v3439 = vld [vmem:[%s3022 + $0xe2] sm:$0xff]
    %v3440 = vld [vmem:[%s3022 + $0xf2] sm:$0xff]
    %v3441 = vld [vmem:[%s3022 + $0x102] sm:$0xff]
    %v3442 = vld [vmem:[%s3022 + $0x112] sm:$0xff]
    %v3443 = vpack.c.bf16 %v3428, %v3427
    %v3444 = vpack.c.bf16 %v3430, %v3429
    %v3445 = vpack.c.bf16 %v3432, %v3431
    %v3446 = vpack.c.bf16 %v3434, %v3433
    %v3447 = vpack.c.bf16 %v3436, %v3435
    %v3448 = vpack.c.bf16 %v3438, %v3437
    %v3449 = vpack.c.bf16 %v3440, %v3439
    %v3450 = vpack.c.bf16 %v3442, %v3441
    %s3451 = scalar_lea.vmem %s6, 512
    %v3452 = vld [vmem:[%s3451] sm:$0xf]
    %v3453 = vld [vmem:[%s3451 + $0x4] sm:$0xf]
    %v3454 = vld [vmem:[%s3451 + $0x8] sm:$0xf]
    %v3455 = vld [vmem:[%s3451 + $0xc] sm:$0xf]
    %v3456 = vld [vmem:[%s3451 + $0x10] sm:$0xf]
    %v3457 = vld [vmem:[%s3451 + $0x14] sm:$0xf]
    %v3458 = vld [vmem:[%s3451 + $0x18] sm:$0xf]
    %v3459 = vld [vmem:[%s3451 + $0x1c] sm:$0xf]
    %v3460 = vld [vmem:[%s3451 + $0x20] sm:$0xf]
    %v3461 = vld [vmem:[%s3451 + $0x24] sm:$0xf]
    %v3462 = vld [vmem:[%s3451 + $0x28] sm:$0xf]
    %v3463 = vld [vmem:[%s3451 + $0x2c] sm:$0xf]
    %v3464 = vld [vmem:[%s3451 + $0x30] sm:$0xf]
    %v3465 = vld [vmem:[%s3451 + $0x34] sm:$0xf]
    %v3466 = vld [vmem:[%s3451 + $0x38] sm:$0xf]
    %v3467 = vld [vmem:[%s3451 + $0x3c] sm:$0xf]
    %v3484 = vunpack.c.l.b16 %v3452
    %v3485 = vunpack.c.l.b16 %v3453
    %v3486 = vunpack.c.l.b16 %v3454
    %v3487 = vunpack.c.l.b16 %v3455
    %v3488 = vunpack.c.l.b16 %v3456
    %v3489 = vunpack.c.l.b16 %v3457
    %v3490 = vunpack.c.l.b16 %v3458
    %v3491 = vunpack.c.l.b16 %v3459
    %v3492 = vunpack.c.l.b16 %v3460
    %v3493 = vunpack.c.l.b16 %v3461
    %v3494 = vunpack.c.l.b16 %v3462
    %v3495 = vunpack.c.l.b16 %v3463
    %v3496 = vunpack.c.l.b16 %v3464
    %v3497 = vunpack.c.l.b16 %v3465
    %v3498 = vunpack.c.l.b16 %v3466
    %v3499 = vunpack.c.l.b16 %v3467
    %v3500 = vpack.c.b16 %v3485, %v3484
    %v3501 = vpack.c.b16 %v3487, %v3486
    %v3502 = vpack.c.b16 %v3489, %v3488
    %v3503 = vpack.c.b16 %v3491, %v3490
    %v3504 = vpack.c.b16 %v3493, %v3492
    %v3505 = vpack.c.b16 %v3495, %v3494
    %v3506 = vpack.c.b16 %v3497, %v3496
    %v3507 = vpack.c.b16 %v3499, %v3498
    %3516 = vmatprep.subr.bf16.mxu0 0
    %3517 = vmatpush1.bf16.msra.mxu0 %v3500
    %3518 = vmatprep.subr.bf16.mxu0 0
    %3519 = vmatpush1.bf16.msra.mxu0 %v3501
    %3520 = vmatprep.subr.bf16.mxu0 0
    %3521 = vmatpush1.bf16.msra.mxu0 %v3502
    %3522 = vmatprep.subr.bf16.mxu0 0
    %3523 = vmatpush1.bf16.msra.mxu0 %v3503
    %3524 = vmatprep.subr.bf16.mxu0 0
    %3525 = vmatpush1.bf16.msra.mxu0 %v3504
    %3526 = vmatprep.subr.bf16.mxu0 0
    %3527 = vmatpush1.bf16.msra.mxu0 %v3505
    %3528 = vmatprep.subr.bf16.mxu0 0
    %3529 = vmatpush1.bf16.msra.mxu0 %v3506
    %3530 = vmatprep.subr.bf16.mxu0 0
    %3531 = vmatpush1.bf16.msra.mxu0 %v3507
    %3532 = vmatprep.subr.bf16.mxu0 0
    %3533 = vmatpush1.bf16.msra.mxu0 0
    %3534 = vmatprep.subr.bf16.mxu0 0
    %3535 = vmatpush1.bf16.msra.mxu0 0
    %3536 = vmatprep.subr.bf16.mxu0 0
    %3537 = vmatpush1.bf16.msra.mxu0 0
    %3538 = vmatprep.subr.bf16.mxu0 0
    %3539 = vmatpush1.bf16.msra.mxu0 0
    %3540 = vmatprep.subr.bf16.mxu0 0
    %3541 = vmatpush1.bf16.msra.mxu0 0
    %3542 = vmatprep.subr.bf16.mxu0 0
    %3543 = vmatpush1.bf16.msra.mxu0 0
    %3544 = vmatprep.subr.bf16.mxu0 0
    %3545 = vmatpush1.bf16.msra.mxu0 0
    %3546 = vmatprep.subr.bf16.mxu0 0
    %3547 = vmatpush1.bf16.msra.mxu0 0
    %3548 = vmatprep.mubr.bf16.mxu0 0
    %3549 = vmatmul.mubr.bf16.gmra.mrb[0].mxu0 %v3443
    %v3550 = vpop.f32.mrb[0].mxu0
    %v3551 = vadd.f32 0.0, %v3550
    %v3552 = vpop.f32.mrb[0].mxu0
    %v3553 = vpop.f32.mrb[0].mxu0
    %v3554 = vadd.f32 0.0, %v3553
    %v3555 = vpop.f32.mrb[0].mxu0
    %3556 = vmatprep.mubr.bf16.mxu0 0
    %3557 = vmatmul.mubr.bf16.gmra.mrb[0].mxu0 %v3444
    %v3558 = vpop.f32.mrb[0].mxu0
    %v3559 = vadd.f32 0.0, %v3558
    %v3560 = vpop.f32.mrb[0].mxu0
    %v3561 = vpop.f32.mrb[0].mxu0
    %v3562 = vadd.f32 0.0, %v3561
    %v3563 = vpop.f32.mrb[0].mxu0
    %3564 = vmatprep.mubr.bf16.mxu0 0
    %3565 = vmatmul.mubr.bf16.gmra.mrb[0].mxu0 %v3445
    %v3566 = vpop.f32.mrb[0].mxu0
    %v3567 = vadd.f32 0.0, %v3566
    %v3568 = vpop.f32.mrb[0].mxu0
    %v3569 = vpop.f32.mrb[0].mxu0
    %v3570 = vadd.f32 0.0, %v3569
    %v3571 = vpop.f32.mrb[0].mxu0
    %3572 = vmatprep.mubr.bf16.mxu0 0
    %3573 = vmatmul.mubr.bf16.gmra.mrb[0].mxu0 %v3446
    %v3574 = vpop.f32.mrb[0].mxu0
    %v3575 = vadd.f32 0.0, %v3574
    %v3576 = vpop.f32.mrb[0].mxu0
    %v3577 = vpop.f32.mrb[0].mxu0
    %v3578 = vadd.f32 0.0, %v3577
    %v3579 = vpop.f32.mrb[0].mxu0
    %3580 = vmatprep.mubr.bf16.mxu0 0
    %3581 = vmatmul.mubr.bf16.gmra.mrb[0].mxu0 %v3447
    %v3582 = vpop.f32.mrb[0].mxu0
    %v3583 = vadd.f32 0.0, %v3582
    %v3584 = vpop.f32.mrb[0].mxu0
    %v3585 = vpop.f32.mrb[0].mxu0
    %v3586 = vadd.f32 0.0, %v3585
    %v3587 = vpop.f32.mrb[0].mxu0
    %3588 = vmatprep.mubr.bf16.mxu0 0
    %3589 = vmatmul.mubr.bf16.gmra.mrb[0].mxu0 %v3448
    %v3590 = vpop.f32.mrb[0].mxu0
    %v3591 = vadd.f32 0.0, %v3590
    %v3592 = vpop.f32.mrb[0].mxu0
    %v3593 = vpop.f32.mrb[0].mxu0
    %v3594 = vadd.f32 0.0, %v3593
    %v3595 = vpop.f32.mrb[0].mxu0
    %3596 = vmatprep.mubr.bf16.mxu0 0
    %3597 = vmatmul.mubr.bf16.gmra.mrb[0].mxu0 %v3449
    %v3598 = vpop.f32.mrb[0].mxu0
    %v3599 = vadd.f32 0.0, %v3598
    %v3600 = vpop.f32.mrb[0].mxu0
    %v3601 = vpop.f32.mrb[0].mxu0
    %v3602 = vadd.f32 0.0, %v3601
    %v3603 = vpop.f32.mrb[0].mxu0
    %3604 = vmatprep.mubr.bf16.mxu0 0
    %3605 = vmatmul.mubr.bf16.gmra.mrb[0].mxu0 %v3450
    %v3606 = vpop.f32.mrb[0].mxu0
    %v3607 = vadd.f32 0.0, %v3606
    %v3608 = vpop.f32.mrb[0].mxu0
    %v3609 = vpop.f32.mrb[0].mxu0
    %v3610 = vadd.f32 0.0, %v3609
    %v3611 = vpop.f32.mrb[0].mxu0
    %3612 = vdwg.mxu0
    %v3613 = vadd.f32 %v3411, %v3551
    %v3614 = vadd.f32 %v3412, %v3554
    %v3615 = vadd.f32 %v3413, %v3559
    %v3616 = vadd.f32 %v3414, %v3562
    %v3617 = vadd.f32 %v3415, %v3567
    %v3618 = vadd.f32 %v3416, %v3570
    %v3619 = vadd.f32 %v3417, %v3575
    %v3620 = vadd.f32 %v3418, %v3578
    %v3621 = vadd.f32 %v3419, %v3583
    %v3622 = vadd.f32 %v3420, %v3586
    %v3623 = vadd.f32 %v3421, %v3591
    %v3624 = vadd.f32 %v3422, %v3594
    %v3625 = vadd.f32 %v3423, %v3599
    %v3626 = vadd.f32 %v3424, %v3602
    %v3627 = vadd.f32 %v3425, %v3607
    %v3628 = vadd.f32 %v3426, %v3610
    %v3629 = vld [vmem:[%s7] sm:$0x1]
    %v3631 = vlaneseq
    %v3632 = vshrl.u32 %v3631, 7
    %v3633 = vsub.s32 0, %v3632
    %v3634 = vrot.slane %v3629, %v3633
    %v3636 = vadd.f32 %v3613, %v3634
    %v3637 = vadd.f32 %v3614, %v3634
    %v3638 = vadd.f32 %v3615, %v3634
    %v3639 = vadd.f32 %v3616, %v3634
    %v3640 = vadd.f32 %v3617, %v3634
    %v3641 = vadd.f32 %v3618, %v3634
    %v3642 = vadd.f32 %v3619, %v3634
    %v3643 = vadd.f32 %v3620, %v3634
    %v3644 = vadd.f32 %v3621, %v3634
    %v3645 = vadd.f32 %v3622, %v3634
    %v3646 = vadd.f32 %v3623, %v3634
    %v3647 = vadd.f32 %v3624, %v3634
    %v3648 = vadd.f32 %v3625, %v3634
    %v3649 = vadd.f32 %v3626, %v3634
    %v3650 = vadd.f32 %v3627, %v3634
    %v3651 = vadd.f32 %v3628, %v3634
    %v3652 = vmax.f32 %v3636, 0.0
    %v3653 = vmax.f32 %v3637, 0.0
    %v3654 = vmax.f32 %v3638, 0.0
    %v3655 = vmax.f32 %v3639, 0.0
    %v3656 = vmax.f32 %v3640, 0.0
    %v3657 = vmax.f32 %v3641, 0.0
    %v3658 = vmax.f32 %v3642, 0.0
    %v3659 = vmax.f32 %v3643, 0.0
    %v3660 = vmax.f32 %v3644, 0.0
    %v3661 = vmax.f32 %v3645, 0.0
    %v3662 = vmax.f32 %v3646, 0.0
    %v3663 = vmax.f32 %v3647, 0.0
    %v3664 = vmax.f32 %v3648, 0.0
    %v3665 = vmax.f32 %v3649, 0.0
    %v3666 = vmax.f32 %v3650, 0.0
    %v3667 = vmax.f32 %v3651, 0.0
    %3668 = vst [vmem:[#allocation3] sm:$0xff] %v3652
    %3669 = vst [vmem:[#allocation3 + $0x8] sm:$0xff] %v3653
    %3670 = vst [vmem:[#allocation3 + $0x10] sm:$0xff] %v3654
    %3671 = vst [vmem:[#allocation3 + $0x18] sm:$0xff] %v3655
    %3672 = vst [vmem:[#allocation3 + $0x20] sm:$0xff] %v3656
    %3673 = vst [vmem:[#allocation3 + $0x28] sm:$0xff] %v3657
    %3674 = vst [vmem:[#allocation3 + $0x30] sm:$0xff] %v3658
    %3675 = vst [vmem:[#allocation3 + $0x38] sm:$0xff] %v3659
    %3676 = vst [vmem:[#allocation3 + $0x40] sm:$0xff] %v3660
    %3677 = vst [vmem:[#allocation3 + $0x48] sm:$0xff] %v3661
    %3678 = vst [vmem:[#allocation3 + $0x50] sm:$0xff] %v3662
    %3679 = vst [vmem:[#allocation3 + $0x58] sm:$0xff] %v3663
    %3680 = vst [vmem:[#allocation3 + $0x60] sm:$0xff] %v3664
    %3681 = vst [vmem:[#allocation3 + $0x68] sm:$0xff] %v3665
    %3682 = vst [vmem:[#allocation3 + $0x70] sm:$0xff] %v3666
    %3683 = vst [vmem:[#allocation3 + $0x78] sm:$0xff] %v3667
    // Predicated region
    $region34: #{backbone_forward.1} parent=1 // pred_check
      _
    $region35: #{backbone_forward.1} parent=1 // pred_check_branch
      %3685 = sbr.rel (0) target = $region37
    $region36: #{backbone_forward.1} parent=1 // pred_region
      %s3687 = ssub.s32 2048, 2048
      %3688 = vsyncadd [#allocation4], %s3687
      %s3689 = sshll.u32 [#allocation3], 4
      %s3690 = int_to_ptr.vmem [resolvable:$true] %s3689
      %3695 = dma.vmem_to_hbm [thread:$0]  %s3690, 2048, %s8, [#allocation4], 128, 128, 8
    $region37: #{backbone_forward.1} parent=1 // pred_fallthru
      _
    // Predicated region
    $region38: #{backbone_forward.1} parent=1 // pred_check
      _
    $region39: #{backbone_forward.1} parent=1 // pred_check_branch
      %3697 = sbr.rel (0) target = $region41
    $region40: #{backbone_forward.1} parent=1 // pred_region
      %3698 = dma.done [#allocation4], 2048
    $region41: #{backbone_forward.1} parent=1 // pred_fallthru
      _
    %3699 = vsyncpa [#allocation4], 1

</llo_original>
